<compile_context>
chip_gen: v7x
topology: tpu7x:2x2x1
jax: 0.10.0
libtpu: 0.0.40
codegen_flags: <defaults>
</compile_context>

<pallas_src>
import jax
import jax.numpy as jnp
import numpy as np
from jax.experimental import pallas as pl
from jax.experimental.pallas import tpu as pltpu

EPS = 1e-5  # PyTorch BatchNorm3d default eps


def _round_up(x, m):
    return ((x + m - 1) // m) * m


# ---------------------------------------------------------------------------
# MaxPool3d(kernel=2, stride=2), channels-last.
# Input is presented to the kernel as (N, D, H, W//2, 2*C) so the lane axis
# carries W*C; the width pool is a max of the two lane halves.
# ---------------------------------------------------------------------------
def _maxpool_kernel(x_ref, o_ref):
    # x_ref block: (1, 2, H, Wo, 2*C);  o_ref block: (1, 1, Ho, Wo, C)
    C = o_ref.shape[-1]
    xb = x_ref[0]                                  # (2, H, Wo, 2C)
    a = jnp.maximum(xb[0], xb[1])                  # depth pool   -> (H, Wo, 2C)
    a = jnp.maximum(a[..., :C], a[..., C:])        # width pool   -> (H, Wo, C)
    H = a.shape[0]
    a = a.reshape(H // 2, 2, a.shape[1], C)        # split leading dim (free)
    a = jnp.maximum(a[:, 0], a[:, 1])              # height pool  -> (Ho, Wo, C)
    o_ref[0, 0] = a


def maxpool3d_2x(x_cl):
    # x_cl: (N, D, H, W, C) channels-last
    N, D, H, W, C = x_cl.shape
    Do, Ho, Wo = D // 2, H // 2, W // 2
    xv = x_cl.reshape(N, D, H, Wo, 2 * C)          # free row-major regroup
    return pl.pallas_call(
        _maxpool_kernel,
        grid=(N, Do),
        in_specs=[pl.BlockSpec((1, 2, H, Wo, 2 * C),
                               lambda n, d: (n, d, 0, 0, 0))],
        out_specs=pl.BlockSpec((1, 1, Ho, Wo, C),
                               lambda n, d: (n, d, 0, 0, 0)),
        out_shape=jax.ShapeDtypeStruct((N, Do, Ho, Wo, C), x_cl.dtype),
        compiler_params=pltpu.CompilerParams(
            dimension_semantics=("parallel", "parallel")),
    )(xv)


# ---------------------------------------------------------------------------
# Conv pass A: conv(3x3x3) + bias, accumulated over the depth taps, plus
# per-channel sum / sum-of-squares for training-mode BatchNorm.
# grid = (N, D, 3); kd (depth tap) is the innermost reduction axis.
# ---------------------------------------------------------------------------
def _conv_stats_kernel(xp_ref, w_ref, b_ref, y_ref, stats_ref, acc_ref):
    d = pl.program_id(1)
    kd = pl.program_id(2)

    @pl.when(kd == 0)
    def _():
        acc_ref[...] = jnp.zeros_like(acc_ref)

    @pl.when(jnp.logical_and(d == 0, kd == 0))
    def _():
        stats_ref[...] = jnp.zeros_like(stats_ref)

    xt = xp_ref[0, 0]                              # (H+2, W+2, Cin) bf16
    Hp, Wp, Cin = xt.shape
    H, W = Hp - 2, Wp - 2
    HW = H * W
    CP = acc_ref.shape[-1]

    # In-kernel patch extraction: 9 shifted (HW, Cin) x (Cin, CP) MXU matmuls.
    contrib = jnp.zeros((HW, CP), jnp.float32)
    for kh in range(3):
        for kw in range(3):
            xs = xt[kh:kh + H, kw:kw + W, :].reshape(HW, Cin)
            contrib = contrib + jnp.dot(
                xs, w_ref[kd, kh * 3 + kw],
                preferred_element_type=jnp.float32)
    acc_ref[...] += contrib

    @pl.when(kd == pl.num_programs(2) - 1)
    def _():
        y = acc_ref[...] + b_ref[...]              # conv bias (broadcast (1, CP))
        y_ref[0, 0] = y
        s = jnp.sum(y, axis=0, keepdims=True)      # (1, CP)
        ss = jnp.sum(y * y, axis=0, keepdims=True)
        stats_ref[0] += jnp.concatenate(
            [s, ss, jnp.zeros((6, CP), jnp.float32)], axis=0)


# ---------------------------------------------------------------------------
# Conv pass B: y * scale + shift, ReLU  (BN with batch stats folded into
# per-channel scale/shift).
# ---------------------------------------------------------------------------
def _bn_relu_kernel(y_ref, scale_ref, shift_ref, o_ref):
    z = y_ref[0, 0] * scale_ref[...] + shift_ref[...]
    o_ref[0, 0] = jnp.maximum(z, 0.0)


def _prep_weight(w, cin_act, cp):
    # w: (Cout, Cin_w, 3, 3, 3) -> (3, 9, cin_act, cp) bf16, tap order (kh, kw).
    Cout, Cin_w = w.shape[0], w.shape[1]
    wt = jnp.transpose(w, (2, 3, 4, 1, 0)).reshape(3, 9, Cin_w, Cout)
    wt = jnp.pad(wt, ((0, 0), (0, 0), (0, cin_act - Cin_w), (0, cp - Cout)))
    return wt.astype(jnp.bfloat16)


def conv3x3_bn_relu_block(x_cl, w, b, gamma, beta):
    # x_cl: (N, D, H, W, Cin_act) channels-last (Cin_act may already be 128-padded;
    # any extra channels are zero and meet zero-padded weights).
    N, D, H, W, Cin_act = x_cl.shape
    Cout = w.shape[0]
    CP = _round_up(Cout, 128)
    HW = H * W

    xp = jnp.pad(x_cl, ((0, 0), (1, 1), (1, 1), (1, 1), (0, 0)))
    xp = xp.astype(jnp.bfloat16)                          # bf16 MXU operand
    wt = _prep_weight(w, Cin_act, CP)                     # (3, 9, Cin_act, CP) bf16
    bp = jnp.pad(b, (0, CP - Cout)).reshape(1, CP).astype(jnp.float32)

    flops = int(2 * N * D * HW * 27 * Cin_act * CP)
    bytes_accessed = int(xp.size * 2 + wt.size * 2 + bp.size * 4
                         + N * D * HW * CP * 4 + N * 8 * CP * 4)

    y, stats = pl.pallas_call(
        _conv_stats_kernel,
        grid=(N, D, 3),
        in_specs=[
            pl.BlockSpec((1, 1, H + 2, W + 2, Cin_act),
                         lambda n, d, k: (n, d + k, 0, 0, 0)),
            pl.BlockSpec((3, 9, Cin_act, CP), lambda n, d, k: (0, 0, 0, 0)),
            pl.BlockSpec((1, CP), lambda n, d, k: (0, 0)),
        ],
        out_specs=(
            pl.BlockSpec((1, 1, HW, CP), lambda n, d, k: (n, d, 0, 0)),
            pl.BlockSpec((1, 8, CP), lambda n, d, k: (n, 0, 0)),
        ),
        out_shape=(
            jax.ShapeDtypeStruct((N, D, HW, CP), jnp.float32),
            jax.ShapeDtypeStruct((N, 8, CP), jnp.float32),
        ),
        scratch_shapes=[pltpu.VMEM((HW, CP), jnp.float32)],
        compiler_params=pltpu.CompilerParams(
            dimension_semantics=("parallel", "arbitrary", "arbitrary"),
            vmem_limit_bytes=32 * 1024 * 1024),
        cost_estimate=pl.CostEstimate(flops=flops, transcendentals=0,
                                      bytes_accessed=bytes_accessed),
    )(xp, wt, bp)

    # Finalize BN batch statistics (biased variance, PyTorch training mode).
    M = N * D * HW
    s = jnp.sum(stats[:, 0, :], axis=0)
    ss = jnp.sum(stats[:, 1, :], axis=0)
    mean = s / M
    var = jnp.maximum(ss / M - mean * mean, 0.0)
    gp = jnp.pad(gamma, (0, CP - Cout)).astype(jnp.float32)
    bep = jnp.pad(beta, (0, CP - Cout)).astype(jnp.float32)
    scale = (gp * jax.lax.rsqrt(var + EPS)).reshape(1, CP)
    shift = (bep - mean * gp * jax.lax.rsqrt(var + EPS)).reshape(1, CP)

    out = pl.pallas_call(
        _bn_relu_kernel,
        grid=(N, D),
        in_specs=[
            pl.BlockSpec((1, 1, HW, CP), lambda n, d: (n, d, 0, 0)),
            pl.BlockSpec((1, CP), lambda n, d: (0, 0)),
            pl.BlockSpec((1, CP), lambda n, d: (0, 0)),
        ],
        out_specs=pl.BlockSpec((1, 1, HW, CP), lambda n, d: (n, d, 0, 0)),
        out_shape=jax.ShapeDtypeStruct((N, D, HW, CP), jnp.float32),
        compiler_params=pltpu.CompilerParams(
            dimension_semantics=("parallel", "parallel")),
    )(y, scale, shift)

    return out.reshape(N, D, H, W, CP)


def encoder3d_forward(x, p):
    # x: (N, Cin, D, H, W) NCDHW, as in PyTorch.
    x_cl = jnp.transpose(x, (0, 2, 3, 4, 1))              # -> channels-last
    x_cl = maxpool3d_2x(x_cl)
    a1 = conv3x3_bn_relu_block(x_cl, p["w1"], p["b1"], p["g1"], p["be1"])
    a2 = conv3x3_bn_relu_block(a1, p["w2"], p["b2"], p["g2"], p["be2"])
    Cout = p["w2"].shape[0]
    out = a2[..., :Cout]                                  # strip 128-lane padding once
    return jnp.transpose(out, (0, 4, 1, 2, 3))            # back to NCDHW
    # TODO(synk): dropout branch (dropout=False default) not implemented; would need pltpu.prng_* bits.


# ---------------------------------------------------------------------------
# Pure-JAX f32 reference for a correctness spot-check.
# ---------------------------------------------------------------------------
def _reference(x, p):
    x = jax.lax.reduce_window(x, -jnp.inf, jax.lax.max,
                              window_dimensions=(1, 1, 2, 2, 2),
                              window_strides=(1, 1, 2, 2, 2), padding="VALID")

    def block(x, w, b, g, be):
        y = jax.lax.conv_general_dilated(
            x, w, window_strides=(1, 1, 1), padding="SAME",
            dimension_numbers=("NCDHW", "OIDHW", "NCDHW"))
        y = y + b[None, :, None, None, None]
        mean = jnp.mean(y, axis=(0, 2, 3, 4), keepdims=True)
        var = jnp.mean((y - mean) ** 2, axis=(0, 2, 3, 4), keepdims=True)
        y = (y - mean) * jax.lax.rsqrt(var + EPS)
        y = g[None, :, None, None, None] * y + be[None, :, None, None, None]
        return jnp.maximum(y, 0.0)

    x = block(x, p["w1"], p["b1"], p["g1"], p["be1"])
    x = block(x, p["w2"], p["b2"], p["g2"], p["be2"])
    return x


if __name__ == "__main__":
    # batch=2, in_channels=4, middle=8, out=8, spatial=16 (-> 8 after the pool)
    N, Cin, Cmid, Cout, S = 2, 4, 8, 8, 16
    key = jax.random.PRNGKey(0)
    ks = jax.random.split(key, 9)

    x = jax.random.normal(ks[0], (N, Cin, S, S, S), dtype=jnp.float32)
    params = {
        "w1": 0.1 * jax.random.normal(ks[1], (Cmid, Cin, 3, 3, 3), dtype=jnp.float32),
        "b1": 0.05 * jax.random.normal(ks[2], (Cmid,), dtype=jnp.float32),
        "g1": 1.0 + 0.1 * jax.random.normal(ks[3], (Cmid,), dtype=jnp.float32),
        "be1": 0.1 * jax.random.normal(ks[4], (Cmid,), dtype=jnp.float32),
        "w2": 0.1 * jax.random.normal(ks[5], (Cout, Cmid, 3, 3, 3), dtype=jnp.float32),
        "b2": 0.05 * jax.random.normal(ks[6], (Cout,), dtype=jnp.float32),
        "g2": 1.0 + 0.1 * jax.random.normal(ks[7], (Cout,), dtype=jnp.float32),
        "be2": 0.1 * jax.random.normal(ks[8], (Cout,), dtype=jnp.float32),
    }

    out = jax.block_until_ready(jax.jit(encoder3d_forward)(x, params))
    ref = jax.block_until_ready(jax.jit(_reference)(x, params))

    assert out.shape == (N, Cout, S // 2, S // 2, S // 2), out.shape
    o_np, r_np = np.asarray(out), np.asarray(ref)
    assert np.all(np.isfinite(o_np))
    # bf16 MXU operands (f32 accumulation / BN stats) -> looser tolerance than pure f32.
    assert np.allclose(o_np, r_np, atol=1e-1, rtol=1e-1), float(np.max(np.abs(o_np - r_np)))

    print("KERNEL_OK")
</pallas_src>

<mosaic_0001>
module attributes {stable_mosaic.version = 11 : i64} {
  func.func @_maxpool_kernel(%arg0: i32, %arg1: i32, %arg2: memref<1x2x16x8x8xf32, #tpu.memory_space<vmem>>, %arg3: memref<1x1x8x8x4xf32, #tpu.memory_space<vmem>>) attributes {dimension_semantics = [#tpu.dimension_semantics<parallel>, #tpu.dimension_semantics<parallel>], iteration_bounds = array<i64: 2, 8>, scalar_prefetch = 0 : i64, scratch_operands = 0 : i64, tpu.core_type = #tpu.core_type<tc>, window_params = [{transform_indices = @transform_0, window_bounds = array<i64: 1, 2, 16, 8, 8>}, {transform_indices = @transform_1, window_bounds = array<i64: 1, 1, 8, 8, 4>}]} {
    %c0 = arith.constant 0 : index
    %c0_0 = arith.constant 0 : index
    %c0_1 = arith.constant 0 : index
    %c0_2 = arith.constant 0 : index
    %c0_3 = arith.constant 0 : index
    %0 = vector.load %arg2[%c0, %c0_0, %c0_1, %c0_2, %c0_3] : memref<1x2x16x8x8xf32, #tpu.memory_space<vmem>>, vector<1x2x16x8x8xf32>
    %1 = vector.shape_cast %0 : vector<1x2x16x8x8xf32> to vector<2x16x8x8xf32>
    %2 = vector.extract_strided_slice %1 {offsets = [0, 0, 0, 0], sizes = [1, 16, 8, 8], strides = [1, 1, 1, 1]} : vector<2x16x8x8xf32> to vector<1x16x8x8xf32>
    %3 = vector.shape_cast %2 : vector<1x16x8x8xf32> to vector<16x8x8xf32>
    %4 = vector.extract_strided_slice %1 {offsets = [1, 0, 0, 0], sizes = [1, 16, 8, 8], strides = [1, 1, 1, 1]} : vector<2x16x8x8xf32> to vector<1x16x8x8xf32>
    %5 = vector.shape_cast %4 : vector<1x16x8x8xf32> to vector<16x8x8xf32>
    %6 = arith.maximumf %3, %5 : vector<16x8x8xf32>
    %7 = vector.extract_strided_slice %6 {offsets = [0, 0, 0], sizes = [16, 8, 4], strides = [1, 1, 1]} : vector<16x8x8xf32> to vector<16x8x4xf32>
    %8 = vector.extract_strided_slice %6 {offsets = [0, 0, 4], sizes = [16, 8, 4], strides = [1, 1, 1]} : vector<16x8x8xf32> to vector<16x8x4xf32>
    %9 = arith.maximumf %7, %8 : vector<16x8x4xf32>
    %10 = vector.shape_cast %9 : vector<16x8x4xf32> to vector<8x2x8x4xf32>
    %11 = vector.extract_strided_slice %10 {offsets = [0, 0, 0, 0], sizes = [8, 1, 8, 4], strides = [1, 1, 1, 1]} : vector<8x2x8x4xf32> to vector<8x1x8x4xf32>
    %12 = vector.shape_cast %11 : vector<8x1x8x4xf32> to vector<8x8x4xf32>
    %13 = vector.extract_strided_slice %10 {offsets = [0, 1, 0, 0], sizes = [8, 1, 8, 4], strides = [1, 1, 1, 1]} : vector<8x2x8x4xf32> to vector<8x1x8x4xf32>
    %14 = vector.shape_cast %13 : vector<8x1x8x4xf32> to vector<8x8x4xf32>
    %15 = arith.maximumf %12, %14 : vector<8x8x4xf32>
    %c0_4 = arith.constant 0 : index
    %c0_5 = arith.constant 0 : index
    %c0_6 = arith.constant 0 : index
    %c0_7 = arith.constant 0 : index
    %c0_8 = arith.constant 0 : index
    %16 = vector.load %arg3[%c0_4, %c0_5, %c0_6, %c0_7, %c0_8] : memref<1x1x8x8x4xf32, #tpu.memory_space<vmem>>, vector<1x1x8x8x4xf32>
    %17 = vector.shape_cast %16 : vector<1x1x8x8x4xf32> to vector<8x8x4xf32>
    %18 = vector.shape_cast %15 : vector<8x8x4xf32> to vector<1x1x8x8x4xf32>
    tpu.vector_store %arg3[%c0_4, %c0_5, %c0_6, %c0_7, %c0_8], %18 {strides = array<i32>} : memref<1x1x8x8x4xf32, #tpu.memory_space<vmem>>, vector<1x1x8x8x4xf32>,
    return
  }
  func.func @transform_0(%arg0: i32, %arg1: i32) -> (i32, i32, i32, i32, i32) {
    %c0_i32 = arith.constant 0 : i32
    %c0_i32_0 = arith.constant 0 : i32
    %c0_i32_1 = arith.constant 0 : i32
    %c0_i32_2 = arith.constant 0 : i32
    return %arg0, %arg1, %c0_i32, %c0_i32_0, %c0_i32_1 : i32, i32, i32, i32, i32
  }
  func.func @transform_1(%arg0: i32, %arg1: i32) -> (i32, i32, i32, i32, i32) {
    %c0_i32 = arith.constant 0 : i32
    %c0_i32_0 = arith.constant 0 : i32
    %c0_i32_1 = arith.constant 0 : i32
    %c0_i32_2 = arith.constant 0 : i32
    return %arg0, %arg1, %c0_i32, %c0_i32_0, %c0_i32_1 : i32, i32, i32, i32, i32
  }
}

module attributes {stable_mosaic.version = 11 : i64} {
  func.func @_conv_stats_kernel(%arg0: i32, %arg1: i32, %arg2: i32, %arg3: memref<1x1x10x10x4xbf16, #tpu.memory_space<vmem>>, %arg4: memref<3x9x4x128xbf16, #tpu.memory_space<vmem>>, %arg5: memref<1x128xf32, #tpu.memory_space<vmem>>, %arg6: memref<1x1x64x128xf32, #tpu.memory_space<vmem>>, %arg7: memref<1x8x128xf32, #tpu.memory_space<vmem>>, %arg8: memref<64x128xf32, #tpu.memory_space<vmem>>) attributes {dimension_semantics = [#tpu.dimension_semantics<parallel>, #tpu.dimension_semantics<arbitrary>, #tpu.dimension_semantics<arbitrary>], iteration_bounds = array<i64: 2, 8, 3>, scalar_prefetch = 0 : i64, scratch_operands = 1 : i64, tpu.core_type = #tpu.core_type<tc>, window_params = [{transform_indices = @transform_0, window_bounds = array<i64: 1, 1, 10, 10, 4>}, {pipeline_mode = #tpu.pipeline_mode<synchronous>, transform_indices = @transform_1, window_bounds = array<i64: 3, 9, 4, 128>}, {pipeline_mode = #tpu.pipeline_mode<synchronous>, transform_indices = @transform_2, window_bounds = array<i64: 1, 128>}, {transform_indices = @transform_3, window_bounds = array<i64: 1, 1, 64, 128>}, {transform_indices = @transform_4, window_bounds = array<i64: 1, 8, 128>}]} {
    %c0_i32 = arith.constant 0 : i32
    %0 = arith.cmpi eq, %arg2, %c0_i32 : i32
    %1 = arith.extui %0 : i1 to i32
    %c0_i32_0 = arith.constant 0 : i32
    %2 = arith.cmpi ne, %1, %c0_i32_0 : i32
    scf.if %2 {
      %cst_41 = arith.constant 0.000000e+00 : f32
      %80 = vector.broadcast %cst_41 : f32 to vector<64x128xf32>
      %c0_42 = arith.constant 0 : index
      %c0_43 = arith.constant 0 : index
      %81 = vector.load %arg8[%c0_42, %c0_43] : memref<64x128xf32, #tpu.memory_space<vmem>>, vector<64x128xf32>
      tpu.vector_store %arg8[%c0_42, %c0_43], %80 {strides = array<i32>} : memref<64x128xf32, #tpu.memory_space<vmem>>, vector<64x128xf32>,
    } else {
    }
    %c0_i32_1 = arith.constant 0 : i32
    %3 = arith.cmpi eq, %arg1, %c0_i32_1 : i32
    %c0_i32_2 = arith.constant 0 : i32
    %4 = arith.cmpi eq, %arg2, %c0_i32_2 : i32
    %5 = arith.andi %3, %4 : i1
    %6 = arith.extui %5 : i1 to i32
    %c0_i32_3 = arith.constant 0 : i32
    %7 = arith.cmpi ne, %6, %c0_i32_3 : i32
    scf.if %7 {
      %cst_41 = arith.constant 0.000000e+00 : f32
      %80 = vector.broadcast %cst_41 : f32 to vector<1x8x128xf32>
      %c0_42 = arith.constant 0 : index
      %c0_43 = arith.constant 0 : index
      %c0_44 = arith.constant 0 : index
      %81 = vector.load %arg7[%c0_42, %c0_43, %c0_44] : memref<1x8x128xf32, #tpu.memory_space<vmem>>, vector<1x8x128xf32>
      tpu.vector_store %arg7[%c0_42, %c0_43, %c0_44], %80 {strides = array<i32>} : memref<1x8x128xf32, #tpu.memory_space<vmem>>, vector<1x8x128xf32>,
    } else {
    }
    %c0 = arith.constant 0 : index
    %c0_4 = arith.constant 0 : index
    %c0_5 = arith.constant 0 : index
    %c0_6 = arith.constant 0 : index
    %c0_7 = arith.constant 0 : index
    %8 = vector.load %arg3[%c0, %c0_4, %c0_5, %c0_6, %c0_7] : memref<1x1x10x10x4xbf16, #tpu.memory_space<vmem>>, vector<1x1x10x10x4xbf16>
    %9 = vector.shape_cast %8 : vector<1x1x10x10x4xbf16> to vector<10x10x4xbf16>
    %cst = arith.constant 0.000000e+00 : f32
    %10 = vector.broadcast %cst : f32 to vector<64x128xf32>
    %11 = vector.extract_strided_slice %9 {offsets = [0, 0, 0], sizes = [8, 8, 4], strides = [1, 1, 1]} : vector<10x10x4xbf16> to vector<8x8x4xbf16>
    %12 = vector.shape_cast %11 : vector<8x8x4xbf16> to vector<64x4xbf16>
    %13 = arith.index_cast %arg2 : i32 to index
    %c0_8 = arith.constant 0 : index
    %c0_9 = arith.constant 0 : index
    %c0_10 = arith.constant 0 : index
    %14 = vector.load %arg4[%13, %c0_8, %c0_9, %c0_10] : memref<3x9x4x128xbf16, #tpu.memory_space<vmem>>, vector<1x1x4x128xbf16>
    %15 = vector.shape_cast %14 : vector<1x1x4x128xbf16> to vector<4x128xbf16>
    %cst_11 = arith.constant dense<0.000000e+00> : vector<64x128xf32>
    %16 = tpu.matmul %12, %15, %cst_11 {dimension_numbers = #tpu.dot_dimension_numbers<[1], [0], [0], [1], [0, 0, 1, 1], [], []>} : vector<64x4xbf16>, vector<4x128xbf16>, vector<64x128xf32> -> vector<64x128xf32>
    %17 = arith.addf %10, %16 : vector<64x128xf32>
    %18 = vector.extract_strided_slice %9 {offsets = [0, 1, 0], sizes = [8, 8, 4], strides = [1, 1, 1]} : vector<10x10x4xbf16> to vector<8x8x4xbf16>
    %19 = vector.shape_cast %18 : vector<8x8x4xbf16> to vector<64x4xbf16>
    %20 = arith.index_cast %arg2 : i32 to index
    %c1 = arith.constant 1 : index
    %c0_12 = arith.constant 0 : index
    %c0_13 = arith.constant 0 : index
    %21 = vector.load %arg4[%20, %c1, %c0_12, %c0_13] : memref<3x9x4x128xbf16, #tpu.memory_space<vmem>>, vector<1x1x4x128xbf16>
    %22 = vector.shape_cast %21 : vector<1x1x4x128xbf16> to vector<4x128xbf16>
    %cst_14 = arith.constant dense<0.000000e+00> : vector<64x128xf32>
    %23 = tpu.matmul %19, %22, %cst_14 {dimension_numbers = #tpu.dot_dimension_numbers<[1], [0], [0], [1], [0, 0, 1, 1], [], []>} : vector<64x4xbf16>, vector<4x128xbf16>, vector<64x128xf32> -> vector<64x128xf32>
    %24 = arith.addf %17, %23 : vector<64x128xf32>
    %25 = vector.extract_strided_slice %9 {offsets = [0, 2, 0], sizes = [8, 8, 4], strides = [1, 1, 1]} : vector<10x10x4xbf16> to vector<8x8x4xbf16>
    %26 = vector.shape_cast %25 : vector<8x8x4xbf16> to vector<64x4xbf16>
    %27 = arith.index_cast %arg2 : i32 to index
    %c2 = arith.constant 2 : index
    %c0_15 = arith.constant 0 : index
    %c0_16 = arith.constant 0 : index
    %28 = vector.load %arg4[%27, %c2, %c0_15, %c0_16] : memref<3x9x4x128xbf16, #tpu.memory_space<vmem>>, vector<1x1x4x128xbf16>
    %29 = vector.shape_cast %28 : vector<1x1x4x128xbf16> to vector<4x128xbf16>
    %cst_17 = arith.constant dense<0.000000e+00> : vector<64x128xf32>
    %30 = tpu.matmul %26, %29, %cst_17 {dimension_numbers = #tpu.dot_dimension_numbers<[1], [0], [0], [1], [0, 0, 1, 1], [], []>} : vector<64x4xbf16>, vector<4x128xbf16>, vector<64x128xf32> -> vector<64x128xf32>
    %31 = arith.addf %24, %30 : vector<64x128xf32>
    %32 = vector.extract_strided_slice %9 {offsets = [1, 0, 0], sizes = [8, 8, 4], strides = [1, 1, 1]} : vector<10x10x4xbf16> to vector<8x8x4xbf16>
    %33 = vector.shape_cast %32 : vector<8x8x4xbf16> to vector<64x4xbf16>
    %34 = arith.index_cast %arg2 : i32 to index
    %c3 = arith.constant 3 : index
    %c0_18 = arith.constant 0 : index
    %c0_19 = arith.constant 0 : index
    %35 = vector.load %arg4[%34, %c3, %c0_18, %c0_19] : memref<3x9x4x128xbf16, #tpu.memory_space<vmem>>, vector<1x1x4x128xbf16>
    %36 = vector.shape_cast %35 : vector<1x1x4x128xbf16> to vector<4x128xbf16>
    %cst_20 = arith.constant dense<0.000000e+00> : vector<64x128xf32>
    %37 = tpu.matmul %33, %36, %cst_20 {dimension_numbers = #tpu.dot_dimension_numbers<[1], [0], [0], [1], [0, 0, 1, 1], [], []>} : vector<64x4xbf16>, vector<4x128xbf16>, vector<64x128xf32> -> vector<64x128xf32>
    %38 = arith.addf %31, %37 : vector<64x128xf32>
    %39 = vector.extract_strided_slice %9 {offsets = [1, 1, 0], sizes = [8, 8, 4], strides = [1, 1, 1]} : vector<10x10x4xbf16> to vector<8x8x4xbf16>
    %40 = vector.shape_cast %39 : vector<8x8x4xbf16> to vector<64x4xbf16>
    %41 = arith.index_cast %arg2 : i32 to index
    %c4 = arith.constant 4 : index
    %c0_21 = arith.constant 0 : index
    %c0_22 = arith.constant 0 : index
    %42 = vector.load %arg4[%41, %c4, %c0_21, %c0_22] : memref<3x9x4x128xbf16, #tpu.memory_space<vmem>>, vector<1x1x4x128xbf16>
    %43 = vector.shape_cast %42 : vector<1x1x4x128xbf16> to vector<4x128xbf16>
    %cst_23 = arith.constant dense<0.000000e+00> : vector<64x128xf32>
    %44 = tpu.matmul %40, %43, %cst_23 {dimension_numbers = #tpu.dot_dimension_numbers<[1], [0], [0], [1], [0, 0, 1, 1], [], []>} : vector<64x4xbf16>, vector<4x128xbf16>, vector<64x128xf32> -> vector<64x128xf32>
    %45 = arith.addf %38, %44 : vector<64x128xf32>
    %46 = vector.extract_strided_slice %9 {offsets = [1, 2, 0], sizes = [8, 8, 4], strides = [1, 1, 1]} : vector<10x10x4xbf16> to vector<8x8x4xbf16>
    %47 = vector.shape_cast %46 : vector<8x8x4xbf16> to vector<64x4xbf16>
    %48 = arith.index_cast %arg2 : i32 to index
    %c5 = arith.constant 5 : index
    %c0_24 = arith.constant 0 : index
    %c0_25 = arith.constant 0 : index
    %49 = vector.load %arg4[%48, %c5, %c0_24, %c0_25] : memref<3x9x4x128xbf16, #tpu.memory_space<vmem>>, vector<1x1x4x128xbf16>
    %50 = vector.shape_cast %49 : vector<1x1x4x128xbf16> to vector<4x128xbf16>
    %cst_26 = arith.constant dense<0.000000e+00> : vector<64x128xf32>
    %51 = tpu.matmul %47, %50, %cst_26 {dimension_numbers = #tpu.dot_dimension_numbers<[1], [0], [0], [1], [0, 0, 1, 1], [], []>} : vector<64x4xbf16>, vector<4x128xbf16>, vector<64x128xf32> -> vector<64x128xf32>
    %52 = arith.addf %45, %51 : vector<64x128xf32>
    %53 = vector.extract_strided_slice %9 {offsets = [2, 0, 0], sizes = [8, 8, 4], strides = [1, 1, 1]} : vector<10x10x4xbf16> to vector<8x8x4xbf16>
    %54 = vector.shape_cast %53 : vector<8x8x4xbf16> to vector<64x4xbf16>
    %55 = arith.index_cast %arg2 : i32 to index
    %c6 = arith.constant 6 : index
    %c0_27 = arith.constant 0 : index
    %c0_28 = arith.constant 0 : index
    %56 = vector.load %arg4[%55, %c6, %c0_27, %c0_28] : memref<3x9x4x128xbf16, #tpu.memory_space<vmem>>, vector<1x1x4x128xbf16>
    %57 = vector.shape_cast %56 : vector<1x1x4x128xbf16> to vector<4x128xbf16>
    %cst_29 = arith.constant dense<0.000000e+00> : vector<64x128xf32>
    %58 = tpu.matmul %54, %57, %cst_29 {dimension_numbers = #tpu.dot_dimension_numbers<[1], [0], [0], [1], [0, 0, 1, 1], [], []>} : vector<64x4xbf16>, vector<4x128xbf16>, vector<64x128xf32> -> vector<64x128xf32>
    %59 = arith.addf %52, %58 : vector<64x128xf32>
    %60 = vector.extract_strided_slice %9 {offsets = [2, 1, 0], sizes = [8, 8, 4], strides = [1, 1, 1]} : vector<10x10x4xbf16> to vector<8x8x4xbf16>
    %61 = vector.shape_cast %60 : vector<8x8x4xbf16> to vector<64x4xbf16>
    %62 = arith.index_cast %arg2 : i32 to index
    %c7 = arith.constant 7 : index
    %c0_30 = arith.constant 0 : index
    %c0_31 = arith.constant 0 : index
    %63 = vector.load %arg4[%62, %c7, %c0_30, %c0_31] : memref<3x9x4x128xbf16, #tpu.memory_space<vmem>>, vector<1x1x4x128xbf16>
    %64 = vector.shape_cast %63 : vector<1x1x4x128xbf16> to vector<4x128xbf16>
    %cst_32 = arith.constant dense<0.000000e+00> : vector<64x128xf32>
    %65 = tpu.matmul %61, %64, %cst_32 {dimension_numbers = #tpu.dot_dimension_numbers<[1], [0], [0], [1], [0, 0, 1, 1], [], []>} : vector<64x4xbf16>, vector<4x128xbf16>, vector<64x128xf32> -> vector<64x128xf32>
    %66 = arith.addf %59, %65 : vector<64x128xf32>
    %67 = vector.extract_strided_slice %9 {offsets = [2, 2, 0], sizes = [8, 8, 4], strides = [1, 1, 1]} : vector<10x10x4xbf16> to vector<8x8x4xbf16>
    %68 = vector.shape_cast %67 : vector<8x8x4xbf16> to vector<64x4xbf16>
    %69 = arith.index_cast %arg2 : i32 to index
    %c8 = arith.constant 8 : index
    %c0_33 = arith.constant 0 : index
    %c0_34 = arith.constant 0 : index
    %70 = vector.load %arg4[%69, %c8, %c0_33, %c0_34] : memref<3x9x4x128xbf16, #tpu.memory_space<vmem>>, vector<1x1x4x128xbf16>
    %71 = vector.shape_cast %70 : vector<1x1x4x128xbf16> to vector<4x128xbf16>
    %cst_35 = arith.constant dense<0.000000e+00> : vector<64x128xf32>
    %72 = tpu.matmul %68, %71, %cst_35 {dimension_numbers = #tpu.dot_dimension_numbers<[1], [0], [0], [1], [0, 0, 1, 1], [], []>} : vector<64x4xbf16>, vector<4x128xbf16>, vector<64x128xf32> -> vector<64x128xf32>
    %73 = arith.addf %66, %72 : vector<64x128xf32>
    %c0_36 = arith.constant 0 : index
    %c0_37 = arith.constant 0 : index
    %74 = vector.load %arg8[%c0_36, %c0_37] : memref<64x128xf32, #tpu.memory_space<vmem>>, vector<64x128xf32>
    %75 = arith.addf %74, %73 : vector<64x128xf32>
    %c0_38 = arith.constant 0 : index
    %c0_39 = arith.constant 0 : index
    %76 = vector.load %arg8[%c0_38, %c0_39] : memref<64x128xf32, #tpu.memory_space<vmem>>, vector<64x128xf32>
    tpu.vector_store %arg8[%c0_38, %c0_39], %75 {strides = array<i32>} : memref<64x128xf32, #tpu.memory_space<vmem>>, vector<64x128xf32>,
    %c2_i32 = arith.constant 2 : i32
    %77 = arith.cmpi eq, %arg2, %c2_i32 : i32
    %78 = arith.extui %77 : i1 to i32
    %c0_i32_40 = arith.constant 0 : i32
    %79 = arith.cmpi ne, %78, %c0_i32_40 : i32
    scf.if %79 {
      %c0_41 = arith.constant 0 : index
      %c0_42 = arith.constant 0 : index
      %80 = vector.load %arg8[%c0_41, %c0_42] : memref<64x128xf32, #tpu.memory_space<vmem>>, vector<64x128xf32>
      %c0_43 = arith.constant 0 : index
      %c0_44 = arith.constant 0 : index
      %81 = vector.load %arg5[%c0_43, %c0_44] : memref<1x128xf32, #tpu.memory_space<vmem>>, vector<1x128xf32>
      %82 = vector.broadcast %81 : vector<1x128xf32> to vector<64x128xf32>
      %83 = arith.addf %80, %82 : vector<64x128xf32>
      %c0_45 = arith.constant 0 : index
      %c0_46 = arith.constant 0 : index
      %c0_47 = arith.constant 0 : index
      %c0_48 = arith.constant 0 : index
      %84 = vector.load %arg6[%c0_45, %c0_46, %c0_47, %c0_48] : memref<1x1x64x128xf32, #tpu.memory_space<vmem>>, vector<1x1x64x128xf32>
      %85 = vector.shape_cast %84 : vector<1x1x64x128xf32> to vector<64x128xf32>
      %86 = vector.shape_cast %83 : vector<64x128xf32> to vector<1x1x64x128xf32>
      tpu.vector_store %arg6[%c0_45, %c0_46, %c0_47, %c0_48], %86 {strides = array<i32>} : memref<1x1x64x128xf32, #tpu.memory_space<vmem>>, vector<1x1x64x128xf32>,
      %cst_49 = arith.constant dense<0.000000e+00> : vector<128xf32>
      %87 = vector.multi_reduction <add>, %83, %cst_49 [0] : vector<64x128xf32> to vector<128xf32>
      %88 = vector.shape_cast %87 : vector<128xf32> to vector<1x128xf32>
      %89 = arith.mulf %83, %83 : vector<64x128xf32>
      %cst_50 = arith.constant dense<0.000000e+00> : vector<128xf32>
      %90 = vector.multi_reduction <add>, %89, %cst_50 [0] : vector<64x128xf32> to vector<128xf32>
      %91 = vector.shape_cast %90 : vector<128xf32> to vector<1x128xf32>
      %c0_51 = arith.constant 0 : index
      %c0_52 = arith.constant 0 : index
      %c0_53 = arith.constant 0 : index
      %92 = vector.load %arg7[%c0_51, %c0_52, %c0_53] : memref<1x8x128xf32, #tpu.memory_space<vmem>>, vector<1x8x128xf32>
      %93 = vector.shape_cast %92 : vector<1x8x128xf32> to vector<8x128xf32>
      %cst_54 = arith.constant 0.000000e+00 : f32
      %94 = vector.broadcast %cst_54 : f32 to vector<6x128xf32>
      %95 = tpu.concatenate %88, %91, %94 in 0 : vector<1x128xf32>, vector<1x128xf32>, vector<6x128xf32> -> vector<8x128xf32>
      %96 = arith.addf %93, %95 : vector<8x128xf32>
      %c0_55 = arith.constant 0 : index
      %c0_56 = arith.constant 0 : index
      %c0_57 = arith.constant 0 : index
      %97 = vector.load %arg7[%c0_55, %c0_56, %c0_57] : memref<1x8x128xf32, #tpu.memory_space<vmem>>, vector<1x8x128xf32>
      %98 = vector.shape_cast %97 : vector<1x8x128xf32> to vector<8x128xf32>
      %99 = vector.shape_cast %96 : vector<8x128xf32> to vector<1x8x128xf32>
      tpu.vector_store %arg7[%c0_55, %c0_56, %c0_57], %99 {strides = array<i32>} : memref<1x8x128xf32, #tpu.memory_space<vmem>>, vector<1x8x128xf32>,
    } else {
    }
    return
  }
  func.func @transform_0(%arg0: i32, %arg1: i32, %arg2: i32) -> (i32, i32, i32, i32, i32) {
    %0 = arith.addi %arg1, %arg2 : i32
    %c0_i32 = arith.constant 0 : i32
    %c0_i32_0 = arith.constant 0 : i32
    %c0_i32_1 = arith.constant 0 : i32
    %c0_i32_2 = arith.constant 0 : i32
    return %arg0, %0, %c0_i32, %c0_i32_0, %c0_i32_1 : i32, i32, i32, i32, i32
  }
  func.func @transform_1(%arg0: i32, %arg1: i32, %arg2: i32) -> (i32, i32, i32, i32) {
    %c0_i32 = arith.constant 0 : i32
    %c0_i32_0 = arith.constant 0 : i32
    %c0_i32_1 = arith.constant 0 : i32
    %c0_i32_2 = arith.constant 0 : i32
    %c0_i32_3 = arith.constant 0 : i32
    return %c0_i32, %c0_i32_0, %c0_i32_1, %c0_i32_2 : i32, i32, i32, i32
  }
  func.func @transform_2(%arg0: i32, %arg1: i32, %arg2: i32) -> (i32, i32) {
    %c0_i32 = arith.constant 0 : i32
    %c0_i32_0 = arith.constant 0 : i32
    %c0_i32_1 = arith.constant 0 : i32
    return %c0_i32, %c0_i32_0 : i32, i32
  }
  func.func @transform_3(%arg0: i32, %arg1: i32, %arg2: i32) -> (i32, i32, i32, i32) {
    %c0_i32 = arith.constant 0 : i32
    %c0_i32_0 = arith.constant 0 : i32
    %c0_i32_1 = arith.constant 0 : i32
    return %arg0, %arg1, %c0_i32, %c0_i32_0 : i32, i32, i32, i32
  }
  func.func @transform_4(%arg0: i32, %arg1: i32, %arg2: i32) -> (i32, i32, i32) {
    %c0_i32 = arith.constant 0 : i32
    %c0_i32_0 = arith.constant 0 : i32
    %c0_i32_1 = arith.constant 0 : i32
    return %arg0, %c0_i32, %c0_i32_0 : i32, i32, i32
  }
}

module attributes {stable_mosaic.version = 11 : i64} {
  func.func @_bn_relu_kernel(%arg0: i32, %arg1: i32, %arg2: memref<1x1x64x128xf32, #tpu.memory_space<vmem>>, %arg3: memref<1x128xf32, #tpu.memory_space<vmem>>, %arg4: memref<1x128xf32, #tpu.memory_space<vmem>>, %arg5: memref<1x1x64x128xf32, #tpu.memory_space<vmem>>) attributes {dimension_semantics = [#tpu.dimension_semantics<parallel>, #tpu.dimension_semantics<parallel>], iteration_bounds = array<i64: 2, 8>, scalar_prefetch = 0 : i64, scratch_operands = 0 : i64, tpu.core_type = #tpu.core_type<tc>, window_params = [{transform_indices = @transform_0, window_bounds = array<i64: 1, 1, 64, 128>}, {pipeline_mode = #tpu.pipeline_mode<synchronous>, transform_indices = @transform_1, window_bounds = array<i64: 1, 128>}, {pipeline_mode = #tpu.pipeline_mode<synchronous>, transform_indices = @transform_2, window_bounds = array<i64: 1, 128>}, {transform_indices = @transform_3, window_bounds = array<i64: 1, 1, 64, 128>}]} {
    %c0 = arith.constant 0 : index
    %c0_0 = arith.constant 0 : index
    %c0_1 = arith.constant 0 : index
    %c0_2 = arith.constant 0 : index
    %0 = vector.load %arg2[%c0, %c0_0, %c0_1, %c0_2] : memref<1x1x64x128xf32, #tpu.memory_space<vmem>>, vector<1x1x64x128xf32>
    %1 = vector.shape_cast %0 : vector<1x1x64x128xf32> to vector<64x128xf32>
    %c0_3 = arith.constant 0 : index
    %c0_4 = arith.constant 0 : index
    %2 = vector.load %arg3[%c0_3, %c0_4] : memref<1x128xf32, #tpu.memory_space<vmem>>, vector<1x128xf32>
    %3 = vector.broadcast %2 : vector<1x128xf32> to vector<64x128xf32>
    %4 = arith.mulf %1, %3 : vector<64x128xf32>
    %c0_5 = arith.constant 0 : index
    %c0_6 = arith.constant 0 : index
    %5 = vector.load %arg4[%c0_5, %c0_6] : memref<1x128xf32, #tpu.memory_space<vmem>>, vector<1x128xf32>
    %6 = vector.broadcast %5 : vector<1x128xf32> to vector<64x128xf32>
    %7 = arith.addf %4, %6 : vector<64x128xf32>
    %cst = arith.constant 0.000000e+00 : f32
    %8 = vector.broadcast %cst : f32 to vector<64x128xf32>
    %9 = arith.maximumf %7, %8 : vector<64x128xf32>
    %c0_7 = arith.constant 0 : index
    %c0_8 = arith.constant 0 : index
    %c0_9 = arith.constant 0 : index
    %c0_10 = arith.constant 0 : index
    %10 = vector.load %arg5[%c0_7, %c0_8, %c0_9, %c0_10] : memref<1x1x64x128xf32, #tpu.memory_space<vmem>>, vector<1x1x64x128xf32>
    %11 = vector.shape_cast %10 : vector<1x1x64x128xf32> to vector<64x128xf32>
    %12 = vector.shape_cast %9 : vector<64x128xf32> to vector<1x1x64x128xf32>
    tpu.vector_store %arg5[%c0_7, %c0_8, %c0_9, %c0_10], %12 {strides = array<i32>} : memref<1x1x64x128xf32, #tpu.memory_space<vmem>>, vector<1x1x64x128xf32>,
    return
  }
  func.func @transform_0(%arg0: i32, %arg1: i32) -> (i32, i32, i32, i32) {
    %c0_i32 = arith.constant 0 : i32
    %c0_i32_0 = arith.constant 0 : i32
    %c0_i32_1 = arith.constant 0 : i32
    return %arg0, %arg1, %c0_i32, %c0_i32_0 : i32, i32, i32, i32
  }
  func.func @transform_1(%arg0: i32, %arg1: i32) -> (i32, i32) {
    %c0_i32 = arith.constant 0 : i32
    %c0_i32_0 = arith.constant 0 : i32
    %c0_i32_1 = arith.constant 0 : i32
    return %c0_i32, %c0_i32_0 : i32, i32
  }
  func.func @transform_2(%arg0: i32, %arg1: i32) -> (i32, i32) {
    %c0_i32 = arith.constant 0 : i32
    %c0_i32_0 = arith.constant 0 : i32
    %c0_i32_1 = arith.constant 0 : i32
    return %c0_i32, %c0_i32_0 : i32, i32
  }
  func.func @transform_3(%arg0: i32, %arg1: i32) -> (i32, i32, i32, i32) {
    %c0_i32 = arith.constant 0 : i32
    %c0_i32_0 = arith.constant 0 : i32
    %c0_i32_1 = arith.constant 0 : i32
    return %arg0, %arg1, %c0_i32, %c0_i32_0 : i32, i32, i32, i32
  }
}

module attributes {stable_mosaic.version = 11 : i64} {
  func.func @_conv_stats_kernel(%arg0: i32, %arg1: i32, %arg2: i32, %arg3: memref<1x1x10x10x128xbf16, #tpu.memory_space<vmem>>, %arg4: memref<3x9x128x128xbf16, #tpu.memory_space<vmem>>, %arg5: memref<1x128xf32, #tpu.memory_space<vmem>>, %arg6: memref<1x1x64x128xf32, #tpu.memory_space<vmem>>, %arg7: memref<1x8x128xf32, #tpu.memory_space<vmem>>, %arg8: memref<64x128xf32, #tpu.memory_space<vmem>>) attributes {dimension_semantics = [#tpu.dimension_semantics<parallel>, #tpu.dimension_semantics<arbitrary>, #tpu.dimension_semantics<arbitrary>], iteration_bounds = array<i64: 2, 8, 3>, scalar_prefetch = 0 : i64, scratch_operands = 1 : i64, tpu.core_type = #tpu.core_type<tc>, window_params = [{transform_indices = @transform_0, window_bounds = array<i64: 1, 1, 10, 10, 128>}, {pipeline_mode = #tpu.pipeline_mode<synchronous>, transform_indices = @transform_1, window_bounds = array<i64: 3, 9, 128, 128>}, {pipeline_mode = #tpu.pipeline_mode<synchronous>, transform_indices = @transform_2, window_bounds = array<i64: 1, 128>}, {transform_indices = @transform_3, window_bounds = array<i64: 1, 1, 64, 128>}, {transform_indices = @transform_4, window_bounds = array<i64: 1, 8, 128>}]} {
    %c0_i32 = arith.constant 0 : i32
    %0 = arith.cmpi eq, %arg2, %c0_i32 : i32
    %1 = arith.extui %0 : i1 to i32
    %c0_i32_0 = arith.constant 0 : i32
    %2 = arith.cmpi ne, %1, %c0_i32_0 : i32
    scf.if %2 {
      %cst_41 = arith.constant 0.000000e+00 : f32
      %80 = vector.broadcast %cst_41 : f32 to vector<64x128xf32>
      %c0_42 = arith.constant 0 : index
      %c0_43 = arith.constant 0 : index
      %81 = vector.load %arg8[%c0_42, %c0_43] : memref<64x128xf32, #tpu.memory_space<vmem>>, vector<64x128xf32>
      tpu.vector_store %arg8[%c0_42, %c0_43], %80 {strides = array<i32>} : memref<64x128xf32, #tpu.memory_space<vmem>>, vector<64x128xf32>,
    } else {
    }
    %c0_i32_1 = arith.constant 0 : i32
    %3 = arith.cmpi eq, %arg1, %c0_i32_1 : i32
    %c0_i32_2 = arith.constant 0 : i32
    %4 = arith.cmpi eq, %arg2, %c0_i32_2 : i32
    %5 = arith.andi %3, %4 : i1
    %6 = arith.extui %5 : i1 to i32
    %c0_i32_3 = arith.constant 0 : i32
    %7 = arith.cmpi ne, %6, %c0_i32_3 : i32
    scf.if %7 {
      %cst_41 = arith.constant 0.000000e+00 : f32
      %80 = vector.broadcast %cst_41 : f32 to vector<1x8x128xf32>
      %c0_42 = arith.constant 0 : index
      %c0_43 = arith.constant 0 : index
      %c0_44 = arith.constant 0 : index
      %81 = vector.load %arg7[%c0_42, %c0_43, %c0_44] : memref<1x8x128xf32, #tpu.memory_space<vmem>>, vector<1x8x128xf32>
      tpu.vector_store %arg7[%c0_42, %c0_43, %c0_44], %80 {strides = array<i32>} : memref<1x8x128xf32, #tpu.memory_space<vmem>>, vector<1x8x128xf32>,
    } else {
    }
    %c0 = arith.constant 0 : index
    %c0_4 = arith.constant 0 : index
    %c0_5 = arith.constant 0 : index
    %c0_6 = arith.constant 0 : index
    %c0_7 = arith.constant 0 : index
    %8 = vector.load %arg3[%c0, %c0_4, %c0_5, %c0_6, %c0_7] : memref<1x1x10x10x128xbf16, #tpu.memory_space<vmem>>, vector<1x1x10x10x128xbf16>
    %9 = vector.shape_cast %8 : vector<1x1x10x10x128xbf16> to vector<10x10x128xbf16>
    %cst = arith.constant 0.000000e+00 : f32
    %10 = vector.broadcast %cst : f32 to vector<64x128xf32>
    %11 = vector.extract_strided_slice %9 {offsets = [0, 0, 0], sizes = [8, 8, 128], strides = [1, 1, 1]} : vector<10x10x128xbf16> to vector<8x8x128xbf16>
    %12 = vector.shape_cast %11 : vector<8x8x128xbf16> to vector<64x128xbf16>
    %13 = arith.index_cast %arg2 : i32 to index
    %c0_8 = arith.constant 0 : index
    %c0_9 = arith.constant 0 : index
    %c0_10 = arith.constant 0 : index
    %14 = vector.load %arg4[%13, %c0_8, %c0_9, %c0_10] : memref<3x9x128x128xbf16, #tpu.memory_space<vmem>>, vector<1x1x128x128xbf16>
    %15 = vector.shape_cast %14 : vector<1x1x128x128xbf16> to vector<128x128xbf16>
    %cst_11 = arith.constant dense<0.000000e+00> : vector<64x128xf32>
    %16 = tpu.matmul %12, %15, %cst_11 {dimension_numbers = #tpu.dot_dimension_numbers<[1], [0], [0], [1], [0, 0, 1, 1], [], []>} : vector<64x128xbf16>, vector<128x128xbf16>, vector<64x128xf32> -> vector<64x128xf32>
    %17 = arith.addf %10, %16 : vector<64x128xf32>
    %18 = vector.extract_strided_slice %9 {offsets = [0, 1, 0], sizes = [8, 8, 128], strides = [1, 1, 1]} : vector<10x10x128xbf16> to vector<8x8x128xbf16>
    %19 = vector.shape_cast %18 : vector<8x8x128xbf16> to vector<64x128xbf16>
    %20 = arith.index_cast %arg2 : i32 to index
    %c1 = arith.constant 1 : index
    %c0_12 = arith.constant 0 : index
    %c0_13 = arith.constant 0 : index
    %21 = vector.load %arg4[%20, %c1, %c0_12, %c0_13] : memref<3x9x128x128xbf16, #tpu.memory_space<vmem>>, vector<1x1x128x128xbf16>
    %22 = vector.shape_cast %21 : vector<1x1x128x128xbf16> to vector<128x128xbf16>
    %cst_14 = arith.constant dense<0.000000e+00> : vector<64x128xf32>
    %23 = tpu.matmul %19, %22, %cst_14 {dimension_numbers = #tpu.dot_dimension_numbers<[1], [0], [0], [1], [0, 0, 1, 1], [], []>} : vector<64x128xbf16>, vector<128x128xbf16>, vector<64x128xf32> -> vector<64x128xf32>
    %24 = arith.addf %17, %23 : vector<64x128xf32>
    %25 = vector.extract_strided_slice %9 {offsets = [0, 2, 0], sizes = [8, 8, 128], strides = [1, 1, 1]} : vector<10x10x128xbf16> to vector<8x8x128xbf16>
    %26 = vector.shape_cast %25 : vector<8x8x128xbf16> to vector<64x128xbf16>
    %27 = arith.index_cast %arg2 : i32 to index
    %c2 = arith.constant 2 : index
    %c0_15 = arith.constant 0 : index
    %c0_16 = arith.constant 0 : index
    %28 = vector.load %arg4[%27, %c2, %c0_15, %c0_16] : memref<3x9x128x128xbf16, #tpu.memory_space<vmem>>, vector<1x1x128x128xbf16>
    %29 = vector.shape_cast %28 : vector<1x1x128x128xbf16> to vector<128x128xbf16>
    %cst_17 = arith.constant dense<0.000000e+00> : vector<64x128xf32>
    %30 = tpu.matmul %26, %29, %cst_17 {dimension_numbers = #tpu.dot_dimension_numbers<[1], [0], [0], [1], [0, 0, 1, 1], [], []>} : vector<64x128xbf16>, vector<128x128xbf16>, vector<64x128xf32> -> vector<64x128xf32>
    %31 = arith.addf %24, %30 : vector<64x128xf32>
    %32 = vector.extract_strided_slice %9 {offsets = [1, 0, 0], sizes = [8, 8, 128], strides = [1, 1, 1]} : vector<10x10x128xbf16> to vector<8x8x128xbf16>
    %33 = vector.shape_cast %32 : vector<8x8x128xbf16> to vector<64x128xbf16>
    %34 = arith.index_cast %arg2 : i32 to index
    %c3 = arith.constant 3 : index
    %c0_18 = arith.constant 0 : index
    %c0_19 = arith.constant 0 : index
    %35 = vector.load %arg4[%34, %c3, %c0_18, %c0_19] : memref<3x9x128x128xbf16, #tpu.memory_space<vmem>>, vector<1x1x128x128xbf16>
    %36 = vector.shape_cast %35 : vector<1x1x128x128xbf16> to vector<128x128xbf16>
    %cst_20 = arith.constant dense<0.000000e+00> : vector<64x128xf32>
    %37 = tpu.matmul %33, %36, %cst_20 {dimension_numbers = #tpu.dot_dimension_numbers<[1], [0], [0], [1], [0, 0, 1, 1], [], []>} : vector<64x128xbf16>, vector<128x128xbf16>, vector<64x128xf32> -> vector<64x128xf32>
    %38 = arith.addf %31, %37 : vector<64x128xf32>
    %39 = vector.extract_strided_slice %9 {offsets = [1, 1, 0], sizes = [8, 8, 128], strides = [1, 1, 1]} : vector<10x10x128xbf16> to vector<8x8x128xbf16>
    %40 = vector.shape_cast %39 : vector<8x8x128xbf16> to vector<64x128xbf16>
    %41 = arith.index_cast %arg2 : i32 to index
    %c4 = arith.constant 4 : index
    %c0_21 = arith.constant 0 : index
    %c0_22 = arith.constant 0 : index
    %42 = vector.load %arg4[%41, %c4, %c0_21, %c0_22] : memref<3x9x128x128xbf16, #tpu.memory_space<vmem>>, vector<1x1x128x128xbf16>
    %43 = vector.shape_cast %42 : vector<1x1x128x128xbf16> to vector<128x128xbf16>
    %cst_23 = arith.constant dense<0.000000e+00> : vector<64x128xf32>
    %44 = tpu.matmul %40, %43, %cst_23 {dimension_numbers = #tpu.dot_dimension_numbers<[1], [0], [0], [1], [0, 0, 1, 1], [], []>} : vector<64x128xbf16>, vector<128x128xbf16>, vector<64x128xf32> -> vector<64x128xf32>
    %45 = arith.addf %38, %44 : vector<64x128xf32>
    %46 = vector.extract_strided_slice %9 {offsets = [1, 2, 0], sizes = [8, 8, 128], strides = [1, 1, 1]} : vector<10x10x128xbf16> to vector<8x8x128xbf16>
    %47 = vector.shape_cast %46 : vector<8x8x128xbf16> to vector<64x128xbf16>
    %48 = arith.index_cast %arg2 : i32 to index
    %c5 = arith.constant 5 : index
    %c0_24 = arith.constant 0 : index
    %c0_25 = arith.constant 0 : index
    %49 = vector.load %arg4[%48, %c5, %c0_24, %c0_25] : memref<3x9x128x128xbf16, #tpu.memory_space<vmem>>, vector<1x1x128x128xbf16>
    %50 = vector.shape_cast %49 : vector<1x1x128x128xbf16> to vector<128x128xbf16>
    %cst_26 = arith.constant dense<0.000000e+00> : vector<64x128xf32>
    %51 = tpu.matmul %47, %50, %cst_26 {dimension_numbers = #tpu.dot_dimension_numbers<[1], [0], [0], [1], [0, 0, 1, 1], [], []>} : vector<64x128xbf16>, vector<128x128xbf16>, vector<64x128xf32> -> vector<64x128xf32>
    %52 = arith.addf %45, %51 : vector<64x128xf32>
    %53 = vector.extract_strided_slice %9 {offsets = [2, 0, 0], sizes = [8, 8, 128], strides = [1, 1, 1]} : vector<10x10x128xbf16> to vector<8x8x128xbf16>
    %54 = vector.shape_cast %53 : vector<8x8x128xbf16> to vector<64x128xbf16>
    %55 = arith.index_cast %arg2 : i32 to index
    %c6 = arith.constant 6 : index
    %c0_27 = arith.constant 0 : index
    %c0_28 = arith.constant 0 : index
    %56 = vector.load %arg4[%55, %c6, %c0_27, %c0_28] : memref<3x9x128x128xbf16, #tpu.memory_space<vmem>>, vector<1x1x128x128xbf16>
    %57 = vector.shape_cast %56 : vector<1x1x128x128xbf16> to vector<128x128xbf16>
    %cst_29 = arith.constant dense<0.000000e+00> : vector<64x128xf32>
    %58 = tpu.matmul %54, %57, %cst_29 {dimension_numbers = #tpu.dot_dimension_numbers<[1], [0], [0], [1], [0, 0, 1, 1], [], []>} : vector<64x128xbf16>, vector<128x128xbf16>, vector<64x128xf32> -> vector<64x128xf32>
    %59 = arith.addf %52, %58 : vector<64x128xf32>
    %60 = vector.extract_strided_slice %9 {offsets = [2, 1, 0], sizes = [8, 8, 128], strides = [1, 1, 1]} : vector<10x10x128xbf16> to vector<8x8x128xbf16>
    %61 = vector.shape_cast %60 : vector<8x8x128xbf16> to vector<64x128xbf16>
    %62 = arith.index_cast %arg2 : i32 to index
    %c7 = arith.constant 7 : index
    %c0_30 = arith.constant 0 : index
    %c0_31 = arith.constant 0 : index
    %63 = vector.load %arg4[%62, %c7, %c0_30, %c0_31] : memref<3x9x128x128xbf16, #tpu.memory_space<vmem>>, vector<1x1x128x128xbf16>
    %64 = vector.shape_cast %63 : vector<1x1x128x128xbf16> to vector<128x128xbf16>
    %cst_32 = arith.constant dense<0.000000e+00> : vector<64x128xf32>
    %65 = tpu.matmul %61, %64, %cst_32 {dimension_numbers = #tpu.dot_dimension_numbers<[1], [0], [0], [1], [0, 0, 1, 1], [], []>} : vector<64x128xbf16>, vector<128x128xbf16>, vector<64x128xf32> -> vector<64x128xf32>
    %66 = arith.addf %59, %65 : vector<64x128xf32>
    %67 = vector.extract_strided_slice %9 {offsets = [2, 2, 0], sizes = [8, 8, 128], strides = [1, 1, 1]} : vector<10x10x128xbf16> to vector<8x8x128xbf16>
    %68 = vector.shape_cast %67 : vector<8x8x128xbf16> to vector<64x128xbf16>
    %69 = arith.index_cast %arg2 : i32 to index
    %c8 = arith.constant 8 : index
    %c0_33 = arith.constant 0 : index
    %c0_34 = arith.constant 0 : index
    %70 = vector.load %arg4[%69, %c8, %c0_33, %c0_34] : memref<3x9x128x128xbf16, #tpu.memory_space<vmem>>, vector<1x1x128x128xbf16>
    %71 = vector.shape_cast %70 : vector<1x1x128x128xbf16> to vector<128x128xbf16>
    %cst_35 = arith.constant dense<0.000000e+00> : vector<64x128xf32>
    %72 = tpu.matmul %68, %71, %cst_35 {dimension_numbers = #tpu.dot_dimension_numbers<[1], [0], [0], [1], [0, 0, 1, 1], [], []>} : vector<64x128xbf16>, vector<128x128xbf16>, vector<64x128xf32> -> vector<64x128xf32>
    %73 = arith.addf %66, %72 : vector<64x128xf32>
    %c0_36 = arith.constant 0 : index
    %c0_37 = arith.constant 0 : index
    %74 = vector.load %arg8[%c0_36, %c0_37] : memref<64x128xf32, #tpu.memory_space<vmem>>, vector<64x128xf32>
    %75 = arith.addf %74, %73 : vector<64x128xf32>
    %c0_38 = arith.constant 0 : index
    %c0_39 = arith.constant 0 : index
    %76 = vector.load %arg8[%c0_38, %c0_39] : memref<64x128xf32, #tpu.memory_space<vmem>>, vector<64x128xf32>
    tpu.vector_store %arg8[%c0_38, %c0_39], %75 {strides = array<i32>} : memref<64x128xf32, #tpu.memory_space<vmem>>, vector<64x128xf32>,
    %c2_i32 = arith.constant 2 : i32
    %77 = arith.cmpi eq, %arg2, %c2_i32 : i32
    %78 = arith.extui %77 : i1 to i32
    %c0_i32_40 = arith.constant 0 : i32
    %79 = arith.cmpi ne, %78, %c0_i32_40 : i32
    scf.if %79 {
      %c0_41 = arith.constant 0 : index
      %c0_42 = arith.constant 0 : index
      %80 = vector.load %arg8[%c0_41, %c0_42] : memref<64x128xf32, #tpu.memory_space<vmem>>, vector<64x128xf32>
      %c0_43 = arith.constant 0 : index
      %c0_44 = arith.constant 0 : index
      %81 = vector.load %arg5[%c0_43, %c0_44] : memref<1x128xf32, #tpu.memory_space<vmem>>, vector<1x128xf32>
      %82 = vector.broadcast %81 : vector<1x128xf32> to vector<64x128xf32>
      %83 = arith.addf %80, %82 : vector<64x128xf32>
      %c0_45 = arith.constant 0 : index
      %c0_46 = arith.constant 0 : index
      %c0_47 = arith.constant 0 : index
      %c0_48 = arith.constant 0 : index
      %84 = vector.load %arg6[%c0_45, %c0_46, %c0_47, %c0_48] : memref<1x1x64x128xf32, #tpu.memory_space<vmem>>, vector<1x1x64x128xf32>
      %85 = vector.shape_cast %84 : vector<1x1x64x128xf32> to vector<64x128xf32>
      %86 = vector.shape_cast %83 : vector<64x128xf32> to vector<1x1x64x128xf32>
      tpu.vector_store %arg6[%c0_45, %c0_46, %c0_47, %c0_48], %86 {strides = array<i32>} : memref<1x1x64x128xf32, #tpu.memory_space<vmem>>, vector<1x1x64x128xf32>,
      %cst_49 = arith.constant dense<0.000000e+00> : vector<128xf32>
      %87 = vector.multi_reduction <add>, %83, %cst_49 [0] : vector<64x128xf32> to vector<128xf32>
      %88 = vector.shape_cast %87 : vector<128xf32> to vector<1x128xf32>
      %89 = arith.mulf %83, %83 : vector<64x128xf32>
      %cst_50 = arith.constant dense<0.000000e+00> : vector<128xf32>
      %90 = vector.multi_reduction <add>, %89, %cst_50 [0] : vector<64x128xf32> to vector<128xf32>
      %91 = vector.shape_cast %90 : vector<128xf32> to vector<1x128xf32>
      %c0_51 = arith.constant 0 : index
      %c0_52 = arith.constant 0 : index
      %c0_53 = arith.constant 0 : index
      %92 = vector.load %arg7[%c0_51, %c0_52, %c0_53] : memref<1x8x128xf32, #tpu.memory_space<vmem>>, vector<1x8x128xf32>
      %93 = vector.shape_cast %92 : vector<1x8x128xf32> to vector<8x128xf32>
      %cst_54 = arith.constant 0.000000e+00 : f32
      %94 = vector.broadcast %cst_54 : f32 to vector<6x128xf32>
      %95 = tpu.concatenate %88, %91, %94 in 0 : vector<1x128xf32>, vector<1x128xf32>, vector<6x128xf32> -> vector<8x128xf32>
      %96 = arith.addf %93, %95 : vector<8x128xf32>
      %c0_55 = arith.constant 0 : index
      %c0_56 = arith.constant 0 : index
      %c0_57 = arith.constant 0 : index
      %97 = vector.load %arg7[%c0_55, %c0_56, %c0_57] : memref<1x8x128xf32, #tpu.memory_space<vmem>>, vector<1x8x128xf32>
      %98 = vector.shape_cast %97 : vector<1x8x128xf32> to vector<8x128xf32>
      %99 = vector.shape_cast %96 : vector<8x128xf32> to vector<1x8x128xf32>
      tpu.vector_store %arg7[%c0_55, %c0_56, %c0_57], %99 {strides = array<i32>} : memref<1x8x128xf32, #tpu.memory_space<vmem>>, vector<1x8x128xf32>,
    } else {
    }
    return
  }
  func.func @transform_0(%arg0: i32, %arg1: i32, %arg2: i32) -> (i32, i32, i32, i32, i32) {
    %0 = arith.addi %arg1, %arg2 : i32
    %c0_i32 = arith.constant 0 : i32
    %c0_i32_0 = arith.constant 0 : i32
    %c0_i32_1 = arith.constant 0 : i32
    %c0_i32_2 = arith.constant 0 : i32
    return %arg0, %0, %c0_i32, %c0_i32_0, %c0_i32_1 : i32, i32, i32, i32, i32
  }
  func.func @transform_1(%arg0: i32, %arg1: i32, %arg2: i32) -> (i32, i32, i32, i32) {
    %c0_i32 = arith.constant 0 : i32
    %c0_i32_0 = arith.constant 0 : i32
    %c0_i32_1 = arith.constant 0 : i32
    %c0_i32_2 = arith.constant 0 : i32
    %c0_i32_3 = arith.constant 0 : i32
    return %c0_i32, %c0_i32_0, %c0_i32_1, %c0_i32_2 : i32, i32, i32, i32
  }
  func.func @transform_2(%arg0: i32, %arg1: i32, %arg2: i32) -> (i32, i32) {
    %c0_i32 = arith.constant 0 : i32
    %c0_i32_0 = arith.constant 0 : i32
    %c0_i32_1 = arith.constant 0 : i32
    return %c0_i32, %c0_i32_0 : i32, i32
  }
  func.func @transform_3(%arg0: i32, %arg1: i32, %arg2: i32) -> (i32, i32, i32, i32) {
    %c0_i32 = arith.constant 0 : i32
    %c0_i32_0 = arith.constant 0 : i32
    %c0_i32_1 = arith.constant 0 : i32
    return %arg0, %arg1, %c0_i32, %c0_i32_0 : i32, i32, i32, i32
  }
  func.func @transform_4(%arg0: i32, %arg1: i32, %arg2: i32) -> (i32, i32, i32) {
    %c0_i32 = arith.constant 0 : i32
    %c0_i32_0 = arith.constant 0 : i32
    %c0_i32_1 = arith.constant 0 : i32
    return %arg0, %c0_i32, %c0_i32_0 : i32, i32, i32
  }
}

</mosaic_0001>

<llo_original>
// kernel: encoder3d_forward.5
$region0: #{encoder3d_forward.5}
  #allocation0 [shape = 'u32[]', space=smem, size = 0x4, offset = 0x4, fixed_abs, tag = 'smem constant byte address 0x4 - core index']
  #allocation1 [shape = 'u32[144,128]{1,0:T(1,128)}', space=vmem, size = 0x12000, scoped, tag = 'internal scratch']
  %s0 = inlined_call_operand.vmem [shape: f32[2,16,16,8,8], index: 0, kind: input, shape index: {}]
  %s1 = inlined_call_operand.vmem [shape: f32[2,8,8,8,4], index: 1, kind: output, shape index: {}]
  %s2 = sld [smem:[#allocation0]]
  $region37: #{encoder3d_forward.5} parent=0
    _
  %s4 = ssub.s32 1, %s2
  %s5 = scalar_select 0, %s4, %s2
  loop: start=0, step=1, limit=18
  $region2: #{encoder3d_forward.5} parent=0 // loop_pre_header
    _
  $region3: #{encoder3d_forward.5} parent=0 // loop_header
    %s7 = sphi 0, %s11
    %p8 = scmp.ge.s32.totalorder %s7, 18
    %s14 = sphi 0, %s26
    %s15 = sphi 0, %s22
    %s16 = sphi 0, %s14
    %s17 = sphi 0, %s15
    %s18 = sphi 0, %s16
    %s19 = sphi 0, %s17
    %s31 = sphi 0, %s33
    %s34 = sphi 0, %s31
    %s35 = sphi 0, %s34
    %s51 = sphi 0, %s35
    %s59 = sphi 0, %s61
    %s62 = sphi 0, %s59
    %s63 = sphi 0, %s62
    %s79 = sphi 0, %s63
  $region4: #{encoder3d_forward.5} parent=0 // loop_header_branch
    %10 = sbr.rel (%p8) target = $region8
  $region5: #{encoder3d_forward.5} parent=0 // loop_body
    %s12 = ssub.s32 %s7, 1
    %s13 = ssub.s32 %s7, 2
    %s20 = sadd.s32 1, %s15
    %p21 = scmp.ge.s32.totalorder %s20, 8
    %s22 = scalar_select %p21, 0, %s20
    %s23 = sadd.s32 1, %s14
    %s24 = scalar_select %p21, %s23, %s14
    %p25 = scmp.ge.s32.totalorder %s24, 2
    %s26 = scalar_select %p25, 0, %s24
    %s27 = ssub.s32 %s14, %s26
    %s28 = ssub.s32 %s15, %s22
    %s29 = sor.u32 %s27, %s28
    %p30 = scmp.eq.s32.totalorder %s29, 0
    %s32 = sadd.s32 %s31, 1
    %s33 = scalar_select %p30, %s31, %s32
    %p36 = pneg %p30
    %p37 = scmp.eq.s32.totalorder %s7, 15
    %p38 = por %p36, %p37
    %p39 = scmp.ne.s32.totalorder %s31, %s34
    %p40 = scmp.eq.s32.totalorder %s7, 0
    %p41 = por %p39, %p40
    %p42 = scmp.ne.s32.totalorder %s31, %s34
    %p43 = scmp.eq.s32.totalorder %s12, 15
    %p44 = por %p42, %p43
    %p45 = scmp.ne.s32.totalorder %s34, %s35
    %p46 = scmp.eq.s32.totalorder %s12, 0
    %p47 = por %p45, %p46
    %p48 = scmp.ne.s32.totalorder %s34, %s35
    %p49 = scmp.eq.s32.totalorder %s13, 15
    %p50 = por %p48, %p49
    %p52 = scmp.ne.s32.totalorder %s35, %s51
    %p53 = scmp.eq.s32.totalorder %s13, 0
    %p54 = por %p52, %p53
    %s55 = ssub.s32 %s14, %s26
    %s56 = ssub.s32 %s15, %s22
    %s57 = sor.u32 %s55, %s56
    %p58 = scmp.eq.s32.totalorder %s57, 0
    %s60 = sadd.s32 %s59, 1
    %s61 = scalar_select %p58, %s59, %s60
    %p64 = pneg %p58
    %p65 = scmp.eq.s32.totalorder %s7, 15
    %p66 = por %p64, %p65
    %p67 = scmp.ne.s32.totalorder %s59, %s62
    %p68 = scmp.eq.s32.totalorder %s7, 0
    %p69 = por %p67, %p68
    %p70 = scmp.ne.s32.totalorder %s59, %s62
    %p71 = scmp.eq.s32.totalorder %s12, 15
    %p72 = por %p70, %p71
    %p73 = scmp.ne.s32.totalorder %s62, %s63
    %p74 = scmp.eq.s32.totalorder %s12, 0
    %p75 = por %p73, %p74
    %p76 = scmp.ne.s32.totalorder %s62, %s63
    %p77 = scmp.eq.s32.totalorder %s13, 15
    %p78 = por %p76, %p77
    %p80 = scmp.ne.s32.totalorder %s63, %s79
    %p81 = scmp.eq.s32.totalorder %s13, 0
    %p82 = por %p80, %p81
    %p83 = scmp.le.s32.totalorder 1, %s7
    %p84 = scmp.lt.s32.totalorder %s7, 17
    %p85 = pnand %p83, %p84
    %p86 = pneg %p85
    // Predicated region
    $region9: #{encoder3d_forward.5} parent=5 // pred_check
      _
    $region10: #{encoder3d_forward.5} parent=5 // pred_check_branch
      %88 = sbr.rel (%p85) target = $region12
    $region11: #{encoder3d_forward.5} parent=5 // pred_region
      %s89 = ssub.s32 %s7, 1
    $region12: #{encoder3d_forward.5} parent=5 // pred_fallthru
      _
    %p90 = scmp.lt.s32.totalorder %s7, 16
    // Predicated region
    $region13: #{encoder3d_forward.5} parent=5 // pred_check
      %p91 = pneg %p90
    $region14: #{encoder3d_forward.5} parent=5 // pred_check_branch
      %93 = sbr.rel (%p91) target = $region16
    $region15: #{encoder3d_forward.5} parent=5 // pred_region
      // Predicated region
      $region17: #{encoder3d_forward.5} parent=15 // pred_check
        %p94 = pneg %p41
      $region18: #{encoder3d_forward.5} parent=15 // pred_check_branch
        %96 = sbr.rel (%p94) target = $region20
      $region19: #{encoder3d_forward.5} parent=15 // pred_region
        %s97 = smul.u32 2, %s15
        %p98 = scmp.lt.s32.totalorder %s14, 1
        %s99 = scalar_select %p98, %s14, 1
        %p100 = scmp.lt.s32.totalorder %s97, 15
        %s101 = scalar_select %p100, %s97, 15
        %s102 = smul.addr %s101, 16
        %s103 = smul.addr %s99, 256
        %s104 = sadd.s32 %s102, %s103
        %s105 = smul.addr %s104, 8
        %s106 = scalar_lea.vmem %s0, %s105
        %s107 = smul.u32 2, %s15
      $region20: #{encoder3d_forward.5} parent=15 // pred_fallthru
        _
    $region16: #{encoder3d_forward.5} parent=5 // pred_fallthru
      _
    %p108 = scmp.le.s32.totalorder 1, %s7
    %p109 = scmp.lt.s32.totalorder %s7, 17
    %p110 = pnand %p108, %p109
    %p111 = pneg %p110
    // Predicated region
    $region21: #{encoder3d_forward.5} parent=5 // pred_check
      _
    $region22: #{encoder3d_forward.5} parent=5 // pred_check_branch
      %113 = sbr.rel (%p110) target = $region24
    $region23: #{encoder3d_forward.5} parent=5 // pred_region
      %s114 = ssub.s32 %s7, 1
      %s115 = smul.u32 2, %s17
      %p116 = scmp.lt.s32.totalorder %s16, 1
      %s117 = scalar_select %p116, %s16, 1
      %p118 = scmp.lt.s32.totalorder %s115, 15
      %s119 = scalar_select %p118, %s115, 15
      %s120 = smul.addr %s119, 16
      %s121 = smul.addr %s117, 256
      %s122 = sadd.s32 %s120, %s121
      %s123 = smul.addr %s122, 8
      %s124 = scalar_lea.vmem %s0, %s123
      %p125 = pneg %p47
      %p126 = pneg %p44
      %p127 = pneg %p75
      %p128 = pneg %p72
      %p129 = scmp.lt.s32.totalorder %s16, 1
      %s130 = scalar_select %p129, %s16, 1
      %p131 = scmp.lt.s32.totalorder %s17, 7
      %s132 = scalar_select %p131, %s17, 7
      %s133 = smul.addr %s132, 8
      %s134 = smul.addr %s130, 64
      %s135 = sadd.s32 %s133, %s134
      %s136 = smul.addr %s135, 8
      %s137 = scalar_lea.vmem %s1, %s136
      %s138 = smul.u32 2, %s17
      %p139 = scmp.lt.s32.totalorder %s16, 1
      %s140 = scalar_select %p139, %s16, 1
      %p141 = scmp.lt.s32.totalorder %s138, 15
      %s142 = scalar_select %p141, %s138, 15
      %s143 = smul.addr %s142, 16
      %s144 = smul.addr %s140, 256
      %s145 = sadd.s32 %s143, %s144
      %s146 = smul.addr %s145, 8
      %s147 = scalar_lea.vmem %s0, %s146
      %s148 = smul.u32 2, %s17
      %p149 = scmp.lt.s32.totalorder %s16, 1
      %s150 = scalar_select %p149, %s16, 1
      %p151 = scmp.lt.s32.totalorder %s17, 7
      %s152 = scalar_select %p151, %s17, 7
      %s153 = smul.addr %s152, 8
      %s154 = smul.addr %s150, 64
      %s155 = sadd.s32 %s153, %s154
      %s156 = smul.addr %s155, 8
      %s157 = scalar_lea.vmem %s1, %s156
      %v158 = vld [vmem:[%s147] sm:$0xff]
      %v159 = vld [vmem:[%s147 + $0x8] sm:$0xff]
      %v160 = vld [vmem:[%s147 + $0x10] sm:$0xff]
      %v161 = vld [vmem:[%s147 + $0x18] sm:$0xff]
      %v162 = vld [vmem:[%s147 + $0x20] sm:$0xff]
      %v163 = vld [vmem:[%s147 + $0x28] sm:$0xff]
      %v164 = vld [vmem:[%s147 + $0x30] sm:$0xff]
      %v165 = vld [vmem:[%s147 + $0x38] sm:$0xff]
      %v166 = vld [vmem:[%s147 + $0x40] sm:$0xff]
      %v167 = vld [vmem:[%s147 + $0x48] sm:$0xff]
      %v168 = vld [vmem:[%s147 + $0x50] sm:$0xff]
      %v169 = vld [vmem:[%s147 + $0x58] sm:$0xff]
      %v170 = vld [vmem:[%s147 + $0x60] sm:$0xff]
      %v171 = vld [vmem:[%s147 + $0x68] sm:$0xff]
      %v172 = vld [vmem:[%s147 + $0x70] sm:$0xff]
      %v173 = vld [vmem:[%s147 + $0x78] sm:$0xff]
      %v174 = vld [vmem:[%s147 + $0x80] sm:$0xff]
      %v175 = vld [vmem:[%s147 + $0x88] sm:$0xff]
      %v176 = vld [vmem:[%s147 + $0x90] sm:$0xff]
      %v177 = vld [vmem:[%s147 + $0x98] sm:$0xff]
      %v178 = vld [vmem:[%s147 + $0xa0] sm:$0xff]
      %v179 = vld [vmem:[%s147 + $0xa8] sm:$0xff]
      %v180 = vld [vmem:[%s147 + $0xb0] sm:$0xff]
      %v181 = vld [vmem:[%s147 + $0xb8] sm:$0xff]
      %v182 = vld [vmem:[%s147 + $0xc0] sm:$0xff]
      %v183 = vld [vmem:[%s147 + $0xc8] sm:$0xff]
      %v184 = vld [vmem:[%s147 + $0xd0] sm:$0xff]
      %v185 = vld [vmem:[%s147 + $0xd8] sm:$0xff]
      %v186 = vld [vmem:[%s147 + $0xe0] sm:$0xff]
      %v187 = vld [vmem:[%s147 + $0xe8] sm:$0xff]
      %v188 = vld [vmem:[%s147 + $0xf0] sm:$0xff]
      %v189 = vld [vmem:[%s147 + $0xf8] sm:$0xff]
      %v190 = vmax.f32 %v158, %v174
      %v191 = vmax.f32 %v159, %v175
      %v192 = vmax.f32 %v160, %v176
      %v193 = vmax.f32 %v161, %v177
      %v194 = vmax.f32 %v162, %v178
      %v195 = vmax.f32 %v163, %v179
      %v196 = vmax.f32 %v164, %v180
      %v197 = vmax.f32 %v165, %v181
      %v198 = vmax.f32 %v166, %v182
      %v199 = vmax.f32 %v167, %v183
      %v200 = vmax.f32 %v168, %v184
      %v201 = vmax.f32 %v169, %v185
      %v202 = vmax.f32 %v170, %v186
      %v203 = vmax.f32 %v171, %v187
      %v204 = vmax.f32 %v172, %v188
      %v205 = vmax.f32 %v173, %v189
      %222 = vrot.lane.b32.xlu0 %v190, 124
      %v223 = vpop.permute.xlu0 %222
      %224 = vrot.lane.b32.xlu0 %v191, 124
      %v225 = vpop.permute.xlu0 %224
      %226 = vrot.lane.b32.xlu0 %v192, 124
      %v227 = vpop.permute.xlu0 %226
      %228 = vrot.lane.b32.xlu0 %v193, 124
      %v229 = vpop.permute.xlu0 %228
      %230 = vrot.lane.b32.xlu0 %v194, 124
      %v231 = vpop.permute.xlu0 %230
      %232 = vrot.lane.b32.xlu0 %v195, 124
      %v233 = vpop.permute.xlu0 %232
      %234 = vrot.lane.b32.xlu0 %v196, 124
      %v235 = vpop.permute.xlu0 %234
      %236 = vrot.lane.b32.xlu0 %v197, 124
      %v237 = vpop.permute.xlu0 %236
      %238 = vrot.lane.b32.xlu0 %v198, 124
      %v239 = vpop.permute.xlu0 %238
      %240 = vrot.lane.b32.xlu0 %v199, 124
      %v241 = vpop.permute.xlu0 %240
      %242 = vrot.lane.b32.xlu0 %v200, 124
      %v243 = vpop.permute.xlu0 %242
      %244 = vrot.lane.b32.xlu0 %v201, 124
      %v245 = vpop.permute.xlu0 %244
      %246 = vrot.lane.b32.xlu0 %v202, 124
      %v247 = vpop.permute.xlu0 %246
      %248 = vrot.lane.b32.xlu0 %v203, 124
      %v249 = vpop.permute.xlu0 %248
      %250 = vrot.lane.b32.xlu0 %v204, 124
      %v251 = vpop.permute.xlu0 %250
      %252 = vrot.lane.b32.xlu0 %v205, 124
      %v253 = vpop.permute.xlu0 %252
      %v270 = vmax.f32 %v190, %v223
      %v271 = vmax.f32 %v191, %v225
      %v272 = vmax.f32 %v192, %v227
      %v273 = vmax.f32 %v193, %v229
      %v274 = vmax.f32 %v194, %v231
      %v275 = vmax.f32 %v195, %v233
      %v276 = vmax.f32 %v196, %v235
      %v277 = vmax.f32 %v197, %v237
      %v278 = vmax.f32 %v198, %v239
      %v279 = vmax.f32 %v199, %v241
      %v280 = vmax.f32 %v200, %v243
      %v281 = vmax.f32 %v201, %v245
      %v282 = vmax.f32 %v202, %v247
      %v283 = vmax.f32 %v203, %v249
      %v284 = vmax.f32 %v204, %v251
      %v285 = vmax.f32 %v205, %v253
      %v286 = vmax.f32 %v270, %v271
      %v287 = vmax.f32 %v272, %v273
      %v288 = vmax.f32 %v274, %v275
      %v289 = vmax.f32 %v276, %v277
      %v290 = vmax.f32 %v278, %v279
      %v291 = vmax.f32 %v280, %v281
      %v292 = vmax.f32 %v282, %v283
      %v293 = vmax.f32 %v284, %v285
      %vm294 = vcmask 31744
      %295 = vst.msk [vmem:[%s157] sm:$0xff] %vm294, %v286
      %296 = vst.msk [vmem:[%s157 + $0x8] sm:$0xff] %vm294, %v287
      %297 = vst.msk [vmem:[%s157 + $0x10] sm:$0xff] %vm294, %v288
      %298 = vst.msk [vmem:[%s157 + $0x18] sm:$0xff] %vm294, %v289
      %299 = vst.msk [vmem:[%s157 + $0x20] sm:$0xff] %vm294, %v290
      %300 = vst.msk [vmem:[%s157 + $0x28] sm:$0xff] %vm294, %v291
      %301 = vst.msk [vmem:[%s157 + $0x30] sm:$0xff] %vm294, %v292
      %302 = vst.msk [vmem:[%s157 + $0x38] sm:$0xff] %vm294, %v293
      %p303 = scmp.lt.s32.totalorder %s16, 1
      %s304 = scalar_select %p303, %s16, 1
      %p305 = scmp.lt.s32.totalorder %s17, 7
      %s306 = scalar_select %p305, %s17, 7
      %s307 = smul.addr %s306, 8
      %s308 = smul.addr %s304, 64
      %s309 = sadd.s32 %s307, %s308
      %s310 = smul.addr %s309, 8
      %s311 = scalar_lea.vmem %s1, %s310
      // Predicated region
      $region25: #{encoder3d_forward.5} parent=23 // pred_check
        %p312 = pneg %p72
      $region26: #{encoder3d_forward.5} parent=23 // pred_check_branch
        %314 = sbr.rel (%p312) target = $region28
      $region27: #{encoder3d_forward.5} parent=23 // pred_region
        _
      $region28: #{encoder3d_forward.5} parent=23 // pred_fallthru
        _
    $region24: #{encoder3d_forward.5} parent=5 // pred_fallthru
      _
    %p315 = scmp.le.s32.totalorder 2, %s7
    // Predicated region
    $region29: #{encoder3d_forward.5} parent=5 // pred_check
      %p316 = pneg %p315
    $region30: #{encoder3d_forward.5} parent=5 // pred_check_branch
      %318 = sbr.rel (%p316) target = $region32
    $region31: #{encoder3d_forward.5} parent=5 // pred_region
      %s319 = ssub.s32 %s7, 2
      // Predicated region
      $region33: #{encoder3d_forward.5} parent=31 // pred_check
        %p320 = pneg %p78
      $region34: #{encoder3d_forward.5} parent=31 // pred_check_branch
        %322 = sbr.rel (%p320) target = $region36
      $region35: #{encoder3d_forward.5} parent=31 // pred_region
        %p323 = scmp.lt.s32.totalorder %s18, 1
        %s324 = scalar_select %p323, %s18, 1
        %p325 = scmp.lt.s32.totalorder %s19, 7
        %s326 = scalar_select %p325, %s19, 7
        %s327 = smul.addr %s326, 8
        %s328 = smul.addr %s324, 64
        %s329 = sadd.s32 %s327, %s328
        %s330 = smul.addr %s329, 8
        %s331 = scalar_lea.vmem %s1, %s330
      $region36: #{encoder3d_forward.5} parent=31 // pred_fallthru
        _
    $region32: #{encoder3d_forward.5} parent=5 // pred_fallthru
      _
  $region6: #{encoder3d_forward.5} parent=0 // loop_footer
    %s11 = sadd.s32 1, %s7
  $region7: #{encoder3d_forward.5} parent=0 // loop_footer_branch
    %6 = sbr.rel target = $region3
  $region8: #{encoder3d_forward.5} parent=0 // loop_exit
    _

// kernel: encoder3d_forward.6
$region0: #{encoder3d_forward.6}
  #allocation0 [shape = 'u32[]', space=smem, size = 0x4, offset = 0x4, fixed_abs, tag = 'smem constant byte address 0x4 - core index']
  #allocation1 [shape = 'u32[144,128]{1,0:T(1,128)}', space=vmem, size = 0x12000, scoped, tag = 'internal scratch']
  #allocation2 [shape = 'f32[64,128]{1,0:T(8,128)}', space=vmem, size = 0x8000, scoped, tag = 'scratch operand']
  %s0 = inlined_call_operand.vmem [shape: bf16[2,10,10,10,4], index: 0, kind: input, shape index: {}]
  %s1 = inlined_call_operand.vmem [shape: bf16[3,9,4,128], index: 1, kind: input, shape index: {}]
  %s2 = inlined_call_operand.vmem [shape: f32[1,128], index: 2, kind: input, shape index: {}]
  %s3 = inlined_call_operand.vmem [shape: f32[2,8,64,128], index: 3, kind: output, shape index: {0}]
  %s4 = inlined_call_operand.vmem [shape: f32[2,8,128], index: 4, kind: output, shape index: {1}]
  %5 = xla_tuple %s3, %s4
  %s6 = sld [smem:[#allocation0]]
  $region65: #{encoder3d_forward.6} parent=0
    _
  %s8 = ssub.s32 1, %s6
  %s9 = scalar_select 0, %s8, %s6
  loop: start=0, step=1, limit=50
  $region2: #{encoder3d_forward.6} parent=0 // loop_pre_header
    _
  $region3: #{encoder3d_forward.6} parent=0 // loop_header
    %s11 = sphi 0, %s15
    %p12 = scmp.ge.s32.totalorder %s11, 50
    %s18 = sphi 0, %s37
    %s19 = sphi 0, %s33
    %s20 = sphi 0, %s29
    %s21 = sphi 0, %s18
    %s22 = sphi 0, %s19
    %s23 = sphi 0, %s20
    %s24 = sphi 0, %s21
    %s25 = sphi 0, %s22
    %s26 = sphi 0, %s23
    %s44 = sphi 0, %s46
    %s47 = sphi 0, %s44
    %s48 = sphi 0, %s47
    %s64 = sphi 0, %s48
    %s68 = sphi 0, %s68
    %s70 = sphi 0, %s68
    %s71 = sphi 0, %s70
    %s85 = sphi 0, %s71
    %s89 = sphi 0, %s89
    %s91 = sphi 0, %s89
    %s92 = sphi 0, %s91
    %s106 = sphi 0, %s92
    %s114 = sphi 0, %s116
    %s117 = sphi 0, %s114
    %s118 = sphi 0, %s117
    %s134 = sphi 0, %s118
    %s140 = sphi 0, %s142
    %s143 = sphi 0, %s140
    %s144 = sphi 0, %s143
    %s160 = sphi 0, %s144
  $region4: #{encoder3d_forward.6} parent=0 // loop_header_branch
    %14 = sbr.rel (%p12) target = $region8
  $region5: #{encoder3d_forward.6} parent=0 // loop_body
    %s16 = ssub.s32 %s11, 1
    %s17 = ssub.s32 %s11, 2
    %s27 = sadd.s32 1, %s20
    %p28 = scmp.ge.s32.totalorder %s27, 3
    %s29 = scalar_select %p28, 0, %s27
    %s30 = sadd.s32 1, %s19
    %s31 = scalar_select %p28, %s30, %s19
    %p32 = scmp.ge.s32.totalorder %s31, 8
    %s33 = scalar_select %p32, 0, %s31
    %s34 = sadd.s32 1, %s18
    %s35 = scalar_select %p32, %s34, %s18
    %p36 = scmp.ge.s32.totalorder %s35, 2
    %s37 = scalar_select %p36, 0, %s35
    %s38 = sadd.s32 %s19, %s20
    %s39 = sadd.s32 %s33, %s29
    %s40 = ssub.s32 %s18, %s37
    %s41 = ssub.s32 %s38, %s39
    %s42 = sor.u32 %s40, %s41
    %p43 = scmp.eq.s32.totalorder %s42, 0
    %s45 = sadd.s32 %s44, 1
    %s46 = scalar_select %p43, %s44, %s45
    %p49 = pneg %p43
    %p50 = scmp.eq.s32.totalorder %s11, 47
    %p51 = por %p49, %p50
    %p52 = scmp.ne.s32.totalorder %s44, %s47
    %p53 = scmp.eq.s32.totalorder %s11, 0
    %p54 = por %p52, %p53
    %p55 = scmp.ne.s32.totalorder %s44, %s47
    %p56 = scmp.eq.s32.totalorder %s16, 47
    %p57 = por %p55, %p56
    %p58 = scmp.ne.s32.totalorder %s47, %s48
    %p59 = scmp.eq.s32.totalorder %s16, 0
    %p60 = por %p58, %p59
    %p61 = scmp.ne.s32.totalorder %s47, %s48
    %p62 = scmp.eq.s32.totalorder %s17, 47
    %p63 = por %p61, %p62
    %p65 = scmp.ne.s32.totalorder %s48, %s64
    %p66 = scmp.eq.s32.totalorder %s17, 0
    %p67 = por %p65, %p66
    %s69 = sadd.s32 %s68, 1
    %p72 = scmp.eq.s32.totalorder %s11, 47
    %p73 = scmp.ne.s32.totalorder %s68, %s70
    %p74 = scmp.eq.s32.totalorder %s11, 0
    %p75 = por %p73, %p74
    %p76 = scmp.ne.s32.totalorder %s68, %s70
    %p77 = scmp.eq.s32.totalorder %s16, 47
    %p78 = por %p76, %p77
    %p79 = scmp.ne.s32.totalorder %s70, %s71
    %p80 = scmp.eq.s32.totalorder %s16, 0
    %p81 = por %p79, %p80
    %p82 = scmp.ne.s32.totalorder %s70, %s71
    %p83 = scmp.eq.s32.totalorder %s17, 47
    %p84 = por %p82, %p83
    %p86 = scmp.ne.s32.totalorder %s71, %s85
    %p87 = scmp.eq.s32.totalorder %s17, 0
    %p88 = por %p86, %p87
    %s90 = sadd.s32 %s89, 1
    %p93 = scmp.eq.s32.totalorder %s11, 47
    %p94 = scmp.ne.s32.totalorder %s89, %s91
    %p95 = scmp.eq.s32.totalorder %s11, 0
    %p96 = por %p94, %p95
    %p97 = scmp.ne.s32.totalorder %s89, %s91
    %p98 = scmp.eq.s32.totalorder %s16, 47
    %p99 = por %p97, %p98
    %p100 = scmp.ne.s32.totalorder %s91, %s92
    %p101 = scmp.eq.s32.totalorder %s16, 0
    %p102 = por %p100, %p101
    %p103 = scmp.ne.s32.totalorder %s91, %s92
    %p104 = scmp.eq.s32.totalorder %s17, 47
    %p105 = por %p103, %p104
    %p107 = scmp.ne.s32.totalorder %s92, %s106
    %p108 = scmp.eq.s32.totalorder %s17, 0
    %p109 = por %p107, %p108
    %s110 = ssub.s32 %s18, %s37
    %s111 = ssub.s32 %s19, %s33
    %s112 = sor.u32 %s110, %s111
    %p113 = scmp.eq.s32.totalorder %s112, 0
    %s115 = sadd.s32 %s114, 1
    %s116 = scalar_select %p113, %s114, %s115
    %p119 = pneg %p113
    %p120 = scmp.eq.s32.totalorder %s11, 47
    %p121 = por %p119, %p120
    %p122 = scmp.ne.s32.totalorder %s114, %s117
    %p123 = scmp.eq.s32.totalorder %s11, 0
    %p124 = por %p122, %p123
    %p125 = scmp.ne.s32.totalorder %s114, %s117
    %p126 = scmp.eq.s32.totalorder %s16, 47
    %p127 = por %p125, %p126
    %p128 = scmp.ne.s32.totalorder %s117, %s118
    %p129 = scmp.eq.s32.totalorder %s16, 0
    %p130 = por %p128, %p129
    %p131 = scmp.ne.s32.totalorder %s117, %s118
    %p132 = scmp.eq.s32.totalorder %s17, 47
    %p133 = por %p131, %p132
    %p135 = scmp.ne.s32.totalorder %s118, %s134
    %p136 = scmp.eq.s32.totalorder %s17, 0
    %p137 = por %p135, %p136
    %s138 = ssub.s32 %s18, %s37
    %p139 = scmp.eq.s32.totalorder %s138, 0
    %s141 = sadd.s32 %s140, 1
    %s142 = scalar_select %p139, %s140, %s141
    %p145 = pneg %p139
    %p146 = scmp.eq.s32.totalorder %s11, 47
    %p147 = por %p145, %p146
    %p148 = scmp.ne.s32.totalorder %s140, %s143
    %p149 = scmp.eq.s32.totalorder %s11, 0
    %p150 = por %p148, %p149
    %p151 = scmp.ne.s32.totalorder %s140, %s143
    %p152 = scmp.eq.s32.totalorder %s16, 47
    %p153 = por %p151, %p152
    %p154 = scmp.ne.s32.totalorder %s143, %s144
    %p155 = scmp.eq.s32.totalorder %s16, 0
    %p156 = por %p154, %p155
    %p157 = scmp.ne.s32.totalorder %s143, %s144
    %p158 = scmp.eq.s32.totalorder %s17, 47
    %p159 = por %p157, %p158
    %p161 = scmp.ne.s32.totalorder %s144, %s160
    %p162 = scmp.eq.s32.totalorder %s17, 0
    %p163 = por %p161, %p162
    %p164 = scmp.le.s32.totalorder 1, %s11
    %p165 = scmp.lt.s32.totalorder %s11, 49
    %p166 = pnand %p164, %p165
    %p167 = pneg %p166
    // Predicated region
    $region9: #{encoder3d_forward.6} parent=5 // pred_check
      _
    $region10: #{encoder3d_forward.6} parent=5 // pred_check_branch
      %169 = sbr.rel (%p166) target = $region12
    $region11: #{encoder3d_forward.6} parent=5 // pred_region
      %s170 = ssub.s32 %s11, 1
      // Predicated region
      $region13: #{encoder3d_forward.6} parent=11 // pred_check
        %p171 = pneg %p81
      $region14: #{encoder3d_forward.6} parent=11 // pred_check_branch
        %173 = sbr.rel (%p171) target = $region16
      $region15: #{encoder3d_forward.6} parent=11 // pred_region
        _
      $region16: #{encoder3d_forward.6} parent=11 // pred_fallthru
        _
      // Predicated region
      $region17: #{encoder3d_forward.6} parent=11 // pred_check
        %p174 = pneg %p102
      $region18: #{encoder3d_forward.6} parent=11 // pred_check_branch
        %176 = sbr.rel (%p174) target = $region20
      $region19: #{encoder3d_forward.6} parent=11 // pred_region
        _
      $region20: #{encoder3d_forward.6} parent=11 // pred_fallthru
        _
    $region12: #{encoder3d_forward.6} parent=5 // pred_fallthru
      _
    %p177 = scmp.lt.s32.totalorder %s11, 48
    // Predicated region
    $region21: #{encoder3d_forward.6} parent=5 // pred_check
      %p178 = pneg %p177
    $region22: #{encoder3d_forward.6} parent=5 // pred_check_branch
      %180 = sbr.rel (%p178) target = $region24
    $region23: #{encoder3d_forward.6} parent=5 // pred_region
      // Predicated region
      $region25: #{encoder3d_forward.6} parent=23 // pred_check
        %p181 = pneg %p54
      $region26: #{encoder3d_forward.6} parent=23 // pred_check_branch
        %183 = sbr.rel (%p181) target = $region28
      $region27: #{encoder3d_forward.6} parent=23 // pred_region
        %s184 = sadd.s32 %s19, %s20
        %p185 = scmp.lt.s32.totalorder %s18, 1
        %s186 = scalar_select %p185, %s18, 1
        %p187 = scmp.lt.s32.totalorder %s184, 9
        %s188 = scalar_select %p187, %s184, 9
        %s189 = smul.addr %s188, 20
        %s190 = smul.addr %s186, 200
        %s191 = sadd.s32 %s189, %s190
        %s192 = smul.addr %s191, 4
        %s193 = scalar_lea.vmem %s0, %s192
        %s194 = sadd.s32 %s19, %s20
      $region28: #{encoder3d_forward.6} parent=23 // pred_fallthru
        _
    $region24: #{encoder3d_forward.6} parent=5 // pred_fallthru
      _
    %p195 = scmp.le.s32.totalorder 1, %s11
    %p196 = scmp.lt.s32.totalorder %s11, 49
    %p197 = pnand %p195, %p196
    %p198 = pneg %p197
    // Predicated region
    $region29: #{encoder3d_forward.6} parent=5 // pred_check
      _
    $region30: #{encoder3d_forward.6} parent=5 // pred_check_branch
      %200 = sbr.rel (%p197) target = $region32
    $region31: #{encoder3d_forward.6} parent=5 // pred_region
      %s201 = ssub.s32 %s11, 1
      %s202 = sadd.s32 %s22, %s23
      %p203 = scmp.lt.s32.totalorder %s21, 1
      %s204 = scalar_select %p203, %s21, 1
      %p205 = scmp.lt.s32.totalorder %s202, 9
      %s206 = scalar_select %p205, %s202, 9
      %s207 = smul.addr %s206, 20
      %s208 = smul.addr %s204, 200
      %s209 = sadd.s32 %s207, %s208
      %s210 = smul.addr %s209, 4
      %s211 = scalar_lea.vmem %s0, %s210
      %p212 = pneg %p60
      %p213 = pneg %p57
      %p214 = pneg %p81
      %p215 = pneg %p78
      %p216 = pneg %p102
      %p217 = pneg %p99
      %p218 = pneg %p130
      %p219 = pneg %p127
      %p220 = scmp.lt.s32.totalorder %s21, 1
      %s221 = scalar_select %p220, %s21, 1
      %p222 = scmp.lt.s32.totalorder %s22, 7
      %s223 = scalar_select %p222, %s22, 7
      %s224 = smul.addr %s223, 8
      %s225 = smul.addr %s221, 64
      %s226 = sadd.s32 %s224, %s225
      %s227 = smul.addr %s226, 8
      %s228 = scalar_lea.vmem %s3, %s227
      %p229 = pneg %p156
      %p230 = pneg %p153
      %p231 = scmp.lt.s32.totalorder %s21, 1
      %s232 = scalar_select %p231, %s21, 1
      %s233 = smul.addr %s232, 8
      %s234 = scalar_lea.vmem %s4, %s233
      %s235 = sadd.s32 %s22, %s23
      %p236 = scmp.lt.s32.totalorder %s21, 1
      %s237 = scalar_select %p236, %s21, 1
      %p238 = scmp.lt.s32.totalorder %s235, 9
      %s239 = scalar_select %p238, %s235, 9
      %s240 = smul.addr %s239, 20
      %s241 = smul.addr %s237, 200
      %s242 = sadd.s32 %s240, %s241
      %s243 = smul.addr %s242, 4
      %s244 = scalar_lea.vmem %s0, %s243
      %s245 = sadd.s32 %s22, %s23
      %p246 = scmp.lt.s32.totalorder %s21, 1
      %s247 = scalar_select %p246, %s21, 1
      %p248 = scmp.lt.s32.totalorder %s22, 7
      %s249 = scalar_select %p248, %s22, 7
      %s250 = smul.addr %s249, 8
      %s251 = smul.addr %s247, 64
      %s252 = sadd.s32 %s250, %s251
      %s253 = smul.addr %s252, 8
      %s254 = scalar_lea.vmem %s3, %s253
      %p255 = scmp.lt.s32.totalorder %s21, 1
      %s256 = scalar_select %p255, %s21, 1
      %s257 = smul.addr %s256, 8
      %s258 = scalar_lea.vmem %s4, %s257
      %p260 = scmp.eq.s32.totalorder %s23, 0
      // Predicated region
      $region33: #{encoder3d_forward.6} parent=31 // pred_check
        %p261 = pneg %p260
      $region34: #{encoder3d_forward.6} parent=31 // pred_check_branch
        %263 = sbr.rel (%p261) target = $region36
      $region35: #{encoder3d_forward.6} parent=31 // pred_region
        %264 = vst [vmem:[#allocation2] sm:$0xff] 0.0
        %265 = vst [vmem:[#allocation2 + $0x8] sm:$0xff] 0.0
        %266 = vst [vmem:[#allocation2 + $0x10] sm:$0xff] 0.0
        %267 = vst [vmem:[#allocation2 + $0x18] sm:$0xff] 0.0
        %268 = vst [vmem:[#allocation2 + $0x20] sm:$0xff] 0.0
        %269 = vst [vmem:[#allocation2 + $0x28] sm:$0xff] 0.0
        %270 = vst [vmem:[#allocation2 + $0x30] sm:$0xff] 0.0
        %271 = vst [vmem:[#allocation2 + $0x38] sm:$0xff] 0.0
      $region36: #{encoder3d_forward.6} parent=31 // pred_fallthru
        _
      %p272 = scmp.eq.s32.totalorder %s22, 0
      %p273 = pnand %p272, %p260
      %p274 = pneg %p273
      // Predicated region
      $region37: #{encoder3d_forward.6} parent=31 // pred_check
        _
      $region38: #{encoder3d_forward.6} parent=31 // pred_check_branch
        %276 = sbr.rel (%p273) target = $region40
      $region39: #{encoder3d_forward.6} parent=31 // pred_region
        %277 = vst [vmem:[%s258] sm:$0xff] 0.0
      $region40: #{encoder3d_forward.6} parent=31 // pred_fallthru
        _
      %v278 = vld [vmem:[%s244] sm:$0xf]
      %v279 = vld [vmem:[%s244 + $0x4] sm:$0x1]
      %v280 = vld [vmem:[%s244 + $0x8] sm:$0xf]
      %v281 = vld [vmem:[%s244 + $0xc] sm:$0x1]
      %v282 = vld [vmem:[%s244 + $0x10] sm:$0xf]
      %v283 = vld [vmem:[%s244 + $0x14] sm:$0x1]
      %v284 = vld [vmem:[%s244 + $0x18] sm:$0xf]
      %v285 = vld [vmem:[%s244 + $0x1c] sm:$0x1]
      %v286 = vld [vmem:[%s244 + $0x20] sm:$0xf]
      %v287 = vld [vmem:[%s244 + $0x24] sm:$0x1]
      %v288 = vld [vmem:[%s244 + $0x28] sm:$0xf]
      %v289 = vld [vmem:[%s244 + $0x2c] sm:$0x1]
      %v290 = vld [vmem:[%s244 + $0x30] sm:$0xf]
      %v291 = vld [vmem:[%s244 + $0x34] sm:$0x1]
      %v292 = vld [vmem:[%s244 + $0x38] sm:$0xf]
      %v293 = vld [vmem:[%s244 + $0x3c] sm:$0x1]
      %v294 = vld [vmem:[%s244 + $0x40] sm:$0xf]
      %v295 = vld [vmem:[%s244 + $0x44] sm:$0x1]
      %v296 = vld [vmem:[%s244 + $0x48] sm:$0xf]
      %v297 = vld [vmem:[%s244 + $0x4c] sm:$0x1]
      %s298 = smul.u32 %s23, 9
      %s299 = smul.addr %s298, 2
      %s300 = scalar_lea.vmem %s1, %s299
      %v301 = vld [vmem:[%s300] sm:$0x3]
      %vm302 = vsmask.f32 3328
      %vm303 = vsmask.f32 7440
      %vm304 = vmor %vm302, %vm303
      %v306 = vshrl.u32 %v278, 16
      %v308 = vrot.slane %v306, 4
      %v309 = vshll.u32 %v278, 16
      %v311 = vrot.slane %v309, 5
      %v312 = vor.u32 %v308, %v311
      %v313 = vrot.slane %v312, 4
      %v315 = vshll.u32 %v279, 16
      %v317 = vrot.slane %v315, 5
      %v318 = vsel %vm304, %v313, %v317
      %v320 = vshrl.u32 %v280, 16
      %v322 = vrot.slane %v320, 4
      %v323 = vshll.u32 %v280, 16
      %v325 = vrot.slane %v323, 5
      %v326 = vor.u32 %v322, %v325
      %v327 = vrot.slane %v326, 4
      %v329 = vshll.u32 %v281, 16
      %v331 = vrot.slane %v329, 5
      %v332 = vsel %vm304, %v327, %v331
      %v334 = vshrl.u32 %v282, 16
      %v336 = vrot.slane %v334, 4
      %v337 = vshll.u32 %v282, 16
      %v339 = vrot.slane %v337, 5
      %v340 = vor.u32 %v336, %v339
      %v341 = vrot.slane %v340, 4
      %v343 = vshll.u32 %v283, 16
      %v345 = vrot.slane %v343, 5
      %v346 = vsel %vm304, %v341, %v345
      %v348 = vshrl.u32 %v284, 16
      %v350 = vrot.slane %v348, 4
      %v351 = vshll.u32 %v284, 16
      %v353 = vrot.slane %v351, 5
      %v354 = vor.u32 %v350, %v353
      %v355 = vrot.slane %v354, 4
      %v357 = vshll.u32 %v285, 16
      %v359 = vrot.slane %v357, 5
      %v360 = vsel %vm304, %v355, %v359
      %v362 = vshrl.u32 %v286, 16
      %v364 = vrot.slane %v362, 4
      %v365 = vshll.u32 %v286, 16
      %v367 = vrot.slane %v365, 5
      %v368 = vor.u32 %v364, %v367
      %v369 = vrot.slane %v368, 4
      %v371 = vshll.u32 %v287, 16
      %v373 = vrot.slane %v371, 5
      %v374 = vsel %vm304, %v369, %v373
      %v376 = vshrl.u32 %v288, 16
      %v378 = vrot.slane %v376, 4
      %v379 = vshll.u32 %v288, 16
      %v381 = vrot.slane %v379, 5
      %v382 = vor.u32 %v378, %v381
      %v383 = vrot.slane %v382, 4
      %v385 = vshll.u32 %v289, 16
      %v387 = vrot.slane %v385, 5
      %v388 = vsel %vm304, %v383, %v387
      %v390 = vshrl.u32 %v290, 16
      %v392 = vrot.slane %v390, 4
      %v393 = vshll.u32 %v290, 16
      %v395 = vrot.slane %v393, 5
      %v396 = vor.u32 %v392, %v395
      %v397 = vrot.slane %v396, 4
      %v399 = vshll.u32 %v291, 16
      %v401 = vrot.slane %v399, 5
      %v402 = vsel %vm304, %v397, %v401
      %v404 = vshrl.u32 %v292, 16
      %v406 = vrot.slane %v404, 4
      %v407 = vshll.u32 %v292, 16
      %v409 = vrot.slane %v407, 5
      %v410 = vor.u32 %v406, %v409
      %v411 = vrot.slane %v410, 4
      %v413 = vshll.u32 %v293, 16
      %v415 = vrot.slane %v413, 5
      %v416 = vsel %vm304, %v411, %v415
      %s417 = sadd.s32 1, %s298
      %s418 = smul.addr %s417, 2
      %s419 = scalar_lea.vmem %s1, %s418
      %v420 = vld [vmem:[%s419] sm:$0x3]
      %v421 = vunpack.c.l.b16 %v318
      %v422 = vunpack.c.l.b16 %v332
      %v423 = vunpack.c.l.b16 %v346
      %v424 = vunpack.c.l.b16 %v360
      %v425 = vunpack.c.l.b16 %v374
      %v426 = vunpack.c.l.b16 %v388
      %v427 = vunpack.c.l.b16 %v402
      %v428 = vunpack.c.l.b16 %v416
      %v429 = vpack.c.b16 %v422, %v421
      %v430 = vpack.c.b16 %v424, %v423
      %v431 = vpack.c.b16 %v426, %v425
      %v432 = vpack.c.b16 %v428, %v427
      %vm433 = vcmask 31744
      %v435 = vsel %vm433, %v429, 0
      %v438 = vsel %vm433, %v430, 0
      %v441 = vsel %vm433, %v431, 0
      %v444 = vsel %vm433, %v432, 0
      %vm446 = vcmask 1041408
      %v448 = vsel %vm446, %v420, 0
      %450 = vmatprep.subr.bf16.mxu0 0
      %451 = vmatpush1.bf16.msra.mxu0 %v448
      %452 = vmatprep.subr.bf16.mxu0 0
      %453 = vmatpush1.bf16.msra.mxu0 0
      %454 = vmatprep.subr.bf16.mxu0 0
      %455 = vmatpush1.bf16.msra.mxu0 0
      %456 = vmatprep.subr.bf16.mxu0 0
      %457 = vmatpush1.bf16.msra.mxu0 0
      %458 = vmatprep.subr.bf16.mxu0 0
      %459 = vmatpush1.bf16.msra.mxu0 0
      %460 = vmatprep.subr.bf16.mxu0 0
      %461 = vmatpush1.bf16.msra.mxu0 0
      %462 = vmatprep.subr.bf16.mxu0 0
      %463 = vmatpush1.bf16.msra.mxu0 0
      %464 = vmatprep.subr.bf16.mxu0 0
      %465 = vmatpush1.bf16.msra.mxu0 0
      %466 = vmatprep.subr.bf16.mxu0 0
      %467 = vmatpush1.bf16.msra.mxu0 0
      %468 = vmatprep.subr.bf16.mxu0 0
      %469 = vmatpush1.bf16.msra.mxu0 0
      %470 = vmatprep.subr.bf16.mxu0 0
      %471 = vmatpush1.bf16.msra.mxu0 0
      %472 = vmatprep.subr.bf16.mxu0 0
      %473 = vmatpush1.bf16.msra.mxu0 0
      %474 = vmatprep.subr.bf16.mxu0 0
      %475 = vmatpush1.bf16.msra.mxu0 0
      %476 = vmatprep.subr.bf16.mxu0 0
      %477 = vmatpush1.bf16.msra.mxu0 0
      %478 = vmatprep.subr.bf16.mxu0 0
      %479 = vmatpush1.bf16.msra.mxu0 0
      %480 = vmatprep.subr.bf16.mxu0 0
      %481 = vmatpush1.bf16.msra.mxu0 0
      %482 = vmatprep.mubr.bf16.mxu0 0
      %483 = vmatmul.mubr.bf16.gmra.mrb[0].mxu0 %v435
      %v484 = vpop.f32.mrb[0].mxu0
      %v485 = vadd.f32 0.0, %v484
      %v486 = vpop.f32.mrb[0].mxu0
      %v487 = vpop.f32.mrb[0].mxu0
      %v488 = vadd.f32 0.0, %v487
      %v489 = vpop.f32.mrb[0].mxu0
      %490 = vmatprep.mubr.bf16.mxu0 0
      %491 = vmatmul.mubr.bf16.gmra.mrb[0].mxu0 %v438
      %v492 = vpop.f32.mrb[0].mxu0
      %v493 = vadd.f32 0.0, %v492
      %v494 = vpop.f32.mrb[0].mxu0
      %v495 = vpop.f32.mrb[0].mxu0
      %v496 = vadd.f32 0.0, %v495
      %v497 = vpop.f32.mrb[0].mxu0
      %498 = vmatprep.mubr.bf16.mxu0 0
      %499 = vmatmul.mubr.bf16.gmra.mrb[0].mxu0 %v441
      %v500 = vpop.f32.mrb[0].mxu0
      %v501 = vadd.f32 0.0, %v500
      %v502 = vpop.f32.mrb[0].mxu0
      %v503 = vpop.f32.mrb[0].mxu0
      %v504 = vadd.f32 0.0, %v503
      %v505 = vpop.f32.mrb[0].mxu0
      %506 = vmatprep.mubr.bf16.mxu0 0
      %507 = vmatmul.mubr.bf16.gmra.mrb[0].mxu0 %v444
      %v508 = vpop.f32.mrb[0].mxu0
      %v509 = vadd.f32 0.0, %v508
      %v510 = vpop.f32.mrb[0].mxu0
      %v511 = vpop.f32.mrb[0].mxu0
      %v512 = vadd.f32 0.0, %v511
      %v513 = vpop.f32.mrb[0].mxu0
      %514 = vdwg.mxu0
      %v523 = vunpack.c.l.b16 %v278
      %v524 = vunpack.c.l.b16 %v280
      %v525 = vunpack.c.l.b16 %v282
      %v526 = vunpack.c.l.b16 %v284
      %v527 = vunpack.c.l.b16 %v286
      %v528 = vunpack.c.l.b16 %v288
      %v529 = vunpack.c.l.b16 %v290
      %v530 = vunpack.c.l.b16 %v292
      %v531 = vpack.c.b16 %v524, %v523
      %v532 = vpack.c.b16 %v526, %v525
      %v533 = vpack.c.b16 %v528, %v527
      %v534 = vpack.c.b16 %v530, %v529
      %v536 = vsel %vm433, %v531, 0
      %v539 = vsel %vm433, %v532, 0
      %v542 = vsel %vm433, %v533, 0
      %v545 = vsel %vm433, %v534, 0
      %v548 = vsel %vm446, %v301, 0
      %550 = vmatprep.subr.bf16.mxu0 0
      %551 = vmatpush1.bf16.msra.mxu0 %v548
      %552 = vmatprep.subr.bf16.mxu0 0
      %553 = vmatpush1.bf16.msra.mxu0 0
      %554 = vmatprep.subr.bf16.mxu0 0
      %555 = vmatpush1.bf16.msra.mxu0 0
      %556 = vmatprep.subr.bf16.mxu0 0
      %557 = vmatpush1.bf16.msra.mxu0 0
      %558 = vmatprep.subr.bf16.mxu0 0
      %559 = vmatpush1.bf16.msra.mxu0 0
      %560 = vmatprep.subr.bf16.mxu0 0
      %561 = vmatpush1.bf16.msra.mxu0 0
      %562 = vmatprep.subr.bf16.mxu0 0
      %563 = vmatpush1.bf16.msra.mxu0 0
      %564 = vmatprep.subr.bf16.mxu0 0
      %565 = vmatpush1.bf16.msra.mxu0 0
      %566 = vmatprep.subr.bf16.mxu0 0
      %567 = vmatpush1.bf16.msra.mxu0 0
      %568 = vmatprep.subr.bf16.mxu0 0
      %569 = vmatpush1.bf16.msra.mxu0 0
      %570 = vmatprep.subr.bf16.mxu0 0
      %571 = vmatpush1.bf16.msra.mxu0 0
      %572 = vmatprep.subr.bf16.mxu0 0
      %573 = vmatpush1.bf16.msra.mxu0 0
      %574 = vmatprep.subr.bf16.mxu0 0
      %575 = vmatpush1.bf16.msra.mxu0 0
      %576 = vmatprep.subr.bf16.mxu0 0
      %577 = vmatpush1.bf16.msra.mxu0 0
      %578 = vmatprep.subr.bf16.mxu0 0
      %579 = vmatpush1.bf16.msra.mxu0 0
      %580 = vmatprep.subr.bf16.mxu0 0
      %581 = vmatpush1.bf16.msra.mxu0 0
      %582 = vmatprep.mubr.bf16.mxu0 0
      %583 = vmatmul.mubr.bf16.gmra.mrb[0].mxu0 %v536
      %v584 = vpop.f32.mrb[0].mxu0
      %v585 = vadd.f32 %v485, %v584
      %v586 = vpop.f32.mrb[0].mxu0
      %v587 = vpop.f32.mrb[0].mxu0
      %v588 = vadd.f32 %v488, %v587
      %v589 = vpop.f32.mrb[0].mxu0
      %590 = vmatprep.mubr.bf16.mxu0 0
      %591 = vmatmul.mubr.bf16.gmra.mrb[0].mxu0 %v539
      %v592 = vpop.f32.mrb[0].mxu0
      %v593 = vadd.f32 %v493, %v592
      %v594 = vpop.f32.mrb[0].mxu0
      %v595 = vpop.f32.mrb[0].mxu0
      %v596 = vadd.f32 %v496, %v595
      %v597 = vpop.f32.mrb[0].mxu0
      %598 = vmatprep.mubr.bf16.mxu0 0
      %599 = vmatmul.mubr.bf16.gmra.mrb[0].mxu0 %v542
      %v600 = vpop.f32.mrb[0].mxu0
      %v601 = vadd.f32 %v501, %v600
      %v602 = vpop.f32.mrb[0].mxu0
      %v603 = vpop.f32.mrb[0].mxu0
      %v604 = vadd.f32 %v504, %v603
      %v605 = vpop.f32.mrb[0].mxu0
      %606 = vmatprep.mubr.bf16.mxu0 0
      %607 = vmatmul.mubr.bf16.gmra.mrb[0].mxu0 %v545
      %v608 = vpop.f32.mrb[0].mxu0
      %v609 = vadd.f32 %v509, %v608
      %v610 = vpop.f32.mrb[0].mxu0
      %v611 = vpop.f32.mrb[0].mxu0
      %v612 = vadd.f32 %v512, %v611
      %v613 = vpop.f32.mrb[0].mxu0
      %614 = vdwg.mxu0
      %vm623 = vcmask 1042432
      %vm624 = vcmask 1046532
      %vm625 = vmor %vm623, %vm624
      %v626 = vrot.slane %v278, 5
      %v627 = vrot.slane %v626, 4
      %v628 = vrot.slane %v279, 5
      %v629 = vsel %vm625, %v627, %v628
      %v630 = vrot.slane %v280, 5
      %v631 = vrot.slane %v630, 4
      %v632 = vrot.slane %v281, 5
      %v633 = vsel %vm625, %v631, %v632
      %v634 = vrot.slane %v282, 5
      %v635 = vrot.slane %v634, 4
      %v636 = vrot.slane %v283, 5
      %v637 = vsel %vm625, %v635, %v636
      %v638 = vrot.slane %v284, 5
      %v639 = vrot.slane %v638, 4
      %v640 = vrot.slane %v285, 5
      %v641 = vsel %vm625, %v639, %v640
      %v642 = vrot.slane %v286, 5
      %v643 = vrot.slane %v642, 4
      %v644 = vrot.slane %v287, 5
      %v645 = vsel %vm625, %v643, %v644
      %v646 = vrot.slane %v288, 5
      %v647 = vrot.slane %v646, 4
      %v648 = vrot.slane %v289, 5
      %v649 = vsel %vm625, %v647, %v648
      %v650 = vrot.slane %v290, 5
      %v651 = vrot.slane %v650, 4
      %v652 = vrot.slane %v291, 5
      %v653 = vsel %vm625, %v651, %v652
      %v654 = vrot.slane %v292, 5
      %v655 = vrot.slane %v654, 4
      %v656 = vrot.slane %v293, 5
      %v657 = vsel %vm625, %v655, %v656
      %s658 = sadd.s32 2, %s298
      %s659 = smul.addr %s658, 2
      %s660 = scalar_lea.vmem %s1, %s659
      %v661 = vld [vmem:[%s660] sm:$0x3]
      %v662 = vunpack.c.l.b16 %v629
      %v663 = vunpack.c.l.b16 %v633
      %v664 = vunpack.c.l.b16 %v637
      %v665 = vunpack.c.l.b16 %v641
      %v666 = vunpack.c.l.b16 %v645
      %v667 = vunpack.c.l.b16 %v649
      %v668 = vunpack.c.l.b16 %v653
      %v669 = vunpack.c.l.b16 %v657
      %v670 = vpack.c.b16 %v663, %v662
      %v671 = vpack.c.b16 %v665, %v664
      %v672 = vpack.c.b16 %v667, %v666
      %v673 = vpack.c.b16 %v669, %v668
      %v675 = vsel %vm433, %v670, 0
      %v678 = vsel %vm433, %v671, 0
      %v681 = vsel %vm433, %v672, 0
      %v684 = vsel %vm433, %v673, 0
      %v687 = vsel %vm446, %v661, 0
      %689 = vmatprep.subr.bf16.mxu0 0
      %690 = vmatpush1.bf16.msra.mxu0 %v687
      %691 = vmatprep.subr.bf16.mxu0 0
      %692 = vmatpush1.bf16.msra.mxu0 0
      %693 = vmatprep.subr.bf16.mxu0 0
      %694 = vmatpush1.bf16.msra.mxu0 0
      %695 = vmatprep.subr.bf16.mxu0 0
      %696 = vmatpush1.bf16.msra.mxu0 0
      %697 = vmatprep.subr.bf16.mxu0 0
      %698 = vmatpush1.bf16.msra.mxu0 0
      %699 = vmatprep.subr.bf16.mxu0 0
      %700 = vmatpush1.bf16.msra.mxu0 0
      %701 = vmatprep.subr.bf16.mxu0 0
      %702 = vmatpush1.bf16.msra.mxu0 0
      %703 = vmatprep.subr.bf16.mxu0 0
      %704 = vmatpush1.bf16.msra.mxu0 0
      %705 = vmatprep.subr.bf16.mxu0 0
      %706 = vmatpush1.bf16.msra.mxu0 0
      %707 = vmatprep.subr.bf16.mxu0 0
      %708 = vmatpush1.bf16.msra.mxu0 0
      %709 = vmatprep.subr.bf16.mxu0 0
      %710 = vmatpush1.bf16.msra.mxu0 0
      %711 = vmatprep.subr.bf16.mxu0 0
      %712 = vmatpush1.bf16.msra.mxu0 0
      %713 = vmatprep.subr.bf16.mxu0 0
      %714 = vmatpush1.bf16.msra.mxu0 0
      %715 = vmatprep.subr.bf16.mxu0 0
      %716 = vmatpush1.bf16.msra.mxu0 0
      %717 = vmatprep.subr.bf16.mxu0 0
      %718 = vmatpush1.bf16.msra.mxu0 0
      %719 = vmatprep.subr.bf16.mxu0 0
      %720 = vmatpush1.bf16.msra.mxu0 0
      %721 = vmatprep.mubr.bf16.mxu0 0
      %722 = vmatmul.mubr.bf16.gmra.mrb[0].mxu0 %v675
      %v723 = vpop.f32.mrb[0].mxu0
      %v724 = vadd.f32 0.0, %v723
      %v725 = vpop.f32.mrb[0].mxu0
      %v726 = vpop.f32.mrb[0].mxu0
      %v727 = vadd.f32 0.0, %v726
      %v728 = vpop.f32.mrb[0].mxu0
      %729 = vmatprep.mubr.bf16.mxu0 0
      %730 = vmatmul.mubr.bf16.gmra.mrb[0].mxu0 %v678
      %v731 = vpop.f32.mrb[0].mxu0
      %v732 = vadd.f32 0.0, %v731
      %v733 = vpop.f32.mrb[0].mxu0
      %v734 = vpop.f32.mrb[0].mxu0
      %v735 = vadd.f32 0.0, %v734
      %v736 = vpop.f32.mrb[0].mxu0
      %737 = vmatprep.mubr.bf16.mxu0 0
      %738 = vmatmul.mubr.bf16.gmra.mrb[0].mxu0 %v681
      %v739 = vpop.f32.mrb[0].mxu0
      %v740 = vadd.f32 0.0, %v739
      %v741 = vpop.f32.mrb[0].mxu0
      %v742 = vpop.f32.mrb[0].mxu0
      %v743 = vadd.f32 0.0, %v742
      %v744 = vpop.f32.mrb[0].mxu0
      %745 = vmatprep.mubr.bf16.mxu0 0
      %746 = vmatmul.mubr.bf16.gmra.mrb[0].mxu0 %v684
      %v747 = vpop.f32.mrb[0].mxu0
      %v748 = vadd.f32 0.0, %v747
      %v749 = vpop.f32.mrb[0].mxu0
      %v750 = vpop.f32.mrb[0].mxu0
      %v751 = vadd.f32 0.0, %v750
      %v752 = vpop.f32.mrb[0].mxu0
      %753 = vdwg.mxu0
      %v754 = vadd.f32 %v585, %v724
      %v755 = vadd.f32 %v588, %v727
      %v756 = vadd.f32 %v593, %v732
      %v757 = vadd.f32 %v596, %v735
      %v758 = vadd.f32 %v601, %v740
      %v759 = vadd.f32 %v604, %v743
      %v760 = vadd.f32 %v609, %v748
      %v761 = vadd.f32 %v612, %v751
      %s762 = sadd.s32 3, %s298
      %s763 = smul.addr %s762, 2
      %s764 = scalar_lea.vmem %s1, %s763
      %v765 = vld [vmem:[%s764] sm:$0x3]
      %v767 = vunpack.c.l.b16 %v294
      %v768 = vpack.c.b16 %v525, %v524
      %v769 = vpack.c.b16 %v527, %v526
      %v770 = vpack.c.b16 %v529, %v528
      %v771 = vpack.c.b16 %v767, %v530
      %v773 = vsel %vm433, %v768, 0
      %v776 = vsel %vm433, %v769, 0
      %v779 = vsel %vm433, %v770, 0
      %v782 = vsel %vm433, %v771, 0
      %v785 = vsel %vm446, %v765, 0
      %787 = vmatprep.subr.bf16.mxu0 0
      %788 = vmatpush1.bf16.msra.mxu0 %v785
      %789 = vmatprep.subr.bf16.mxu0 0
      %790 = vmatpush1.bf16.msra.mxu0 0
      %791 = vmatprep.subr.bf16.mxu0 0
      %792 = vmatpush1.bf16.msra.mxu0 0
      %793 = vmatprep.subr.bf16.mxu0 0
      %794 = vmatpush1.bf16.msra.mxu0 0
      %795 = vmatprep.subr.bf16.mxu0 0
      %796 = vmatpush1.bf16.msra.mxu0 0
      %797 = vmatprep.subr.bf16.mxu0 0
      %798 = vmatpush1.bf16.msra.mxu0 0
      %799 = vmatprep.subr.bf16.mxu0 0
      %800 = vmatpush1.bf16.msra.mxu0 0
      %801 = vmatprep.subr.bf16.mxu0 0
      %802 = vmatpush1.bf16.msra.mxu0 0
      %803 = vmatprep.subr.bf16.mxu0 0
      %804 = vmatpush1.bf16.msra.mxu0 0
      %805 = vmatprep.subr.bf16.mxu0 0
      %806 = vmatpush1.bf16.msra.mxu0 0
      %807 = vmatprep.subr.bf16.mxu0 0
      %808 = vmatpush1.bf16.msra.mxu0 0
      %809 = vmatprep.subr.bf16.mxu0 0
      %810 = vmatpush1.bf16.msra.mxu0 0
      %811 = vmatprep.subr.bf16.mxu0 0
      %812 = vmatpush1.bf16.msra.mxu0 0
      %813 = vmatprep.subr.bf16.mxu0 0
      %814 = vmatpush1.bf16.msra.mxu0 0
      %815 = vmatprep.subr.bf16.mxu0 0
      %816 = vmatpush1.bf16.msra.mxu0 0
      %817 = vmatprep.subr.bf16.mxu0 0
      %818 = vmatpush1.bf16.msra.mxu0 0
      %819 = vmatprep.mubr.bf16.mxu0 0
      %820 = vmatmul.mubr.bf16.gmra.mrb[0].mxu0 %v773
      %v821 = vpop.f32.mrb[0].mxu0
      %v822 = vadd.f32 0.0, %v821
      %v823 = vpop.f32.mrb[0].mxu0
      %v824 = vpop.f32.mrb[0].mxu0
      %v825 = vadd.f32 0.0, %v824
      %v826 = vpop.f32.mrb[0].mxu0
      %827 = vmatprep.mubr.bf16.mxu0 0
      %828 = vmatmul.mubr.bf16.gmra.mrb[0].mxu0 %v776
      %v829 = vpop.f32.mrb[0].mxu0
      %v830 = vadd.f32 0.0, %v829
      %v831 = vpop.f32.mrb[0].mxu0
      %v832 = vpop.f32.mrb[0].mxu0
      %v833 = vadd.f32 0.0, %v832
      %v834 = vpop.f32.mrb[0].mxu0
      %835 = vmatprep.mubr.bf16.mxu0 0
      %836 = vmatmul.mubr.bf16.gmra.mrb[0].mxu0 %v779
      %v837 = vpop.f32.mrb[0].mxu0
      %v838 = vadd.f32 0.0, %v837
      %v839 = vpop.f32.mrb[0].mxu0
      %v840 = vpop.f32.mrb[0].mxu0
      %v841 = vadd.f32 0.0, %v840
      %v842 = vpop.f32.mrb[0].mxu0
      %843 = vmatprep.mubr.bf16.mxu0 0
      %844 = vmatmul.mubr.bf16.gmra.mrb[0].mxu0 %v782
      %v845 = vpop.f32.mrb[0].mxu0
      %v846 = vadd.f32 0.0, %v845
      %v847 = vpop.f32.mrb[0].mxu0
      %v848 = vpop.f32.mrb[0].mxu0
      %v849 = vadd.f32 0.0, %v848
      %v850 = vpop.f32.mrb[0].mxu0
      %851 = vdwg.mxu0
      %v852 = vadd.f32 %v754, %v822
      %v853 = vadd.f32 %v755, %v825
      %v854 = vadd.f32 %v756, %v830
      %v855 = vadd.f32 %v757, %v833
      %v856 = vadd.f32 %v758, %v838
      %v857 = vadd.f32 %v759, %v841
      %v858 = vadd.f32 %v760, %v846
      %v859 = vadd.f32 %v761, %v849
      %v861 = vshrl.u32 %v294, 16
      %v863 = vrot.slane %v861, 4
      %v864 = vshll.u32 %v294, 16
      %v866 = vrot.slane %v864, 5
      %v867 = vor.u32 %v863, %v866
      %v868 = vrot.slane %v867, 4
      %v870 = vshll.u32 %v295, 16
      %v872 = vrot.slane %v870, 5
      %v873 = vsel %vm304, %v868, %v872
      %s874 = sadd.s32 4, %s298
      %s875 = smul.addr %s874, 2
      %s876 = scalar_lea.vmem %s1, %s875
      %v877 = vld [vmem:[%s876] sm:$0x3]
      %v878 = vunpack.c.l.b16 %v873
      %v879 = vpack.c.b16 %v423, %v422
      %v880 = vpack.c.b16 %v425, %v424
      %v881 = vpack.c.b16 %v427, %v426
      %v882 = vpack.c.b16 %v878, %v428
      %v884 = vsel %vm433, %v879, 0
      %v887 = vsel %vm433, %v880, 0
      %v890 = vsel %vm433, %v881, 0
      %v893 = vsel %vm433, %v882, 0
      %v896 = vsel %vm446, %v877, 0
      %898 = vmatprep.subr.bf16.mxu0 0
      %899 = vmatpush1.bf16.msra.mxu0 %v896
      %900 = vmatprep.subr.bf16.mxu0 0
      %901 = vmatpush1.bf16.msra.mxu0 0
      %902 = vmatprep.subr.bf16.mxu0 0
      %903 = vmatpush1.bf16.msra.mxu0 0
      %904 = vmatprep.subr.bf16.mxu0 0
      %905 = vmatpush1.bf16.msra.mxu0 0
      %906 = vmatprep.subr.bf16.mxu0 0
      %907 = vmatpush1.bf16.msra.mxu0 0
      %908 = vmatprep.subr.bf16.mxu0 0
      %909 = vmatpush1.bf16.msra.mxu0 0
      %910 = vmatprep.subr.bf16.mxu0 0
      %911 = vmatpush1.bf16.msra.mxu0 0
      %912 = vmatprep.subr.bf16.mxu0 0
      %913 = vmatpush1.bf16.msra.mxu0 0
      %914 = vmatprep.subr.bf16.mxu0 0
      %915 = vmatpush1.bf16.msra.mxu0 0
      %916 = vmatprep.subr.bf16.mxu0 0
      %917 = vmatpush1.bf16.msra.mxu0 0
      %918 = vmatprep.subr.bf16.mxu0 0
      %919 = vmatpush1.bf16.msra.mxu0 0
      %920 = vmatprep.subr.bf16.mxu0 0
      %921 = vmatpush1.bf16.msra.mxu0 0
      %922 = vmatprep.subr.bf16.mxu0 0
      %923 = vmatpush1.bf16.msra.mxu0 0
      %924 = vmatprep.subr.bf16.mxu0 0
      %925 = vmatpush1.bf16.msra.mxu0 0
      %926 = vmatprep.subr.bf16.mxu0 0
      %927 = vmatpush1.bf16.msra.mxu0 0
      %928 = vmatprep.subr.bf16.mxu0 0
      %929 = vmatpush1.bf16.msra.mxu0 0
      %930 = vmatprep.mubr.bf16.mxu0 0
      %931 = vmatmul.mubr.bf16.gmra.mrb[0].mxu0 %v884
      %v932 = vpop.f32.mrb[0].mxu0
      %v933 = vadd.f32 0.0, %v932
      %v934 = vpop.f32.mrb[0].mxu0
      %v935 = vpop.f32.mrb[0].mxu0
      %v936 = vadd.f32 0.0, %v935
      %v937 = vpop.f32.mrb[0].mxu0
      %938 = vmatprep.mubr.bf16.mxu0 0
      %939 = vmatmul.mubr.bf16.gmra.mrb[0].mxu0 %v887
      %v940 = vpop.f32.mrb[0].mxu0
      %v941 = vadd.f32 0.0, %v940
      %v942 = vpop.f32.mrb[0].mxu0
      %v943 = vpop.f32.mrb[0].mxu0
      %v944 = vadd.f32 0.0, %v943
      %v945 = vpop.f32.mrb[0].mxu0
      %946 = vmatprep.mubr.bf16.mxu0 0
      %947 = vmatmul.mubr.bf16.gmra.mrb[0].mxu0 %v890
      %v948 = vpop.f32.mrb[0].mxu0
      %v949 = vadd.f32 0.0, %v948
      %v950 = vpop.f32.mrb[0].mxu0
      %v951 = vpop.f32.mrb[0].mxu0
      %v952 = vadd.f32 0.0, %v951
      %v953 = vpop.f32.mrb[0].mxu0
      %954 = vmatprep.mubr.bf16.mxu0 0
      %955 = vmatmul.mubr.bf16.gmra.mrb[0].mxu0 %v893
      %v956 = vpop.f32.mrb[0].mxu0
      %v957 = vadd.f32 0.0, %v956
      %v958 = vpop.f32.mrb[0].mxu0
      %v959 = vpop.f32.mrb[0].mxu0
      %v960 = vadd.f32 0.0, %v959
      %v961 = vpop.f32.mrb[0].mxu0
      %962 = vdwg.mxu0
      %v963 = vadd.f32 %v852, %v933
      %v964 = vadd.f32 %v853, %v936
      %v965 = vadd.f32 %v854, %v941
      %v966 = vadd.f32 %v855, %v944
      %v967 = vadd.f32 %v856, %v949
      %v968 = vadd.f32 %v857, %v952
      %v969 = vadd.f32 %v858, %v957
      %v970 = vadd.f32 %v859, %v960
      %v972 = vrot.slane %v294, 5
      %v973 = vrot.slane %v972, 4
      %v974 = vrot.slane %v295, 5
      %v975 = vsel %vm625, %v973, %v974
      %s976 = sadd.s32 5, %s298
      %s977 = smul.addr %s976, 2
      %s978 = scalar_lea.vmem %s1, %s977
      %v979 = vld [vmem:[%s978] sm:$0x3]
      %v980 = vunpack.c.l.b16 %v975
      %v981 = vpack.c.b16 %v664, %v663
      %v982 = vpack.c.b16 %v666, %v665
      %v983 = vpack.c.b16 %v668, %v667
      %v984 = vpack.c.b16 %v980, %v669
      %v986 = vsel %vm433, %v981, 0
      %v989 = vsel %vm433, %v982, 0
      %v992 = vsel %vm433, %v983, 0
      %v995 = vsel %vm433, %v984, 0
      %v998 = vsel %vm446, %v979, 0
      %1000 = vmatprep.subr.bf16.mxu0 0
      %1001 = vmatpush1.bf16.msra.mxu0 %v998
      %1002 = vmatprep.subr.bf16.mxu0 0
      %1003 = vmatpush1.bf16.msra.mxu0 0
      %1004 = vmatprep.subr.bf16.mxu0 0
      %1005 = vmatpush1.bf16.msra.mxu0 0
      %1006 = vmatprep.subr.bf16.mxu0 0
      %1007 = vmatpush1.bf16.msra.mxu0 0
      %1008 = vmatprep.subr.bf16.mxu0 0
      %1009 = vmatpush1.bf16.msra.mxu0 0
      %1010 = vmatprep.subr.bf16.mxu0 0
      %1011 = vmatpush1.bf16.msra.mxu0 0
      %1012 = vmatprep.subr.bf16.mxu0 0
      %1013 = vmatpush1.bf16.msra.mxu0 0
      %1014 = vmatprep.subr.bf16.mxu0 0
      %1015 = vmatpush1.bf16.msra.mxu0 0
      %1016 = vmatprep.subr.bf16.mxu0 0
      %1017 = vmatpush1.bf16.msra.mxu0 0
      %1018 = vmatprep.subr.bf16.mxu0 0
      %1019 = vmatpush1.bf16.msra.mxu0 0
      %1020 = vmatprep.subr.bf16.mxu0 0
      %1021 = vmatpush1.bf16.msra.mxu0 0
      %1022 = vmatprep.subr.bf16.mxu0 0
      %1023 = vmatpush1.bf16.msra.mxu0 0
      %1024 = vmatprep.subr.bf16.mxu0 0
      %1025 = vmatpush1.bf16.msra.mxu0 0
      %1026 = vmatprep.subr.bf16.mxu0 0
      %1027 = vmatpush1.bf16.msra.mxu0 0
      %1028 = vmatprep.subr.bf16.mxu0 0
      %1029 = vmatpush1.bf16.msra.mxu0 0
      %1030 = vmatprep.subr.bf16.mxu0 0
      %1031 = vmatpush1.bf16.msra.mxu0 0
      %1032 = vmatprep.mubr.bf16.mxu0 0
      %1033 = vmatmul.mubr.bf16.gmra.mrb[0].mxu0 %v986
      %v1034 = vpop.f32.mrb[0].mxu0
      %v1035 = vadd.f32 0.0, %v1034
      %v1036 = vpop.f32.mrb[0].mxu0
      %v1037 = vpop.f32.mrb[0].mxu0
      %v1038 = vadd.f32 0.0, %v1037
      %v1039 = vpop.f32.mrb[0].mxu0
      %1040 = vmatprep.mubr.bf16.mxu0 0
      %1041 = vmatmul.mubr.bf16.gmra.mrb[0].mxu0 %v989
      %v1042 = vpop.f32.mrb[0].mxu0
      %v1043 = vadd.f32 0.0, %v1042
      %v1044 = vpop.f32.mrb[0].mxu0
      %v1045 = vpop.f32.mrb[0].mxu0
      %v1046 = vadd.f32 0.0, %v1045
      %v1047 = vpop.f32.mrb[0].mxu0
      %1048 = vmatprep.mubr.bf16.mxu0 0
      %1049 = vmatmul.mubr.bf16.gmra.mrb[0].mxu0 %v992
      %v1050 = vpop.f32.mrb[0].mxu0
      %v1051 = vadd.f32 0.0, %v1050
      %v1052 = vpop.f32.mrb[0].mxu0
      %v1053 = vpop.f32.mrb[0].mxu0
      %v1054 = vadd.f32 0.0, %v1053
      %v1055 = vpop.f32.mrb[0].mxu0
      %1056 = vmatprep.mubr.bf16.mxu0 0
      %1057 = vmatmul.mubr.bf16.gmra.mrb[0].mxu0 %v995
      %v1058 = vpop.f32.mrb[0].mxu0
      %v1059 = vadd.f32 0.0, %v1058
      %v1060 = vpop.f32.mrb[0].mxu0
      %v1061 = vpop.f32.mrb[0].mxu0
      %v1062 = vadd.f32 0.0, %v1061
      %v1063 = vpop.f32.mrb[0].mxu0
      %1064 = vdwg.mxu0
      %v1065 = vadd.f32 %v963, %v1035
      %v1066 = vadd.f32 %v964, %v1038
      %v1067 = vadd.f32 %v965, %v1043
      %v1068 = vadd.f32 %v966, %v1046
      %v1069 = vadd.f32 %v967, %v1051
      %v1070 = vadd.f32 %v968, %v1054
      %v1071 = vadd.f32 %v969, %v1059
      %v1072 = vadd.f32 %v970, %v1062
      %s1073 = sadd.s32 6, %s298
      %s1074 = smul.addr %s1073, 2
      %s1075 = scalar_lea.vmem %s1, %s1074
      %v1076 = vld [vmem:[%s1075] sm:$0x3]
      %v1078 = vunpack.c.l.b16 %v296
      %v1079 = vpack.c.b16 %v1078, %v767
      %v1081 = vsel %vm433, %v1079, 0
      %v1084 = vsel %vm446, %v1076, 0
      %1086 = vmatprep.subr.bf16.mxu0 0
      %1087 = vmatpush1.bf16.msra.mxu0 %v1084
      %1088 = vmatprep.subr.bf16.mxu0 0
      %1089 = vmatpush1.bf16.msra.mxu0 0
      %1090 = vmatprep.subr.bf16.mxu0 0
      %1091 = vmatpush1.bf16.msra.mxu0 0
      %1092 = vmatprep.subr.bf16.mxu0 0
      %1093 = vmatpush1.bf16.msra.mxu0 0
      %1094 = vmatprep.subr.bf16.mxu0 0
      %1095 = vmatpush1.bf16.msra.mxu0 0
      %1096 = vmatprep.subr.bf16.mxu0 0
      %1097 = vmatpush1.bf16.msra.mxu0 0
      %1098 = vmatprep.subr.bf16.mxu0 0
      %1099 = vmatpush1.bf16.msra.mxu0 0
      %1100 = vmatprep.subr.bf16.mxu0 0
      %1101 = vmatpush1.bf16.msra.mxu0 0
      %1102 = vmatprep.subr.bf16.mxu0 0
      %1103 = vmatpush1.bf16.msra.mxu0 0
      %1104 = vmatprep.subr.bf16.mxu0 0
      %1105 = vmatpush1.bf16.msra.mxu0 0
      %1106 = vmatprep.subr.bf16.mxu0 0
      %1107 = vmatpush1.bf16.msra.mxu0 0
      %1108 = vmatprep.subr.bf16.mxu0 0
      %1109 = vmatpush1.bf16.msra.mxu0 0
      %1110 = vmatprep.subr.bf16.mxu0 0
      %1111 = vmatpush1.bf16.msra.mxu0 0
      %1112 = vmatprep.subr.bf16.mxu0 0
      %1113 = vmatpush1.bf16.msra.mxu0 0
      %1114 = vmatprep.subr.bf16.mxu0 0
      %1115 = vmatpush1.bf16.msra.mxu0 0
      %1116 = vmatprep.subr.bf16.mxu0 0
      %1117 = vmatpush1.bf16.msra.mxu0 0
      %1118 = vmatprep.mubr.bf16.mxu0 0
      %1119 = vmatmul.mubr.bf16.gmra.mrb[0].mxu0 %v539
      %v1120 = vpop.f32.mrb[0].mxu0
      %v1121 = vadd.f32 0.0, %v1120
      %v1122 = vpop.f32.mrb[0].mxu0
      %v1123 = vpop.f32.mrb[0].mxu0
      %v1124 = vadd.f32 0.0, %v1123
      %v1125 = vpop.f32.mrb[0].mxu0
      %1126 = vmatprep.mubr.bf16.mxu0 0
      %1127 = vmatmul.mubr.bf16.gmra.mrb[0].mxu0 %v542
      %v1128 = vpop.f32.mrb[0].mxu0
      %v1129 = vadd.f32 0.0, %v1128
      %v1130 = vpop.f32.mrb[0].mxu0
      %v1131 = vpop.f32.mrb[0].mxu0
      %v1132 = vadd.f32 0.0, %v1131
      %v1133 = vpop.f32.mrb[0].mxu0
      %1134 = vmatprep.mubr.bf16.mxu0 0
      %1135 = vmatmul.mubr.bf16.gmra.mrb[0].mxu0 %v545
      %v1136 = vpop.f32.mrb[0].mxu0
      %v1137 = vadd.f32 0.0, %v1136
      %v1138 = vpop.f32.mrb[0].mxu0
      %v1139 = vpop.f32.mrb[0].mxu0
      %v1140 = vadd.f32 0.0, %v1139
      %v1141 = vpop.f32.mrb[0].mxu0
      %1142 = vmatprep.mubr.bf16.mxu0 0
      %1143 = vmatmul.mubr.bf16.gmra.mrb[0].mxu0 %v1081
      %v1144 = vpop.f32.mrb[0].mxu0
      %v1145 = vadd.f32 0.0, %v1144
      %v1146 = vpop.f32.mrb[0].mxu0
      %v1147 = vpop.f32.mrb[0].mxu0
      %v1148 = vadd.f32 0.0, %v1147
      %v1149 = vpop.f32.mrb[0].mxu0
      %1150 = vdwg.mxu0
      %v1151 = vadd.f32 %v1065, %v1121
      %v1152 = vadd.f32 %v1066, %v1124
      %v1153 = vadd.f32 %v1067, %v1129
      %v1154 = vadd.f32 %v1068, %v1132
      %v1155 = vadd.f32 %v1069, %v1137
      %v1156 = vadd.f32 %v1070, %v1140
      %v1157 = vadd.f32 %v1071, %v1145
      %v1158 = vadd.f32 %v1072, %v1148
      %v1160 = vshrl.u32 %v296, 16
      %v1162 = vrot.slane %v1160, 4
      %v1163 = vshll.u32 %v296, 16
      %v1165 = vrot.slane %v1163, 5
      %v1166 = vor.u32 %v1162, %v1165
      %v1167 = vrot.slane %v1166, 4
      %v1169 = vshll.u32 %v297, 16
      %v1171 = vrot.slane %v1169, 5
      %v1172 = vsel %vm304, %v1167, %v1171
      %s1173 = sadd.s32 7, %s298
      %s1174 = smul.addr %s1173, 2
      %s1175 = scalar_lea.vmem %s1, %s1174
      %v1176 = vld [vmem:[%s1175] sm:$0x3]
      %v1177 = vunpack.c.l.b16 %v1172
      %v1178 = vpack.c.b16 %v1177, %v878
      %v1180 = vsel %vm433, %v1178, 0
      %v1183 = vsel %vm446, %v1176, 0
      %1185 = vmatprep.subr.bf16.mxu0 0
      %1186 = vmatpush1.bf16.msra.mxu0 %v1183
      %1187 = vmatprep.subr.bf16.mxu0 0
      %1188 = vmatpush1.bf16.msra.mxu0 0
      %1189 = vmatprep.subr.bf16.mxu0 0
      %1190 = vmatpush1.bf16.msra.mxu0 0
      %1191 = vmatprep.subr.bf16.mxu0 0
      %1192 = vmatpush1.bf16.msra.mxu0 0
      %1193 = vmatprep.subr.bf16.mxu0 0
      %1194 = vmatpush1.bf16.msra.mxu0 0
      %1195 = vmatprep.subr.bf16.mxu0 0
      %1196 = vmatpush1.bf16.msra.mxu0 0
      %1197 = vmatprep.subr.bf16.mxu0 0
      %1198 = vmatpush1.bf16.msra.mxu0 0
      %1199 = vmatprep.subr.bf16.mxu0 0
      %1200 = vmatpush1.bf16.msra.mxu0 0
      %1201 = vmatprep.subr.bf16.mxu0 0
      %1202 = vmatpush1.bf16.msra.mxu0 0
      %1203 = vmatprep.subr.bf16.mxu0 0
      %1204 = vmatpush1.bf16.msra.mxu0 0
      %1205 = vmatprep.subr.bf16.mxu0 0
      %1206 = vmatpush1.bf16.msra.mxu0 0
      %1207 = vmatprep.subr.bf16.mxu0 0
      %1208 = vmatpush1.bf16.msra.mxu0 0
      %1209 = vmatprep.subr.bf16.mxu0 0
      %1210 = vmatpush1.bf16.msra.mxu0 0
      %1211 = vmatprep.subr.bf16.mxu0 0
      %1212 = vmatpush1.bf16.msra.mxu0 0
      %1213 = vmatprep.subr.bf16.mxu0 0
      %1214 = vmatpush1.bf16.msra.mxu0 0
      %1215 = vmatprep.subr.bf16.mxu0 0
      %1216 = vmatpush1.bf16.msra.mxu0 0
      %1217 = vmatprep.mubr.bf16.mxu0 0
      %1218 = vmatmul.mubr.bf16.gmra.mrb[0].mxu0 %v438
      %v1219 = vpop.f32.mrb[0].mxu0
      %v1220 = vadd.f32 0.0, %v1219
      %v1221 = vpop.f32.mrb[0].mxu0
      %v1222 = vpop.f32.mrb[0].mxu0
      %v1223 = vadd.f32 0.0, %v1222
      %v1224 = vpop.f32.mrb[0].mxu0
      %1225 = vmatprep.mubr.bf16.mxu0 0
      %1226 = vmatmul.mubr.bf16.gmra.mrb[0].mxu0 %v441
      %v1227 = vpop.f32.mrb[0].mxu0
      %v1228 = vadd.f32 0.0, %v1227
      %v1229 = vpop.f32.mrb[0].mxu0
      %v1230 = vpop.f32.mrb[0].mxu0
      %v1231 = vadd.f32 0.0, %v1230
      %v1232 = vpop.f32.mrb[0].mxu0
      %1233 = vmatprep.mubr.bf16.mxu0 0
      %1234 = vmatmul.mubr.bf16.gmra.mrb[0].mxu0 %v444
      %v1235 = vpop.f32.mrb[0].mxu0
      %v1236 = vadd.f32 0.0, %v1235
      %v1237 = vpop.f32.mrb[0].mxu0
      %v1238 = vpop.f32.mrb[0].mxu0
      %v1239 = vadd.f32 0.0, %v1238
      %v1240 = vpop.f32.mrb[0].mxu0
      %1241 = vmatprep.mubr.bf16.mxu0 0
      %1242 = vmatmul.mubr.bf16.gmra.mrb[0].mxu0 %v1180
      %v1243 = vpop.f32.mrb[0].mxu0
      %v1244 = vadd.f32 0.0, %v1243
      %v1245 = vpop.f32.mrb[0].mxu0
      %v1246 = vpop.f32.mrb[0].mxu0
      %v1247 = vadd.f32 0.0, %v1246
      %v1248 = vpop.f32.mrb[0].mxu0
      %1249 = vdwg.mxu0
      %v1250 = vadd.f32 %v1151, %v1220
      %v1251 = vadd.f32 %v1152, %v1223
      %v1252 = vadd.f32 %v1153, %v1228
      %v1253 = vadd.f32 %v1154, %v1231
      %v1254 = vadd.f32 %v1155, %v1236
      %v1255 = vadd.f32 %v1156, %v1239
      %v1256 = vadd.f32 %v1157, %v1244
      %v1257 = vadd.f32 %v1158, %v1247
      %v1259 = vrot.slane %v296, 5
      %v1260 = vrot.slane %v1259, 4
      %v1261 = vrot.slane %v297, 5
      %v1262 = vsel %vm625, %v1260, %v1261
      %s1263 = sadd.s32 8, %s298
      %s1264 = smul.addr %s1263, 2
      %s1265 = scalar_lea.vmem %s1, %s1264
      %v1266 = vld [vmem:[%s1265] sm:$0x3]
      %v1267 = vunpack.c.l.b16 %v1262
      %v1268 = vpack.c.b16 %v1267, %v980
      %v1270 = vsel %vm433, %v1268, 0
      %v1273 = vsel %vm446, %v1266, 0
      %1275 = vmatprep.subr.bf16.mxu0 0
      %1276 = vmatpush1.bf16.msra.mxu0 %v1273
      %1277 = vmatprep.subr.bf16.mxu0 0
      %1278 = vmatpush1.bf16.msra.mxu0 0
      %1279 = vmatprep.subr.bf16.mxu0 0
      %1280 = vmatpush1.bf16.msra.mxu0 0
      %1281 = vmatprep.subr.bf16.mxu0 0
      %1282 = vmatpush1.bf16.msra.mxu0 0
      %1283 = vmatprep.subr.bf16.mxu0 0
      %1284 = vmatpush1.bf16.msra.mxu0 0
      %1285 = vmatprep.subr.bf16.mxu0 0
      %1286 = vmatpush1.bf16.msra.mxu0 0
      %1287 = vmatprep.subr.bf16.mxu0 0
      %1288 = vmatpush1.bf16.msra.mxu0 0
      %1289 = vmatprep.subr.bf16.mxu0 0
      %1290 = vmatpush1.bf16.msra.mxu0 0
      %1291 = vmatprep.subr.bf16.mxu0 0
      %1292 = vmatpush1.bf16.msra.mxu0 0
      %1293 = vmatprep.subr.bf16.mxu0 0
      %1294 = vmatpush1.bf16.msra.mxu0 0
      %1295 = vmatprep.subr.bf16.mxu0 0
      %1296 = vmatpush1.bf16.msra.mxu0 0
      %1297 = vmatprep.subr.bf16.mxu0 0
      %1298 = vmatpush1.bf16.msra.mxu0 0
      %1299 = vmatprep.subr.bf16.mxu0 0
      %1300 = vmatpush1.bf16.msra.mxu0 0
      %1301 = vmatprep.subr.bf16.mxu0 0
      %1302 = vmatpush1.bf16.msra.mxu0 0
      %1303 = vmatprep.subr.bf16.mxu0 0
      %1304 = vmatpush1.bf16.msra.mxu0 0
      %1305 = vmatprep.subr.bf16.mxu0 0
      %1306 = vmatpush1.bf16.msra.mxu0 0
      %1307 = vmatprep.mubr.bf16.mxu0 0
      %1308 = vmatmul.mubr.bf16.gmra.mrb[0].mxu0 %v678
      %v1309 = vpop.f32.mrb[0].mxu0
      %v1310 = vadd.f32 0.0, %v1309
      %v1311 = vpop.f32.mrb[0].mxu0
      %v1312 = vpop.f32.mrb[0].mxu0
      %v1313 = vadd.f32 0.0, %v1312
      %v1314 = vpop.f32.mrb[0].mxu0
      %1315 = vmatprep.mubr.bf16.mxu0 0
      %1316 = vmatmul.mubr.bf16.gmra.mrb[0].mxu0 %v681
      %v1317 = vpop.f32.mrb[0].mxu0
      %v1318 = vadd.f32 0.0, %v1317
      %v1319 = vpop.f32.mrb[0].mxu0
      %v1320 = vpop.f32.mrb[0].mxu0
      %v1321 = vadd.f32 0.0, %v1320
      %v1322 = vpop.f32.mrb[0].mxu0
      %1323 = vmatprep.mubr.bf16.mxu0 0
      %1324 = vmatmul.mubr.bf16.gmra.mrb[0].mxu0 %v684
      %v1325 = vpop.f32.mrb[0].mxu0
      %v1326 = vadd.f32 0.0, %v1325
      %v1327 = vpop.f32.mrb[0].mxu0
      %v1328 = vpop.f32.mrb[0].mxu0
      %v1329 = vadd.f32 0.0, %v1328
      %v1330 = vpop.f32.mrb[0].mxu0
      %1331 = vmatprep.mubr.bf16.mxu0 0
      %1332 = vmatmul.mubr.bf16.gmra.mrb[0].mxu0 %v1270
      %v1333 = vpop.f32.mrb[0].mxu0
      %v1334 = vadd.f32 0.0, %v1333
      %v1335 = vpop.f32.mrb[0].mxu0
      %v1336 = vpop.f32.mrb[0].mxu0
      %v1337 = vadd.f32 0.0, %v1336
      %v1338 = vpop.f32.mrb[0].mxu0
      %1339 = vdwg.mxu0
      %v1340 = vadd.f32 %v1250, %v1310
      %v1341 = vadd.f32 %v1251, %v1313
      %v1342 = vadd.f32 %v1252, %v1318
      %v1343 = vadd.f32 %v1253, %v1321
      %v1344 = vadd.f32 %v1254, %v1326
      %v1345 = vadd.f32 %v1255, %v1329
      %v1346 = vadd.f32 %v1256, %v1334
      %v1347 = vadd.f32 %v1257, %v1337
      %v1348 = vld [vmem:[#allocation2] sm:$0xff]
      %v1349 = vld [vmem:[#allocation2 + $0x8] sm:$0xff]
      %v1350 = vld [vmem:[#allocation2 + $0x10] sm:$0xff]
      %v1351 = vld [vmem:[#allocation2 + $0x18] sm:$0xff]
      %v1352 = vld [vmem:[#allocation2 + $0x20] sm:$0xff]
      %v1353 = vld [vmem:[#allocation2 + $0x28] sm:$0xff]
      %v1354 = vld [vmem:[#allocation2 + $0x30] sm:$0xff]
      %v1355 = vld [vmem:[#allocation2 + $0x38] sm:$0xff]
      %v1356 = vadd.f32 %v1348, %v1340
      %v1357 = vadd.f32 %v1349, %v1341
      %v1358 = vadd.f32 %v1350, %v1342
      %v1359 = vadd.f32 %v1351, %v1343
      %v1360 = vadd.f32 %v1352, %v1344
      %v1361 = vadd.f32 %v1353, %v1345
      %v1362 = vadd.f32 %v1354, %v1346
      %v1363 = vadd.f32 %v1355, %v1347
      %1364 = vst [vmem:[#allocation2] sm:$0xff] %v1356
      %1365 = vst [vmem:[#allocation2 + $0x8] sm:$0xff] %v1357
      %1366 = vst [vmem:[#allocation2 + $0x10] sm:$0xff] %v1358
      %1367 = vst [vmem:[#allocation2 + $0x18] sm:$0xff] %v1359
      %1368 = vst [vmem:[#allocation2 + $0x20] sm:$0xff] %v1360
      %1369 = vst [vmem:[#allocation2 + $0x28] sm:$0xff] %v1361
      %1370 = vst [vmem:[#allocation2 + $0x30] sm:$0xff] %v1362
      %1371 = vst [vmem:[#allocation2 + $0x38] sm:$0xff] %v1363
      %p1372 = scmp.eq.s32.totalorder %s23, 2
      // Predicated region
      $region41: #{encoder3d_forward.6} parent=31 // pred_check
        %p1373 = pneg %p1372
      $region42: #{encoder3d_forward.6} parent=31 // pred_check_branch
        %1375 = sbr.rel (%p1373) target = $region44
      $region43: #{encoder3d_forward.6} parent=31 // pred_region
        %v1376 = vld [vmem:[#allocation2] sm:$0xff]
        %v1377 = vld [vmem:[#allocation2 + $0x8] sm:$0xff]
        %v1378 = vld [vmem:[#allocation2 + $0x10] sm:$0xff]
        %v1379 = vld [vmem:[#allocation2 + $0x18] sm:$0xff]
        %v1380 = vld [vmem:[#allocation2 + $0x20] sm:$0xff]
        %v1381 = vld [vmem:[#allocation2 + $0x28] sm:$0xff]
        %v1382 = vld [vmem:[#allocation2 + $0x30] sm:$0xff]
        %v1383 = vld [vmem:[#allocation2 + $0x38] sm:$0xff]
        %v1384 = vld [vmem:[%s2] sm:$0x1]
        %v1386 = vlaneseq
        %v1387 = vshrl.u32 %v1386, 7
        %v1388 = vsub.s32 0, %v1387
        %v1389 = vrot.slane %v1384, %v1388
        %v1391 = vadd.f32 %v1376, %v1389
        %v1392 = vadd.f32 %v1377, %v1389
        %v1393 = vadd.f32 %v1378, %v1389
        %v1394 = vadd.f32 %v1379, %v1389
        %v1395 = vadd.f32 %v1380, %v1389
        %v1396 = vadd.f32 %v1381, %v1389
        %v1397 = vadd.f32 %v1382, %v1389
        %v1398 = vadd.f32 %v1383, %v1389
        %1399 = vst [vmem:[%s254] sm:$0xff] %v1391
        %1400 = vst [vmem:[%s254 + $0x8] sm:$0xff] %v1392
        %1401 = vst [vmem:[%s254 + $0x10] sm:$0xff] %v1393
        %1402 = vst [vmem:[%s254 + $0x18] sm:$0xff] %v1394
        %1403 = vst [vmem:[%s254 + $0x20] sm:$0xff] %v1395
        %1404 = vst [vmem:[%s254 + $0x28] sm:$0xff] %v1396
        %1405 = vst [vmem:[%s254 + $0x30] sm:$0xff] %v1397
        %1406 = vst [vmem:[%s254 + $0x38] sm:$0xff] %v1398
        %v1407 = vadd.f32 %v1391, %v1392
        %v1408 = vadd.f32 %v1407, %v1393
        %v1409 = vadd.f32 %v1408, %v1394
        %v1410 = vadd.f32 %v1409, %v1395
        %v1411 = vadd.f32 %v1410, %v1396
        %v1412 = vadd.f32 %v1411, %v1397
        %v1413 = vadd.f32 %v1412, %v1398
        %v1414 = vrot.slane %v1413, 4
        %v1415 = vadd.f32 %v1413, %v1414
        %v1416 = vrot.slane %v1415, 2
        %v1417 = vadd.f32 %v1415, %v1416
        %v1418 = vrot.slane %v1417, 1
        %v1419 = vadd.f32 %v1417, %v1418
        %v1420 = vmul.f32 %v1391, %v1391
        %v1421 = vmul.f32 %v1392, %v1392
        %v1422 = vmul.f32 %v1393, %v1393
        %v1423 = vmul.f32 %v1394, %v1394
        %v1424 = vmul.f32 %v1395, %v1395
        %v1425 = vmul.f32 %v1396, %v1396
        %v1426 = vmul.f32 %v1397, %v1397
        %v1427 = vmul.f32 %v1398, %v1398
        %v1428 = vadd.f32 %v1420, %v1421
        %v1429 = vadd.f32 %v1428, %v1422
        %v1430 = vadd.f32 %v1429, %v1423
        %v1431 = vadd.f32 %v1430, %v1424
        %v1432 = vadd.f32 %v1431, %v1425
        %v1433 = vadd.f32 %v1432, %v1426
        %v1434 = vadd.f32 %v1433, %v1427
        %v1435 = vrot.slane %v1434, 4
        %v1436 = vadd.f32 %v1434, %v1435
        %v1437 = vrot.slane %v1436, 2
        %v1438 = vadd.f32 %v1436, %v1437
        %v1439 = vrot.slane %v1438, 1
        %v1440 = vadd.f32 %v1438, %v1439
        %v1441 = vld [vmem:[%s258] sm:$0xff]
        %vm1442 = vcmask 1040384
        %v1443 = vsel %vm1442, %v1419, %v1440
        %v1444 = vsel %vm446, %v1443, 0.0
        %v1445 = vadd.f32 %v1441, %v1444
        %1446 = vst [vmem:[%s258] sm:$0xff] %v1445
      $region44: #{encoder3d_forward.6} parent=31 // pred_fallthru
        _
      %p1447 = scmp.lt.s32.totalorder %s21, 1
      %s1448 = scalar_select %p1447, %s21, 1
      %p1449 = scmp.lt.s32.totalorder %s22, 7
      %s1450 = scalar_select %p1449, %s22, 7
      %s1451 = smul.addr %s1450, 8
      %s1452 = smul.addr %s1448, 64
      %s1453 = sadd.s32 %s1451, %s1452
      %s1454 = smul.addr %s1453, 8
      %s1455 = scalar_lea.vmem %s3, %s1454
      %p1456 = scmp.lt.s32.totalorder %s21, 1
      %s1457 = scalar_select %p1456, %s21, 1
      %s1458 = smul.addr %s1457, 8
      %s1459 = scalar_lea.vmem %s4, %s1458
      // Predicated region
      $region45: #{encoder3d_forward.6} parent=31 // pred_check
        %p1460 = pneg %p127
      $region46: #{encoder3d_forward.6} parent=31 // pred_check_branch
        %1462 = sbr.rel (%p1460) target = $region48
      $region47: #{encoder3d_forward.6} parent=31 // pred_region
        _
      $region48: #{encoder3d_forward.6} parent=31 // pred_fallthru
        _
      // Predicated region
      $region49: #{encoder3d_forward.6} parent=31 // pred_check
        %p1463 = pneg %p153
      $region50: #{encoder3d_forward.6} parent=31 // pred_check_branch
        %1465 = sbr.rel (%p1463) target = $region52
      $region51: #{encoder3d_forward.6} parent=31 // pred_region
        _
      $region52: #{encoder3d_forward.6} parent=31 // pred_fallthru
        _
    $region32: #{encoder3d_forward.6} parent=5 // pred_fallthru
      _
    %p1466 = scmp.le.s32.totalorder 2, %s11
    // Predicated region
    $region53: #{encoder3d_forward.6} parent=5 // pred_check
      %p1467 = pneg %p1466
    $region54: #{encoder3d_forward.6} parent=5 // pred_check_branch
      %1469 = sbr.rel (%p1467) target = $region56
    $region55: #{encoder3d_forward.6} parent=5 // pred_region
      %s1470 = ssub.s32 %s11, 2
      // Predicated region
      $region57: #{encoder3d_forward.6} parent=55 // pred_check
        %p1471 = pneg %p133
      $region58: #{encoder3d_forward.6} parent=55 // pred_check_branch
        %1473 = sbr.rel (%p1471) target = $region60
      $region59: #{encoder3d_forward.6} parent=55 // pred_region
        %p1474 = scmp.lt.s32.totalorder %s24, 1
        %s1475 = scalar_select %p1474, %s24, 1
        %p1476 = scmp.lt.s32.totalorder %s25, 7
        %s1477 = scalar_select %p1476, %s25, 7
        %s1478 = smul.addr %s1477, 8
        %s1479 = smul.addr %s1475, 64
        %s1480 = sadd.s32 %s1478, %s1479
        %s1481 = smul.addr %s1480, 8
        %s1482 = scalar_lea.vmem %s3, %s1481
      $region60: #{encoder3d_forward.6} parent=55 // pred_fallthru
        _
      // Predicated region
      $region61: #{encoder3d_forward.6} parent=55 // pred_check
        %p1483 = pneg %p159
      $region62: #{encoder3d_forward.6} parent=55 // pred_check_branch
        %1485 = sbr.rel (%p1483) target = $region64
      $region63: #{encoder3d_forward.6} parent=55 // pred_region
        %p1486 = scmp.lt.s32.totalorder %s24, 1
        %s1487 = scalar_select %p1486, %s24, 1
        %s1488 = smul.addr %s1487, 8
        %s1489 = scalar_lea.vmem %s4, %s1488
      $region64: #{encoder3d_forward.6} parent=55 // pred_fallthru
        _
    $region56: #{encoder3d_forward.6} parent=5 // pred_fallthru
      _
  $region6: #{encoder3d_forward.6} parent=0 // loop_footer
    %s15 = sadd.s32 1, %s11
  $region7: #{encoder3d_forward.6} parent=0 // loop_footer_branch
    %10 = sbr.rel target = $region3
  $region8: #{encoder3d_forward.6} parent=0 // loop_exit
    _

// kernel: encoder3d_forward.7
$region0: #{encoder3d_forward.7}
  #allocation0 [shape = 'u32[]', space=smem, size = 0x4, offset = 0x4, fixed_abs, tag = 'smem constant byte address 0x4 - core index']
  #allocation1 [shape = 'u32[144,128]{1,0:T(1,128)}', space=vmem, size = 0x12000, scoped, tag = 'internal scratch']
  %s0 = inlined_call_operand.vmem [shape: f32[2,8,64,128], index: 0, kind: input, shape index: {}]
  %s1 = inlined_call_operand.vmem [shape: f32[1,128], index: 1, kind: input, shape index: {}]
  %s2 = inlined_call_operand.vmem [shape: f32[1,128], index: 2, kind: input, shape index: {}]
  %s3 = inlined_call_operand.vmem [shape: f32[2,8,64,128], index: 3, kind: output, shape index: {}]
  %s4 = sld [smem:[#allocation0]]
  $region45: #{encoder3d_forward.7} parent=0
    _
  %s6 = ssub.s32 1, %s4
  %s7 = scalar_select 0, %s6, %s4
  loop: start=0, step=1, limit=18
  $region2: #{encoder3d_forward.7} parent=0 // loop_pre_header
    _
  $region3: #{encoder3d_forward.7} parent=0 // loop_header
    %s9 = sphi 0, %s13
    %p10 = scmp.ge.s32.totalorder %s9, 18
    %s16 = sphi 0, %s28
    %s17 = sphi 0, %s24
    %s18 = sphi 0, %s16
    %s19 = sphi 0, %s17
    %s20 = sphi 0, %s18
    %s21 = sphi 0, %s19
    %s33 = sphi 0, %s35
    %s36 = sphi 0, %s33
    %s37 = sphi 0, %s36
    %s53 = sphi 0, %s37
    %s57 = sphi 0, %s57
    %s59 = sphi 0, %s57
    %s60 = sphi 0, %s59
    %s74 = sphi 0, %s60
    %s78 = sphi 0, %s78
    %s80 = sphi 0, %s78
    %s81 = sphi 0, %s80
    %s95 = sphi 0, %s81
    %s103 = sphi 0, %s105
    %s106 = sphi 0, %s103
    %s107 = sphi 0, %s106
    %s123 = sphi 0, %s107
  $region4: #{encoder3d_forward.7} parent=0 // loop_header_branch
    %12 = sbr.rel (%p10) target = $region8
  $region5: #{encoder3d_forward.7} parent=0 // loop_body
    %s14 = ssub.s32 %s9, 1
    %s15 = ssub.s32 %s9, 2
    %s22 = sadd.s32 1, %s17
    %p23 = scmp.ge.s32.totalorder %s22, 8
    %s24 = scalar_select %p23, 0, %s22
    %s25 = sadd.s32 1, %s16
    %s26 = scalar_select %p23, %s25, %s16
    %p27 = scmp.ge.s32.totalorder %s26, 2
    %s28 = scalar_select %p27, 0, %s26
    %s29 = ssub.s32 %s16, %s28
    %s30 = ssub.s32 %s17, %s24
    %s31 = sor.u32 %s29, %s30
    %p32 = scmp.eq.s32.totalorder %s31, 0
    %s34 = sadd.s32 %s33, 1
    %s35 = scalar_select %p32, %s33, %s34
    %p38 = pneg %p32
    %p39 = scmp.eq.s32.totalorder %s9, 15
    %p40 = por %p38, %p39
    %p41 = scmp.ne.s32.totalorder %s33, %s36
    %p42 = scmp.eq.s32.totalorder %s9, 0
    %p43 = por %p41, %p42
    %p44 = scmp.ne.s32.totalorder %s33, %s36
    %p45 = scmp.eq.s32.totalorder %s14, 15
    %p46 = por %p44, %p45
    %p47 = scmp.ne.s32.totalorder %s36, %s37
    %p48 = scmp.eq.s32.totalorder %s14, 0
    %p49 = por %p47, %p48
    %p50 = scmp.ne.s32.totalorder %s36, %s37
    %p51 = scmp.eq.s32.totalorder %s15, 15
    %p52 = por %p50, %p51
    %p54 = scmp.ne.s32.totalorder %s37, %s53
    %p55 = scmp.eq.s32.totalorder %s15, 0
    %p56 = por %p54, %p55
    %s58 = sadd.s32 %s57, 1
    %p61 = scmp.eq.s32.totalorder %s9, 15
    %p62 = scmp.ne.s32.totalorder %s57, %s59
    %p63 = scmp.eq.s32.totalorder %s9, 0
    %p64 = por %p62, %p63
    %p65 = scmp.ne.s32.totalorder %s57, %s59
    %p66 = scmp.eq.s32.totalorder %s14, 15
    %p67 = por %p65, %p66
    %p68 = scmp.ne.s32.totalorder %s59, %s60
    %p69 = scmp.eq.s32.totalorder %s14, 0
    %p70 = por %p68, %p69
    %p71 = scmp.ne.s32.totalorder %s59, %s60
    %p72 = scmp.eq.s32.totalorder %s15, 15
    %p73 = por %p71, %p72
    %p75 = scmp.ne.s32.totalorder %s60, %s74
    %p76 = scmp.eq.s32.totalorder %s15, 0
    %p77 = por %p75, %p76
    %s79 = sadd.s32 %s78, 1
    %p82 = scmp.eq.s32.totalorder %s9, 15
    %p83 = scmp.ne.s32.totalorder %s78, %s80
    %p84 = scmp.eq.s32.totalorder %s9, 0
    %p85 = por %p83, %p84
    %p86 = scmp.ne.s32.totalorder %s78, %s80
    %p87 = scmp.eq.s32.totalorder %s14, 15
    %p88 = por %p86, %p87
    %p89 = scmp.ne.s32.totalorder %s80, %s81
    %p90 = scmp.eq.s32.totalorder %s14, 0
    %p91 = por %p89, %p90
    %p92 = scmp.ne.s32.totalorder %s80, %s81
    %p93 = scmp.eq.s32.totalorder %s15, 15
    %p94 = por %p92, %p93
    %p96 = scmp.ne.s32.totalorder %s81, %s95
    %p97 = scmp.eq.s32.totalorder %s15, 0
    %p98 = por %p96, %p97
    %s99 = ssub.s32 %s16, %s28
    %s100 = ssub.s32 %s17, %s24
    %s101 = sor.u32 %s99, %s100
    %p102 = scmp.eq.s32.totalorder %s101, 0
    %s104 = sadd.s32 %s103, 1
    %s105 = scalar_select %p102, %s103, %s104
    %p108 = pneg %p102
    %p109 = scmp.eq.s32.totalorder %s9, 15
    %p110 = por %p108, %p109
    %p111 = scmp.ne.s32.totalorder %s103, %s106
    %p112 = scmp.eq.s32.totalorder %s9, 0
    %p113 = por %p111, %p112
    %p114 = scmp.ne.s32.totalorder %s103, %s106
    %p115 = scmp.eq.s32.totalorder %s14, 15
    %p116 = por %p114, %p115
    %p117 = scmp.ne.s32.totalorder %s106, %s107
    %p118 = scmp.eq.s32.totalorder %s14, 0
    %p119 = por %p117, %p118
    %p120 = scmp.ne.s32.totalorder %s106, %s107
    %p121 = scmp.eq.s32.totalorder %s15, 15
    %p122 = por %p120, %p121
    %p124 = scmp.ne.s32.totalorder %s107, %s123
    %p125 = scmp.eq.s32.totalorder %s15, 0
    %p126 = por %p124, %p125
    %p127 = scmp.le.s32.totalorder 1, %s9
    %p128 = scmp.lt.s32.totalorder %s9, 17
    %p129 = pnand %p127, %p128
    %p130 = pneg %p129
    // Predicated region
    $region9: #{encoder3d_forward.7} parent=5 // pred_check
      _
    $region10: #{encoder3d_forward.7} parent=5 // pred_check_branch
      %132 = sbr.rel (%p129) target = $region12
    $region11: #{encoder3d_forward.7} parent=5 // pred_region
      %s133 = ssub.s32 %s9, 1
      // Predicated region
      $region13: #{encoder3d_forward.7} parent=11 // pred_check
        %p134 = pneg %p70
      $region14: #{encoder3d_forward.7} parent=11 // pred_check_branch
        %136 = sbr.rel (%p134) target = $region16
      $region15: #{encoder3d_forward.7} parent=11 // pred_region
        _
      $region16: #{encoder3d_forward.7} parent=11 // pred_fallthru
        _
      // Predicated region
      $region17: #{encoder3d_forward.7} parent=11 // pred_check
        %p137 = pneg %p91
      $region18: #{encoder3d_forward.7} parent=11 // pred_check_branch
        %139 = sbr.rel (%p137) target = $region20
      $region19: #{encoder3d_forward.7} parent=11 // pred_region
        _
      $region20: #{encoder3d_forward.7} parent=11 // pred_fallthru
        _
    $region12: #{encoder3d_forward.7} parent=5 // pred_fallthru
      _
    %p140 = scmp.lt.s32.totalorder %s9, 16
    // Predicated region
    $region21: #{encoder3d_forward.7} parent=5 // pred_check
      %p141 = pneg %p140
    $region22: #{encoder3d_forward.7} parent=5 // pred_check_branch
      %143 = sbr.rel (%p141) target = $region24
    $region23: #{encoder3d_forward.7} parent=5 // pred_region
      // Predicated region
      $region25: #{encoder3d_forward.7} parent=23 // pred_check
        %p144 = pneg %p43
      $region26: #{encoder3d_forward.7} parent=23 // pred_check_branch
        %146 = sbr.rel (%p144) target = $region28
      $region27: #{encoder3d_forward.7} parent=23 // pred_region
        %p147 = scmp.lt.s32.totalorder %s16, 1
        %s148 = scalar_select %p147, %s16, 1
        %p149 = scmp.lt.s32.totalorder %s17, 7
        %s150 = scalar_select %p149, %s17, 7
        %s151 = smul.addr %s150, 8
        %s152 = smul.addr %s148, 64
        %s153 = sadd.s32 %s151, %s152
        %s154 = smul.addr %s153, 8
        %s155 = scalar_lea.vmem %s0, %s154
      $region28: #{encoder3d_forward.7} parent=23 // pred_fallthru
        _
    $region24: #{encoder3d_forward.7} parent=5 // pred_fallthru
      _
    %p156 = scmp.le.s32.totalorder 1, %s9
    %p157 = scmp.lt.s32.totalorder %s9, 17
    %p158 = pnand %p156, %p157
    %p159 = pneg %p158
    // Predicated region
    $region29: #{encoder3d_forward.7} parent=5 // pred_check
      _
    $region30: #{encoder3d_forward.7} parent=5 // pred_check_branch
      %161 = sbr.rel (%p158) target = $region32
    $region31: #{encoder3d_forward.7} parent=5 // pred_region
      %s162 = ssub.s32 %s9, 1
      %p163 = scmp.lt.s32.totalorder %s18, 1
      %s164 = scalar_select %p163, %s18, 1
      %p165 = scmp.lt.s32.totalorder %s19, 7
      %s166 = scalar_select %p165, %s19, 7
      %s167 = smul.addr %s166, 8
      %s168 = smul.addr %s164, 64
      %s169 = sadd.s32 %s167, %s168
      %s170 = smul.addr %s169, 8
      %s171 = scalar_lea.vmem %s0, %s170
      %p172 = pneg %p49
      %p173 = pneg %p46
      %p174 = pneg %p70
      %p175 = pneg %p67
      %p176 = pneg %p91
      %p177 = pneg %p88
      %p178 = pneg %p119
      %p179 = pneg %p116
      %p180 = scmp.lt.s32.totalorder %s18, 1
      %s181 = scalar_select %p180, %s18, 1
      %p182 = scmp.lt.s32.totalorder %s19, 7
      %s183 = scalar_select %p182, %s19, 7
      %s184 = smul.addr %s183, 8
      %s185 = smul.addr %s181, 64
      %s186 = sadd.s32 %s184, %s185
      %s187 = smul.addr %s186, 8
      %s188 = scalar_lea.vmem %s3, %s187
      %p189 = scmp.lt.s32.totalorder %s18, 1
      %s190 = scalar_select %p189, %s18, 1
      %p191 = scmp.lt.s32.totalorder %s19, 7
      %s192 = scalar_select %p191, %s19, 7
      %s193 = smul.addr %s192, 8
      %s194 = smul.addr %s190, 64
      %s195 = sadd.s32 %s193, %s194
      %s196 = smul.addr %s195, 8
      %s197 = scalar_lea.vmem %s0, %s196
      %p198 = scmp.lt.s32.totalorder %s18, 1
      %s199 = scalar_select %p198, %s18, 1
      %p200 = scmp.lt.s32.totalorder %s19, 7
      %s201 = scalar_select %p200, %s19, 7
      %s202 = smul.addr %s201, 8
      %s203 = smul.addr %s199, 64
      %s204 = sadd.s32 %s202, %s203
      %s205 = smul.addr %s204, 8
      %s206 = scalar_lea.vmem %s3, %s205
      %v207 = vld [vmem:[%s197] sm:$0xff]
      %v208 = vld [vmem:[%s197 + $0x8] sm:$0xff]
      %v209 = vld [vmem:[%s197 + $0x10] sm:$0xff]
      %v210 = vld [vmem:[%s197 + $0x18] sm:$0xff]
      %v211 = vld [vmem:[%s197 + $0x20] sm:$0xff]
      %v212 = vld [vmem:[%s197 + $0x28] sm:$0xff]
      %v213 = vld [vmem:[%s197 + $0x30] sm:$0xff]
      %v214 = vld [vmem:[%s197 + $0x38] sm:$0xff]
      %v215 = vld [vmem:[%s1] sm:$0x1]
      %v217 = vlaneseq
      %v218 = vshrl.u32 %v217, 7
      %v219 = vsub.s32 0, %v218
      %v220 = vrot.slane %v215, %v219
      %v222 = vmul.f32 %v207, %v220
      %v223 = vmul.f32 %v208, %v220
      %v224 = vmul.f32 %v209, %v220
      %v225 = vmul.f32 %v210, %v220
      %v226 = vmul.f32 %v211, %v220
      %v227 = vmul.f32 %v212, %v220
      %v228 = vmul.f32 %v213, %v220
      %v229 = vmul.f32 %v214, %v220
      %v230 = vld [vmem:[%s2] sm:$0x1]
      %v232 = vlaneseq
      %v233 = vshrl.u32 %v232, 7
      %v234 = vsub.s32 0, %v233
      %v235 = vrot.slane %v230, %v234
      %v237 = vadd.f32 %v222, %v235
      %v238 = vadd.f32 %v223, %v235
      %v239 = vadd.f32 %v224, %v235
      %v240 = vadd.f32 %v225, %v235
      %v241 = vadd.f32 %v226, %v235
      %v242 = vadd.f32 %v227, %v235
      %v243 = vadd.f32 %v228, %v235
      %v244 = vadd.f32 %v229, %v235
      %v245 = vmax.f32 %v237, 0.0
      %v246 = vmax.f32 %v238, 0.0
      %v247 = vmax.f32 %v239, 0.0
      %v248 = vmax.f32 %v240, 0.0
      %v249 = vmax.f32 %v241, 0.0
      %v250 = vmax.f32 %v242, 0.0
      %v251 = vmax.f32 %v243, 0.0
      %v252 = vmax.f32 %v244, 0.0
      %253 = vst [vmem:[%s206] sm:$0xff] %v245
      %254 = vst [vmem:[%s206 + $0x8] sm:$0xff] %v246
      %255 = vst [vmem:[%s206 + $0x10] sm:$0xff] %v247
      %256 = vst [vmem:[%s206 + $0x18] sm:$0xff] %v248
      %257 = vst [vmem:[%s206 + $0x20] sm:$0xff] %v249
      %258 = vst [vmem:[%s206 + $0x28] sm:$0xff] %v250
      %259 = vst [vmem:[%s206 + $0x30] sm:$0xff] %v251
      %260 = vst [vmem:[%s206 + $0x38] sm:$0xff] %v252
      %p261 = scmp.lt.s32.totalorder %s18, 1
      %s262 = scalar_select %p261, %s18, 1
      %p263 = scmp.lt.s32.totalorder %s19, 7
      %s264 = scalar_select %p263, %s19, 7
      %s265 = smul.addr %s264, 8
      %s266 = smul.addr %s262, 64
      %s267 = sadd.s32 %s265, %s266
      %s268 = smul.addr %s267, 8
      %s269 = scalar_lea.vmem %s3, %s268
      // Predicated region
      $region33: #{encoder3d_forward.7} parent=31 // pred_check
        %p270 = pneg %p116
      $region34: #{encoder3d_forward.7} parent=31 // pred_check_branch
        %272 = sbr.rel (%p270) target = $region36
      $region35: #{encoder3d_forward.7} parent=31 // pred_region
        _
      $region36: #{encoder3d_forward.7} parent=31 // pred_fallthru
        _
    $region32: #{encoder3d_forward.7} parent=5 // pred_fallthru
      _
    %p273 = scmp.le.s32.totalorder 2, %s9
    // Predicated region
    $region37: #{encoder3d_forward.7} parent=5 // pred_check
      %p274 = pneg %p273
    $region38: #{encoder3d_forward.7} parent=5 // pred_check_branch
      %276 = sbr.rel (%p274) target = $region40
    $region39: #{encoder3d_forward.7} parent=5 // pred_region
      %s277 = ssub.s32 %s9, 2
      // Predicated region
      $region41: #{encoder3d_forward.7} parent=39 // pred_check
        %p278 = pneg %p122
      $region42: #{encoder3d_forward.7} parent=39 // pred_check_branch
        %280 = sbr.rel (%p278) target = $region44
      $region43: #{encoder3d_forward.7} parent=39 // pred_region
        %p281 = scmp.lt.s32.totalorder %s20, 1
        %s282 = scalar_select %p281, %s20, 1
        %p283 = scmp.lt.s32.totalorder %s21, 7
        %s284 = scalar_select %p283, %s21, 7
        %s285 = smul.addr %s284, 8
        %s286 = smul.addr %s282, 64
        %s287 = sadd.s32 %s285, %s286
        %s288 = smul.addr %s287, 8
        %s289 = scalar_lea.vmem %s3, %s288
      $region44: #{encoder3d_forward.7} parent=39 // pred_fallthru
        _
    $region40: #{encoder3d_forward.7} parent=5 // pred_fallthru
      _
  $region6: #{encoder3d_forward.7} parent=0 // loop_footer
    %s13 = sadd.s32 1, %s9
  $region7: #{encoder3d_forward.7} parent=0 // loop_footer_branch
    %8 = sbr.rel target = $region3
  $region8: #{encoder3d_forward.7} parent=0 // loop_exit
    _

// kernel: encoder3d_forward.8
$region0: #{encoder3d_forward.8}
  #allocation0 [shape = 'u32[]', space=smem, size = 0x4, offset = 0x4, fixed_abs, tag = 'smem constant byte address 0x4 - core index']
  #allocation1 [shape = 'u32[144,128]{1,0:T(1,128)}', space=vmem, size = 0x12000, scoped, tag = 'internal scratch']
  #allocation2 [shape = 'f32[64,128]{1,0:T(8,128)}', space=vmem, size = 0x8000, scoped, tag = 'scratch operand']
  %s0 = inlined_call_operand.vmem [shape: bf16[2,10,10,10,128], index: 0, kind: input, shape index: {}]
  %s1 = inlined_call_operand.vmem [shape: bf16[3,9,128,128], index: 1, kind: input, shape index: {}]
  %s2 = inlined_call_operand.vmem [shape: f32[1,128], index: 2, kind: input, shape index: {}]
  %s3 = inlined_call_operand.vmem [shape: f32[2,8,64,128], index: 3, kind: output, shape index: {0}]
  %s4 = inlined_call_operand.vmem [shape: f32[2,8,128], index: 4, kind: output, shape index: {1}]
  %5 = xla_tuple %s3, %s4
  %s6 = sld [smem:[#allocation0]]
  $region65: #{encoder3d_forward.8} parent=0
    _
  %s8 = ssub.s32 1, %s6
  %s9 = scalar_select 0, %s8, %s6
  loop: start=0, step=1, limit=50
  $region2: #{encoder3d_forward.8} parent=0 // loop_pre_header
    _
  $region3: #{encoder3d_forward.8} parent=0 // loop_header
    %s11 = sphi 0, %s15
    %p12 = scmp.ge.s32.totalorder %s11, 50
    %s18 = sphi 0, %s37
    %s19 = sphi 0, %s33
    %s20 = sphi 0, %s29
    %s21 = sphi 0, %s18
    %s22 = sphi 0, %s19
    %s23 = sphi 0, %s20
    %s24 = sphi 0, %s21
    %s25 = sphi 0, %s22
    %s26 = sphi 0, %s23
    %s44 = sphi 0, %s46
    %s47 = sphi 0, %s44
    %s48 = sphi 0, %s47
    %s64 = sphi 0, %s48
    %s68 = sphi 0, %s68
    %s70 = sphi 0, %s68
    %s71 = sphi 0, %s70
    %s85 = sphi 0, %s71
    %s89 = sphi 0, %s89
    %s91 = sphi 0, %s89
    %s92 = sphi 0, %s91
    %s106 = sphi 0, %s92
    %s114 = sphi 0, %s116
    %s117 = sphi 0, %s114
    %s118 = sphi 0, %s117
    %s134 = sphi 0, %s118
    %s140 = sphi 0, %s142
    %s143 = sphi 0, %s140
    %s144 = sphi 0, %s143
    %s160 = sphi 0, %s144
  $region4: #{encoder3d_forward.8} parent=0 // loop_header_branch
    %14 = sbr.rel (%p12) target = $region8
  $region5: #{encoder3d_forward.8} parent=0 // loop_body
    %s16 = ssub.s32 %s11, 1
    %s17 = ssub.s32 %s11, 2
    %s27 = sadd.s32 1, %s20
    %p28 = scmp.ge.s32.totalorder %s27, 3
    %s29 = scalar_select %p28, 0, %s27
    %s30 = sadd.s32 1, %s19
    %s31 = scalar_select %p28, %s30, %s19
    %p32 = scmp.ge.s32.totalorder %s31, 8
    %s33 = scalar_select %p32, 0, %s31
    %s34 = sadd.s32 1, %s18
    %s35 = scalar_select %p32, %s34, %s18
    %p36 = scmp.ge.s32.totalorder %s35, 2
    %s37 = scalar_select %p36, 0, %s35
    %s38 = sadd.s32 %s19, %s20
    %s39 = sadd.s32 %s33, %s29
    %s40 = ssub.s32 %s18, %s37
    %s41 = ssub.s32 %s38, %s39
    %s42 = sor.u32 %s40, %s41
    %p43 = scmp.eq.s32.totalorder %s42, 0
    %s45 = sadd.s32 %s44, 1
    %s46 = scalar_select %p43, %s44, %s45
    %p49 = pneg %p43
    %p50 = scmp.eq.s32.totalorder %s11, 47
    %p51 = por %p49, %p50
    %p52 = scmp.ne.s32.totalorder %s44, %s47
    %p53 = scmp.eq.s32.totalorder %s11, 0
    %p54 = por %p52, %p53
    %p55 = scmp.ne.s32.totalorder %s44, %s47
    %p56 = scmp.eq.s32.totalorder %s16, 47
    %p57 = por %p55, %p56
    %p58 = scmp.ne.s32.totalorder %s47, %s48
    %p59 = scmp.eq.s32.totalorder %s16, 0
    %p60 = por %p58, %p59
    %p61 = scmp.ne.s32.totalorder %s47, %s48
    %p62 = scmp.eq.s32.totalorder %s17, 47
    %p63 = por %p61, %p62
    %p65 = scmp.ne.s32.totalorder %s48, %s64
    %p66 = scmp.eq.s32.totalorder %s17, 0
    %p67 = por %p65, %p66
    %s69 = sadd.s32 %s68, 1
    %p72 = scmp.eq.s32.totalorder %s11, 47
    %p73 = scmp.ne.s32.totalorder %s68, %s70
    %p74 = scmp.eq.s32.totalorder %s11, 0
    %p75 = por %p73, %p74
    %p76 = scmp.ne.s32.totalorder %s68, %s70
    %p77 = scmp.eq.s32.totalorder %s16, 47
    %p78 = por %p76, %p77
    %p79 = scmp.ne.s32.totalorder %s70, %s71
    %p80 = scmp.eq.s32.totalorder %s16, 0
    %p81 = por %p79, %p80
    %p82 = scmp.ne.s32.totalorder %s70, %s71
    %p83 = scmp.eq.s32.totalorder %s17, 47
    %p84 = por %p82, %p83
    %p86 = scmp.ne.s32.totalorder %s71, %s85
    %p87 = scmp.eq.s32.totalorder %s17, 0
    %p88 = por %p86, %p87
    %s90 = sadd.s32 %s89, 1
    %p93 = scmp.eq.s32.totalorder %s11, 47
    %p94 = scmp.ne.s32.totalorder %s89, %s91
    %p95 = scmp.eq.s32.totalorder %s11, 0
    %p96 = por %p94, %p95
    %p97 = scmp.ne.s32.totalorder %s89, %s91
    %p98 = scmp.eq.s32.totalorder %s16, 47
    %p99 = por %p97, %p98
    %p100 = scmp.ne.s32.totalorder %s91, %s92
    %p101 = scmp.eq.s32.totalorder %s16, 0
    %p102 = por %p100, %p101
    %p103 = scmp.ne.s32.totalorder %s91, %s92
    %p104 = scmp.eq.s32.totalorder %s17, 47
    %p105 = por %p103, %p104
    %p107 = scmp.ne.s32.totalorder %s92, %s106
    %p108 = scmp.eq.s32.totalorder %s17, 0
    %p109 = por %p107, %p108
    %s110 = ssub.s32 %s18, %s37
    %s111 = ssub.s32 %s19, %s33
    %s112 = sor.u32 %s110, %s111
    %p113 = scmp.eq.s32.totalorder %s112, 0
    %s115 = sadd.s32 %s114, 1
    %s116 = scalar_select %p113, %s114, %s115
    %p119 = pneg %p113
    %p120 = scmp.eq.s32.totalorder %s11, 47
    %p121 = por %p119, %p120
    %p122 = scmp.ne.s32.totalorder %s114, %s117
    %p123 = scmp.eq.s32.totalorder %s11, 0
    %p124 = por %p122, %p123
    %p125 = scmp.ne.s32.totalorder %s114, %s117
    %p126 = scmp.eq.s32.totalorder %s16, 47
    %p127 = por %p125, %p126
    %p128 = scmp.ne.s32.totalorder %s117, %s118
    %p129 = scmp.eq.s32.totalorder %s16, 0
    %p130 = por %p128, %p129
    %p131 = scmp.ne.s32.totalorder %s117, %s118
    %p132 = scmp.eq.s32.totalorder %s17, 47
    %p133 = por %p131, %p132
    %p135 = scmp.ne.s32.totalorder %s118, %s134
    %p136 = scmp.eq.s32.totalorder %s17, 0
    %p137 = por %p135, %p136
    %s138 = ssub.s32 %s18, %s37
    %p139 = scmp.eq.s32.totalorder %s138, 0
    %s141 = sadd.s32 %s140, 1
    %s142 = scalar_select %p139, %s140, %s141
    %p145 = pneg %p139
    %p146 = scmp.eq.s32.totalorder %s11, 47
    %p147 = por %p145, %p146
    %p148 = scmp.ne.s32.totalorder %s140, %s143
    %p149 = scmp.eq.s32.totalorder %s11, 0
    %p150 = por %p148, %p149
    %p151 = scmp.ne.s32.totalorder %s140, %s143
    %p152 = scmp.eq.s32.totalorder %s16, 47
    %p153 = por %p151, %p152
    %p154 = scmp.ne.s32.totalorder %s143, %s144
    %p155 = scmp.eq.s32.totalorder %s16, 0
    %p156 = por %p154, %p155
    %p157 = scmp.ne.s32.totalorder %s143, %s144
    %p158 = scmp.eq.s32.totalorder %s17, 47
    %p159 = por %p157, %p158
    %p161 = scmp.ne.s32.totalorder %s144, %s160
    %p162 = scmp.eq.s32.totalorder %s17, 0
    %p163 = por %p161, %p162
    %p164 = scmp.le.s32.totalorder 1, %s11
    %p165 = scmp.lt.s32.totalorder %s11, 49
    %p166 = pnand %p164, %p165
    %p167 = pneg %p166
    // Predicated region
    $region9: #{encoder3d_forward.8} parent=5 // pred_check
      _
    $region10: #{encoder3d_forward.8} parent=5 // pred_check_branch
      %169 = sbr.rel (%p166) target = $region12
    $region11: #{encoder3d_forward.8} parent=5 // pred_region
      %s170 = ssub.s32 %s11, 1
      // Predicated region
      $region13: #{encoder3d_forward.8} parent=11 // pred_check
        %p171 = pneg %p81
      $region14: #{encoder3d_forward.8} parent=11 // pred_check_branch
        %173 = sbr.rel (%p171) target = $region16
      $region15: #{encoder3d_forward.8} parent=11 // pred_region
        _
      $region16: #{encoder3d_forward.8} parent=11 // pred_fallthru
        _
      // Predicated region
      $region17: #{encoder3d_forward.8} parent=11 // pred_check
        %p174 = pneg %p102
      $region18: #{encoder3d_forward.8} parent=11 // pred_check_branch
        %176 = sbr.rel (%p174) target = $region20
      $region19: #{encoder3d_forward.8} parent=11 // pred_region
        _
      $region20: #{encoder3d_forward.8} parent=11 // pred_fallthru
        _
    $region12: #{encoder3d_forward.8} parent=5 // pred_fallthru
      _
    %p177 = scmp.lt.s32.totalorder %s11, 48
    // Predicated region
    $region21: #{encoder3d_forward.8} parent=5 // pred_check
      %p178 = pneg %p177
    $region22: #{encoder3d_forward.8} parent=5 // pred_check_branch
      %180 = sbr.rel (%p178) target = $region24
    $region23: #{encoder3d_forward.8} parent=5 // pred_region
      // Predicated region
      $region25: #{encoder3d_forward.8} parent=23 // pred_check
        %p181 = pneg %p54
      $region26: #{encoder3d_forward.8} parent=23 // pred_check_branch
        %183 = sbr.rel (%p181) target = $region28
      $region27: #{encoder3d_forward.8} parent=23 // pred_region
        %s184 = sadd.s32 %s19, %s20
        %p185 = scmp.lt.s32.totalorder %s18, 1
        %s186 = scalar_select %p185, %s18, 1
        %p187 = scmp.lt.s32.totalorder %s184, 9
        %s188 = scalar_select %p187, %s184, 9
        %s189 = smul.addr %s188, 20
        %s190 = smul.addr %s186, 200
        %s191 = sadd.s32 %s189, %s190
        %s192 = smul.addr %s191, 4
        %s193 = scalar_lea.vmem %s0, %s192
        %s194 = sadd.s32 %s19, %s20
      $region28: #{encoder3d_forward.8} parent=23 // pred_fallthru
        _
    $region24: #{encoder3d_forward.8} parent=5 // pred_fallthru
      _
    %p195 = scmp.le.s32.totalorder 1, %s11
    %p196 = scmp.lt.s32.totalorder %s11, 49
    %p197 = pnand %p195, %p196
    %p198 = pneg %p197
    // Predicated region
    $region29: #{encoder3d_forward.8} parent=5 // pred_check
      _
    $region30: #{encoder3d_forward.8} parent=5 // pred_check_branch
      %200 = sbr.rel (%p197) target = $region32
    $region31: #{encoder3d_forward.8} parent=5 // pred_region
      %s201 = ssub.s32 %s11, 1
      %s202 = sadd.s32 %s22, %s23
      %p203 = scmp.lt.s32.totalorder %s21, 1
      %s204 = scalar_select %p203, %s21, 1
      %p205 = scmp.lt.s32.totalorder %s202, 9
      %s206 = scalar_select %p205, %s202, 9
      %s207 = smul.addr %s206, 20
      %s208 = smul.addr %s204, 200
      %s209 = sadd.s32 %s207, %s208
      %s210 = smul.addr %s209, 4
      %s211 = scalar_lea.vmem %s0, %s210
      %p212 = pneg %p60
      %p213 = pneg %p57
      %p214 = pneg %p81
      %p215 = pneg %p78
      %p216 = pneg %p102
      %p217 = pneg %p99
      %p218 = pneg %p130
      %p219 = pneg %p127
      %p220 = scmp.lt.s32.totalorder %s21, 1
      %s221 = scalar_select %p220, %s21, 1
      %p222 = scmp.lt.s32.totalorder %s22, 7
      %s223 = scalar_select %p222, %s22, 7
      %s224 = smul.addr %s223, 8
      %s225 = smul.addr %s221, 64
      %s226 = sadd.s32 %s224, %s225
      %s227 = smul.addr %s226, 8
      %s228 = scalar_lea.vmem %s3, %s227
      %p229 = pneg %p156
      %p230 = pneg %p153
      %p231 = scmp.lt.s32.totalorder %s21, 1
      %s232 = scalar_select %p231, %s21, 1
      %s233 = smul.addr %s232, 8
      %s234 = scalar_lea.vmem %s4, %s233
      %s235 = sadd.s32 %s22, %s23
      %p236 = scmp.lt.s32.totalorder %s21, 1
      %s237 = scalar_select %p236, %s21, 1
      %p238 = scmp.lt.s32.totalorder %s235, 9
      %s239 = scalar_select %p238, %s235, 9
      %s240 = smul.addr %s239, 20
      %s241 = smul.addr %s237, 200
      %s242 = sadd.s32 %s240, %s241
      %s243 = smul.addr %s242, 4
      %s244 = scalar_lea.vmem %s0, %s243
      %s245 = sadd.s32 %s22, %s23
      %p246 = scmp.lt.s32.totalorder %s21, 1
      %s247 = scalar_select %p246, %s21, 1
      %p248 = scmp.lt.s32.totalorder %s22, 7
      %s249 = scalar_select %p248, %s22, 7
      %s250 = smul.addr %s249, 8
      %s251 = smul.addr %s247, 64
      %s252 = sadd.s32 %s250, %s251
      %s253 = smul.addr %s252, 8
      %s254 = scalar_lea.vmem %s3, %s253
      %p255 = scmp.lt.s32.totalorder %s21, 1
      %s256 = scalar_select %p255, %s21, 1
      %s257 = smul.addr %s256, 8
      %s258 = scalar_lea.vmem %s4, %s257
      %p260 = scmp.eq.s32.totalorder %s23, 0
      // Predicated region
      $region33: #{encoder3d_forward.8} parent=31 // pred_check
        %p261 = pneg %p260
      $region34: #{encoder3d_forward.8} parent=31 // pred_check_branch
        %263 = sbr.rel (%p261) target = $region36
      $region35: #{encoder3d_forward.8} parent=31 // pred_region
        %264 = vst [vmem:[#allocation2] sm:$0xff] 0.0
        %265 = vst [vmem:[#allocation2 + $0x8] sm:$0xff] 0.0
        %266 = vst [vmem:[#allocation2 + $0x10] sm:$0xff] 0.0
        %267 = vst [vmem:[#allocation2 + $0x18] sm:$0xff] 0.0
        %268 = vst [vmem:[#allocation2 + $0x20] sm:$0xff] 0.0
        %269 = vst [vmem:[#allocation2 + $0x28] sm:$0xff] 0.0
        %270 = vst [vmem:[#allocation2 + $0x30] sm:$0xff] 0.0
        %271 = vst [vmem:[#allocation2 + $0x38] sm:$0xff] 0.0
      $region36: #{encoder3d_forward.8} parent=31 // pred_fallthru
        _
      %p272 = scmp.eq.s32.totalorder %s22, 0
      %p273 = pnand %p272, %p260
      %p274 = pneg %p273
      // Predicated region
      $region37: #{encoder3d_forward.8} parent=31 // pred_check
        _
      $region38: #{encoder3d_forward.8} parent=31 // pred_check_branch
        %276 = sbr.rel (%p273) target = $region40
      $region39: #{encoder3d_forward.8} parent=31 // pred_region
        %277 = vst [vmem:[%s258] sm:$0xff] 0.0
      $region40: #{encoder3d_forward.8} parent=31 // pred_fallthru
        _
      %v278 = vld [vmem:[%s244] sm:$0xf]
      %v279 = vld [vmem:[%s244 + $0x4] sm:$0x1]
      %v280 = vld [vmem:[%s244 + $0x8] sm:$0xf]
      %v281 = vld [vmem:[%s244 + $0xc] sm:$0x1]
      %v282 = vld [vmem:[%s244 + $0x10] sm:$0xf]
      %v283 = vld [vmem:[%s244 + $0x14] sm:$0x1]
      %v284 = vld [vmem:[%s244 + $0x18] sm:$0xf]
      %v285 = vld [vmem:[%s244 + $0x1c] sm:$0x1]
      %v286 = vld [vmem:[%s244 + $0x20] sm:$0xf]
      %v287 = vld [vmem:[%s244 + $0x24] sm:$0x1]
      %v288 = vld [vmem:[%s244 + $0x28] sm:$0xf]
      %v289 = vld [vmem:[%s244 + $0x2c] sm:$0x1]
      %v290 = vld [vmem:[%s244 + $0x30] sm:$0xf]
      %v291 = vld [vmem:[%s244 + $0x34] sm:$0x1]
      %v292 = vld [vmem:[%s244 + $0x38] sm:$0xf]
      %v293 = vld [vmem:[%s244 + $0x3c] sm:$0x1]
      %v294 = vld [vmem:[%s244 + $0x40] sm:$0xf]
      %v295 = vld [vmem:[%s244 + $0x44] sm:$0x1]
      %v296 = vld [vmem:[%s244 + $0x48] sm:$0xf]
      %v297 = vld [vmem:[%s244 + $0x4c] sm:$0x1]
      %s298 = smul.u32 %s23, 144
      %s299 = smul.addr %s298, 4
      %s300 = scalar_lea.vmem %s1, %s299
      %v301 = vld [vmem:[%s300] sm:$0xf]
      %v302 = vld [vmem:[%s300 + $0x4] sm:$0xf]
      %v303 = vld [vmem:[%s300 + $0x8] sm:$0xf]
      %v304 = vld [vmem:[%s300 + $0xc] sm:$0xf]
      %v305 = vld [vmem:[%s300 + $0x10] sm:$0xf]
      %v306 = vld [vmem:[%s300 + $0x14] sm:$0xf]
      %v307 = vld [vmem:[%s300 + $0x18] sm:$0xf]
      %v308 = vld [vmem:[%s300 + $0x1c] sm:$0xf]
      %v309 = vld [vmem:[%s300 + $0x20] sm:$0xf]
      %v310 = vld [vmem:[%s300 + $0x24] sm:$0xf]
      %v311 = vld [vmem:[%s300 + $0x28] sm:$0xf]
      %v312 = vld [vmem:[%s300 + $0x2c] sm:$0xf]
      %v313 = vld [vmem:[%s300 + $0x30] sm:$0xf]
      %v314 = vld [vmem:[%s300 + $0x34] sm:$0xf]
      %v315 = vld [vmem:[%s300 + $0x38] sm:$0xf]
      %v316 = vld [vmem:[%s300 + $0x3c] sm:$0xf]
      %vm317 = vsmask.f32 3328
      %vm318 = vsmask.f32 7440
      %vm319 = vmor %vm317, %vm318
      %v321 = vshrl.u32 %v278, 16
      %v323 = vrot.slane %v321, 4
      %v324 = vshll.u32 %v278, 16
      %v326 = vrot.slane %v324, 5
      %v327 = vor.u32 %v323, %v326
      %v328 = vrot.slane %v327, 4
      %v330 = vshll.u32 %v279, 16
      %v332 = vrot.slane %v330, 5
      %v333 = vsel %vm319, %v328, %v332
      %v335 = vshrl.u32 %v280, 16
      %v337 = vrot.slane %v335, 4
      %v338 = vshll.u32 %v280, 16
      %v340 = vrot.slane %v338, 5
      %v341 = vor.u32 %v337, %v340
      %v342 = vrot.slane %v341, 4
      %v344 = vshll.u32 %v281, 16
      %v346 = vrot.slane %v344, 5
      %v347 = vsel %vm319, %v342, %v346
      %v349 = vshrl.u32 %v282, 16
      %v351 = vrot.slane %v349, 4
      %v352 = vshll.u32 %v282, 16
      %v354 = vrot.slane %v352, 5
      %v355 = vor.u32 %v351, %v354
      %v356 = vrot.slane %v355, 4
      %v358 = vshll.u32 %v283, 16
      %v360 = vrot.slane %v358, 5
      %v361 = vsel %vm319, %v356, %v360
      %v363 = vshrl.u32 %v284, 16
      %v365 = vrot.slane %v363, 4
      %v366 = vshll.u32 %v284, 16
      %v368 = vrot.slane %v366, 5
      %v369 = vor.u32 %v365, %v368
      %v370 = vrot.slane %v369, 4
      %v372 = vshll.u32 %v285, 16
      %v374 = vrot.slane %v372, 5
      %v375 = vsel %vm319, %v370, %v374
      %v377 = vshrl.u32 %v286, 16
      %v379 = vrot.slane %v377, 4
      %v380 = vshll.u32 %v286, 16
      %v382 = vrot.slane %v380, 5
      %v383 = vor.u32 %v379, %v382
      %v384 = vrot.slane %v383, 4
      %v386 = vshll.u32 %v287, 16
      %v388 = vrot.slane %v386, 5
      %v389 = vsel %vm319, %v384, %v388
      %v391 = vshrl.u32 %v288, 16
      %v393 = vrot.slane %v391, 4
      %v394 = vshll.u32 %v288, 16
      %v396 = vrot.slane %v394, 5
      %v397 = vor.u32 %v393, %v396
      %v398 = vrot.slane %v397, 4
      %v400 = vshll.u32 %v289, 16
      %v402 = vrot.slane %v400, 5
      %v403 = vsel %vm319, %v398, %v402
      %v405 = vshrl.u32 %v290, 16
      %v407 = vrot.slane %v405, 4
      %v408 = vshll.u32 %v290, 16
      %v410 = vrot.slane %v408, 5
      %v411 = vor.u32 %v407, %v410
      %v412 = vrot.slane %v411, 4
      %v414 = vshll.u32 %v291, 16
      %v416 = vrot.slane %v414, 5
      %v417 = vsel %vm319, %v412, %v416
      %v419 = vshrl.u32 %v292, 16
      %v421 = vrot.slane %v419, 4
      %v422 = vshll.u32 %v292, 16
      %v424 = vrot.slane %v422, 5
      %v425 = vor.u32 %v421, %v424
      %v426 = vrot.slane %v425, 4
      %v428 = vshll.u32 %v293, 16
      %v430 = vrot.slane %v428, 5
      %v431 = vsel %vm319, %v426, %v430
      %s432 = sadd.s32 16, %s298
      %s433 = smul.addr %s432, 4
      %s434 = scalar_lea.vmem %s1, %s433
      %v435 = vld [vmem:[%s434] sm:$0xf]
      %v436 = vld [vmem:[%s434 + $0x4] sm:$0xf]
      %v437 = vld [vmem:[%s434 + $0x8] sm:$0xf]
      %v438 = vld [vmem:[%s434 + $0xc] sm:$0xf]
      %v439 = vld [vmem:[%s434 + $0x10] sm:$0xf]
      %v440 = vld [vmem:[%s434 + $0x14] sm:$0xf]
      %v441 = vld [vmem:[%s434 + $0x18] sm:$0xf]
      %v442 = vld [vmem:[%s434 + $0x1c] sm:$0xf]
      %v443 = vld [vmem:[%s434 + $0x20] sm:$0xf]
      %v444 = vld [vmem:[%s434 + $0x24] sm:$0xf]
      %v445 = vld [vmem:[%s434 + $0x28] sm:$0xf]
      %v446 = vld [vmem:[%s434 + $0x2c] sm:$0xf]
      %v447 = vld [vmem:[%s434 + $0x30] sm:$0xf]
      %v448 = vld [vmem:[%s434 + $0x34] sm:$0xf]
      %v449 = vld [vmem:[%s434 + $0x38] sm:$0xf]
      %v450 = vld [vmem:[%s434 + $0x3c] sm:$0xf]
      %v451 = vunpack.c.l.b16 %v333
      %v452 = vunpack.c.l.b16 %v347
      %v453 = vunpack.c.l.b16 %v361
      %v454 = vunpack.c.l.b16 %v375
      %v455 = vunpack.c.l.b16 %v389
      %v456 = vunpack.c.l.b16 %v403
      %v457 = vunpack.c.l.b16 %v417
      %v458 = vunpack.c.l.b16 %v431
      %v459 = vpack.c.b16 %v452, %v451
      %v460 = vpack.c.b16 %v454, %v453
      %v461 = vpack.c.b16 %v456, %v455
      %v462 = vpack.c.b16 %v458, %v457
      %v483 = vunpack.c.l.b16 %v435
      %v484 = vunpack.c.l.b16 %v436
      %v485 = vunpack.c.l.b16 %v437
      %v486 = vunpack.c.l.b16 %v438
      %v487 = vunpack.c.l.b16 %v439
      %v488 = vunpack.c.l.b16 %v440
      %v489 = vunpack.c.l.b16 %v441
      %v490 = vunpack.c.l.b16 %v442
      %v491 = vunpack.c.l.b16 %v443
      %v492 = vunpack.c.l.b16 %v444
      %v493 = vunpack.c.l.b16 %v445
      %v494 = vunpack.c.l.b16 %v446
      %v495 = vunpack.c.l.b16 %v447
      %v496 = vunpack.c.l.b16 %v448
      %v497 = vunpack.c.l.b16 %v449
      %v498 = vunpack.c.l.b16 %v450
      %v499 = vpack.c.b16 %v484, %v483
      %v500 = vpack.c.b16 %v486, %v485
      %v501 = vpack.c.b16 %v488, %v487
      %v502 = vpack.c.b16 %v490, %v489
      %v503 = vpack.c.b16 %v492, %v491
      %v504 = vpack.c.b16 %v494, %v493
      %v505 = vpack.c.b16 %v496, %v495
      %v506 = vpack.c.b16 %v498, %v497
      %515 = vmatprep.subr.bf16.mxu0 0
      %516 = vmatpush1.bf16.msra.mxu0 %v499
      %517 = vmatprep.subr.bf16.mxu0 0
      %518 = vmatpush1.bf16.msra.mxu0 %v500
      %519 = vmatprep.subr.bf16.mxu0 0
      %520 = vmatpush1.bf16.msra.mxu0 %v501
      %521 = vmatprep.subr.bf16.mxu0 0
      %522 = vmatpush1.bf16.msra.mxu0 %v502
      %523 = vmatprep.subr.bf16.mxu0 0
      %524 = vmatpush1.bf16.msra.mxu0 %v503
      %525 = vmatprep.subr.bf16.mxu0 0
      %526 = vmatpush1.bf16.msra.mxu0 %v504
      %527 = vmatprep.subr.bf16.mxu0 0
      %528 = vmatpush1.bf16.msra.mxu0 %v505
      %529 = vmatprep.subr.bf16.mxu0 0
      %530 = vmatpush1.bf16.msra.mxu0 %v506
      %531 = vmatprep.subr.bf16.mxu0 0
      %532 = vmatpush1.bf16.msra.mxu0 0
      %533 = vmatprep.subr.bf16.mxu0 0
      %534 = vmatpush1.bf16.msra.mxu0 0
      %535 = vmatprep.subr.bf16.mxu0 0
      %536 = vmatpush1.bf16.msra.mxu0 0
      %537 = vmatprep.subr.bf16.mxu0 0
      %538 = vmatpush1.bf16.msra.mxu0 0
      %539 = vmatprep.subr.bf16.mxu0 0
      %540 = vmatpush1.bf16.msra.mxu0 0
      %541 = vmatprep.subr.bf16.mxu0 0
      %542 = vmatpush1.bf16.msra.mxu0 0
      %543 = vmatprep.subr.bf16.mxu0 0
      %544 = vmatpush1.bf16.msra.mxu0 0
      %545 = vmatprep.subr.bf16.mxu0 0
      %546 = vmatpush1.bf16.msra.mxu0 0
      %547 = vmatprep.mubr.bf16.mxu0 0
      %548 = vmatmul.mubr.bf16.gmra.mrb[0].mxu0 %v459
      %v549 = vpop.f32.mrb[0].mxu0
      %v550 = vadd.f32 0.0, %v549
      %v551 = vpop.f32.mrb[0].mxu0
      %v552 = vpop.f32.mrb[0].mxu0
      %v553 = vadd.f32 0.0, %v552
      %v554 = vpop.f32.mrb[0].mxu0
      %555 = vmatprep.mubr.bf16.mxu0 0
      %556 = vmatmul.mubr.bf16.gmra.mrb[0].mxu0 %v460
      %v557 = vpop.f32.mrb[0].mxu0
      %v558 = vadd.f32 0.0, %v557
      %v559 = vpop.f32.mrb[0].mxu0
      %v560 = vpop.f32.mrb[0].mxu0
      %v561 = vadd.f32 0.0, %v560
      %v562 = vpop.f32.mrb[0].mxu0
      %563 = vmatprep.mubr.bf16.mxu0 0
      %564 = vmatmul.mubr.bf16.gmra.mrb[0].mxu0 %v461
      %v565 = vpop.f32.mrb[0].mxu0
      %v566 = vadd.f32 0.0, %v565
      %v567 = vpop.f32.mrb[0].mxu0
      %v568 = vpop.f32.mrb[0].mxu0
      %v569 = vadd.f32 0.0, %v568
      %v570 = vpop.f32.mrb[0].mxu0
      %571 = vmatprep.mubr.bf16.mxu0 0
      %572 = vmatmul.mubr.bf16.gmra.mrb[0].mxu0 %v462
      %v573 = vpop.f32.mrb[0].mxu0
      %v574 = vadd.f32 0.0, %v573
      %v575 = vpop.f32.mrb[0].mxu0
      %v576 = vpop.f32.mrb[0].mxu0
      %v577 = vadd.f32 0.0, %v576
      %v578 = vpop.f32.mrb[0].mxu0
      %579 = vdwg.mxu0
      %v588 = vunpack.c.l.b16 %v278
      %v589 = vunpack.c.l.b16 %v280
      %v590 = vunpack.c.l.b16 %v282
      %v591 = vunpack.c.l.b16 %v284
      %v592 = vunpack.c.l.b16 %v286
      %v593 = vunpack.c.l.b16 %v288
      %v594 = vunpack.c.l.b16 %v290
      %v595 = vunpack.c.l.b16 %v292
      %v596 = vpack.c.b16 %v589, %v588
      %v597 = vpack.c.b16 %v591, %v590
      %v598 = vpack.c.b16 %v593, %v592
      %v599 = vpack.c.b16 %v595, %v594
      %v620 = vunpack.c.l.b16 %v301
      %v621 = vunpack.c.l.b16 %v302
      %v622 = vunpack.c.l.b16 %v303
      %v623 = vunpack.c.l.b16 %v304
      %v624 = vunpack.c.l.b16 %v305
      %v625 = vunpack.c.l.b16 %v306
      %v626 = vunpack.c.l.b16 %v307
      %v627 = vunpack.c.l.b16 %v308
      %v628 = vunpack.c.l.b16 %v309
      %v629 = vunpack.c.l.b16 %v310
      %v630 = vunpack.c.l.b16 %v311
      %v631 = vunpack.c.l.b16 %v312
      %v632 = vunpack.c.l.b16 %v313
      %v633 = vunpack.c.l.b16 %v314
      %v634 = vunpack.c.l.b16 %v315
      %v635 = vunpack.c.l.b16 %v316
      %v636 = vpack.c.b16 %v621, %v620
      %v637 = vpack.c.b16 %v623, %v622
      %v638 = vpack.c.b16 %v625, %v624
      %v639 = vpack.c.b16 %v627, %v626
      %v640 = vpack.c.b16 %v629, %v628
      %v641 = vpack.c.b16 %v631, %v630
      %v642 = vpack.c.b16 %v633, %v632
      %v643 = vpack.c.b16 %v635, %v634
      %652 = vmatprep.subr.bf16.mxu0 0
      %653 = vmatpush1.bf16.msra.mxu0 %v636
      %654 = vmatprep.subr.bf16.mxu0 0
      %655 = vmatpush1.bf16.msra.mxu0 %v637
      %656 = vmatprep.subr.bf16.mxu0 0
      %657 = vmatpush1.bf16.msra.mxu0 %v638
      %658 = vmatprep.subr.bf16.mxu0 0
      %659 = vmatpush1.bf16.msra.mxu0 %v639
      %660 = vmatprep.subr.bf16.mxu0 0
      %661 = vmatpush1.bf16.msra.mxu0 %v640
      %662 = vmatprep.subr.bf16.mxu0 0
      %663 = vmatpush1.bf16.msra.mxu0 %v641
      %664 = vmatprep.subr.bf16.mxu0 0
      %665 = vmatpush1.bf16.msra.mxu0 %v642
      %666 = vmatprep.subr.bf16.mxu0 0
      %667 = vmatpush1.bf16.msra.mxu0 %v643
      %668 = vmatprep.subr.bf16.mxu0 0
      %669 = vmatpush1.bf16.msra.mxu0 0
      %670 = vmatprep.subr.bf16.mxu0 0
      %671 = vmatpush1.bf16.msra.mxu0 0
      %672 = vmatprep.subr.bf16.mxu0 0
      %673 = vmatpush1.bf16.msra.mxu0 0
      %674 = vmatprep.subr.bf16.mxu0 0
      %675 = vmatpush1.bf16.msra.mxu0 0
      %676 = vmatprep.subr.bf16.mxu0 0
      %677 = vmatpush1.bf16.msra.mxu0 0
      %678 = vmatprep.subr.bf16.mxu0 0
      %679 = vmatpush1.bf16.msra.mxu0 0
      %680 = vmatprep.subr.bf16.mxu0 0
      %681 = vmatpush1.bf16.msra.mxu0 0
      %682 = vmatprep.subr.bf16.mxu0 0
      %683 = vmatpush1.bf16.msra.mxu0 0
      %684 = vmatprep.mubr.bf16.mxu0 0
      %685 = vmatmul.mubr.bf16.gmra.mrb[0].mxu0 %v596
      %v686 = vpop.f32.mrb[0].mxu0
      %v687 = vadd.f32 %v550, %v686
      %v688 = vpop.f32.mrb[0].mxu0
      %v689 = vpop.f32.mrb[0].mxu0
      %v690 = vadd.f32 %v553, %v689
      %v691 = vpop.f32.mrb[0].mxu0
      %692 = vmatprep.mubr.bf16.mxu0 0
      %693 = vmatmul.mubr.bf16.gmra.mrb[0].mxu0 %v597
      %v694 = vpop.f32.mrb[0].mxu0
      %v695 = vadd.f32 %v558, %v694
      %v696 = vpop.f32.mrb[0].mxu0
      %v697 = vpop.f32.mrb[0].mxu0
      %v698 = vadd.f32 %v561, %v697
      %v699 = vpop.f32.mrb[0].mxu0
      %700 = vmatprep.mubr.bf16.mxu0 0
      %701 = vmatmul.mubr.bf16.gmra.mrb[0].mxu0 %v598
      %v702 = vpop.f32.mrb[0].mxu0
      %v703 = vadd.f32 %v566, %v702
      %v704 = vpop.f32.mrb[0].mxu0
      %v705 = vpop.f32.mrb[0].mxu0
      %v706 = vadd.f32 %v569, %v705
      %v707 = vpop.f32.mrb[0].mxu0
      %708 = vmatprep.mubr.bf16.mxu0 0
      %709 = vmatmul.mubr.bf16.gmra.mrb[0].mxu0 %v599
      %v710 = vpop.f32.mrb[0].mxu0
      %v711 = vadd.f32 %v574, %v710
      %v712 = vpop.f32.mrb[0].mxu0
      %v713 = vpop.f32.mrb[0].mxu0
      %v714 = vadd.f32 %v577, %v713
      %v715 = vpop.f32.mrb[0].mxu0
      %716 = vdwg.mxu0
      %vm725 = vcmask 1042432
      %vm726 = vcmask 1046532
      %vm727 = vmor %vm725, %vm726
      %v728 = vrot.slane %v278, 5
      %v729 = vrot.slane %v728, 4
      %v730 = vrot.slane %v279, 5
      %v731 = vsel %vm727, %v729, %v730
      %v732 = vrot.slane %v280, 5
      %v733 = vrot.slane %v732, 4
      %v734 = vrot.slane %v281, 5
      %v735 = vsel %vm727, %v733, %v734
      %v736 = vrot.slane %v282, 5
      %v737 = vrot.slane %v736, 4
      %v738 = vrot.slane %v283, 5
      %v739 = vsel %vm727, %v737, %v738
      %v740 = vrot.slane %v284, 5
      %v741 = vrot.slane %v740, 4
      %v742 = vrot.slane %v285, 5
      %v743 = vsel %vm727, %v741, %v742
      %v744 = vrot.slane %v286, 5
      %v745 = vrot.slane %v744, 4
      %v746 = vrot.slane %v287, 5
      %v747 = vsel %vm727, %v745, %v746
      %v748 = vrot.slane %v288, 5
      %v749 = vrot.slane %v748, 4
      %v750 = vrot.slane %v289, 5
      %v751 = vsel %vm727, %v749, %v750
      %v752 = vrot.slane %v290, 5
      %v753 = vrot.slane %v752, 4
      %v754 = vrot.slane %v291, 5
      %v755 = vsel %vm727, %v753, %v754
      %v756 = vrot.slane %v292, 5
      %v757 = vrot.slane %v756, 4
      %v758 = vrot.slane %v293, 5
      %v759 = vsel %vm727, %v757, %v758
      %s760 = sadd.s32 32, %s298
      %s761 = smul.addr %s760, 4
      %s762 = scalar_lea.vmem %s1, %s761
      %v763 = vld [vmem:[%s762] sm:$0xf]
      %v764 = vld [vmem:[%s762 + $0x4] sm:$0xf]
      %v765 = vld [vmem:[%s762 + $0x8] sm:$0xf]
      %v766 = vld [vmem:[%s762 + $0xc] sm:$0xf]
      %v767 = vld [vmem:[%s762 + $0x10] sm:$0xf]
      %v768 = vld [vmem:[%s762 + $0x14] sm:$0xf]
      %v769 = vld [vmem:[%s762 + $0x18] sm:$0xf]
      %v770 = vld [vmem:[%s762 + $0x1c] sm:$0xf]
      %v771 = vld [vmem:[%s762 + $0x20] sm:$0xf]
      %v772 = vld [vmem:[%s762 + $0x24] sm:$0xf]
      %v773 = vld [vmem:[%s762 + $0x28] sm:$0xf]
      %v774 = vld [vmem:[%s762 + $0x2c] sm:$0xf]
      %v775 = vld [vmem:[%s762 + $0x30] sm:$0xf]
      %v776 = vld [vmem:[%s762 + $0x34] sm:$0xf]
      %v777 = vld [vmem:[%s762 + $0x38] sm:$0xf]
      %v778 = vld [vmem:[%s762 + $0x3c] sm:$0xf]
      %v779 = vunpack.c.l.b16 %v731
      %v780 = vunpack.c.l.b16 %v735
      %v781 = vunpack.c.l.b16 %v739
      %v782 = vunpack.c.l.b16 %v743
      %v783 = vunpack.c.l.b16 %v747
      %v784 = vunpack.c.l.b16 %v751
      %v785 = vunpack.c.l.b16 %v755
      %v786 = vunpack.c.l.b16 %v759
      %v787 = vpack.c.b16 %v780, %v779
      %v788 = vpack.c.b16 %v782, %v781
      %v789 = vpack.c.b16 %v784, %v783
      %v790 = vpack.c.b16 %v786, %v785
      %v811 = vunpack.c.l.b16 %v763
      %v812 = vunpack.c.l.b16 %v764
      %v813 = vunpack.c.l.b16 %v765
      %v814 = vunpack.c.l.b16 %v766
      %v815 = vunpack.c.l.b16 %v767
      %v816 = vunpack.c.l.b16 %v768
      %v817 = vunpack.c.l.b16 %v769
      %v818 = vunpack.c.l.b16 %v770
      %v819 = vunpack.c.l.b16 %v771
      %v820 = vunpack.c.l.b16 %v772
      %v821 = vunpack.c.l.b16 %v773
      %v822 = vunpack.c.l.b16 %v774
      %v823 = vunpack.c.l.b16 %v775
      %v824 = vunpack.c.l.b16 %v776
      %v825 = vunpack.c.l.b16 %v777
      %v826 = vunpack.c.l.b16 %v778
      %v827 = vpack.c.b16 %v812, %v811
      %v828 = vpack.c.b16 %v814, %v813
      %v829 = vpack.c.b16 %v816, %v815
      %v830 = vpack.c.b16 %v818, %v817
      %v831 = vpack.c.b16 %v820, %v819
      %v832 = vpack.c.b16 %v822, %v821
      %v833 = vpack.c.b16 %v824, %v823
      %v834 = vpack.c.b16 %v826, %v825
      %843 = vmatprep.subr.bf16.mxu0 0
      %844 = vmatpush1.bf16.msra.mxu0 %v827
      %845 = vmatprep.subr.bf16.mxu0 0
      %846 = vmatpush1.bf16.msra.mxu0 %v828
      %847 = vmatprep.subr.bf16.mxu0 0
      %848 = vmatpush1.bf16.msra.mxu0 %v829
      %849 = vmatprep.subr.bf16.mxu0 0
      %850 = vmatpush1.bf16.msra.mxu0 %v830
      %851 = vmatprep.subr.bf16.mxu0 0
      %852 = vmatpush1.bf16.msra.mxu0 %v831
      %853 = vmatprep.subr.bf16.mxu0 0
      %854 = vmatpush1.bf16.msra.mxu0 %v832
      %855 = vmatprep.subr.bf16.mxu0 0
      %856 = vmatpush1.bf16.msra.mxu0 %v833
      %857 = vmatprep.subr.bf16.mxu0 0
      %858 = vmatpush1.bf16.msra.mxu0 %v834
      %859 = vmatprep.subr.bf16.mxu0 0
      %860 = vmatpush1.bf16.msra.mxu0 0
      %861 = vmatprep.subr.bf16.mxu0 0
      %862 = vmatpush1.bf16.msra.mxu0 0
      %863 = vmatprep.subr.bf16.mxu0 0
      %864 = vmatpush1.bf16.msra.mxu0 0
      %865 = vmatprep.subr.bf16.mxu0 0
      %866 = vmatpush1.bf16.msra.mxu0 0
      %867 = vmatprep.subr.bf16.mxu0 0
      %868 = vmatpush1.bf16.msra.mxu0 0
      %869 = vmatprep.subr.bf16.mxu0 0
      %870 = vmatpush1.bf16.msra.mxu0 0
      %871 = vmatprep.subr.bf16.mxu0 0
      %872 = vmatpush1.bf16.msra.mxu0 0
      %873 = vmatprep.subr.bf16.mxu0 0
      %874 = vmatpush1.bf16.msra.mxu0 0
      %875 = vmatprep.mubr.bf16.mxu0 0
      %876 = vmatmul.mubr.bf16.gmra.mrb[0].mxu0 %v787
      %v877 = vpop.f32.mrb[0].mxu0
      %v878 = vadd.f32 0.0, %v877
      %v879 = vpop.f32.mrb[0].mxu0
      %v880 = vpop.f32.mrb[0].mxu0
      %v881 = vadd.f32 0.0, %v880
      %v882 = vpop.f32.mrb[0].mxu0
      %883 = vmatprep.mubr.bf16.mxu0 0
      %884 = vmatmul.mubr.bf16.gmra.mrb[0].mxu0 %v788
      %v885 = vpop.f32.mrb[0].mxu0
      %v886 = vadd.f32 0.0, %v885
      %v887 = vpop.f32.mrb[0].mxu0
      %v888 = vpop.f32.mrb[0].mxu0
      %v889 = vadd.f32 0.0, %v888
      %v890 = vpop.f32.mrb[0].mxu0
      %891 = vmatprep.mubr.bf16.mxu0 0
      %892 = vmatmul.mubr.bf16.gmra.mrb[0].mxu0 %v789
      %v893 = vpop.f32.mrb[0].mxu0
      %v894 = vadd.f32 0.0, %v893
      %v895 = vpop.f32.mrb[0].mxu0
      %v896 = vpop.f32.mrb[0].mxu0
      %v897 = vadd.f32 0.0, %v896
      %v898 = vpop.f32.mrb[0].mxu0
      %899 = vmatprep.mubr.bf16.mxu0 0
      %900 = vmatmul.mubr.bf16.gmra.mrb[0].mxu0 %v790
      %v901 = vpop.f32.mrb[0].mxu0
      %v902 = vadd.f32 0.0, %v901
      %v903 = vpop.f32.mrb[0].mxu0
      %v904 = vpop.f32.mrb[0].mxu0
      %v905 = vadd.f32 0.0, %v904
      %v906 = vpop.f32.mrb[0].mxu0
      %907 = vdwg.mxu0
      %v908 = vadd.f32 %v687, %v878
      %v909 = vadd.f32 %v690, %v881
      %v910 = vadd.f32 %v695, %v886
      %v911 = vadd.f32 %v698, %v889
      %v912 = vadd.f32 %v703, %v894
      %v913 = vadd.f32 %v706, %v897
      %v914 = vadd.f32 %v711, %v902
      %v915 = vadd.f32 %v714, %v905
      %s916 = sadd.s32 48, %s298
      %s917 = smul.addr %s916, 4
      %s918 = scalar_lea.vmem %s1, %s917
      %v919 = vld [vmem:[%s918] sm:$0xf]
      %v920 = vld [vmem:[%s918 + $0x4] sm:$0xf]
      %v921 = vld [vmem:[%s918 + $0x8] sm:$0xf]
      %v922 = vld [vmem:[%s918 + $0xc] sm:$0xf]
      %v923 = vld [vmem:[%s918 + $0x10] sm:$0xf]
      %v924 = vld [vmem:[%s918 + $0x14] sm:$0xf]
      %v925 = vld [vmem:[%s918 + $0x18] sm:$0xf]
      %v926 = vld [vmem:[%s918 + $0x1c] sm:$0xf]
      %v927 = vld [vmem:[%s918 + $0x20] sm:$0xf]
      %v928 = vld [vmem:[%s918 + $0x24] sm:$0xf]
      %v929 = vld [vmem:[%s918 + $0x28] sm:$0xf]
      %v930 = vld [vmem:[%s918 + $0x2c] sm:$0xf]
      %v931 = vld [vmem:[%s918 + $0x30] sm:$0xf]
      %v932 = vld [vmem:[%s918 + $0x34] sm:$0xf]
      %v933 = vld [vmem:[%s918 + $0x38] sm:$0xf]
      %v934 = vld [vmem:[%s918 + $0x3c] sm:$0xf]
      %v936 = vunpack.c.l.b16 %v294
      %v937 = vpack.c.b16 %v590, %v589
      %v938 = vpack.c.b16 %v592, %v591
      %v939 = vpack.c.b16 %v594, %v593
      %v940 = vpack.c.b16 %v936, %v595
      %v961 = vunpack.c.l.b16 %v919
      %v962 = vunpack.c.l.b16 %v920
      %v963 = vunpack.c.l.b16 %v921
      %v964 = vunpack.c.l.b16 %v922
      %v965 = vunpack.c.l.b16 %v923
      %v966 = vunpack.c.l.b16 %v924
      %v967 = vunpack.c.l.b16 %v925
      %v968 = vunpack.c.l.b16 %v926
      %v969 = vunpack.c.l.b16 %v927
      %v970 = vunpack.c.l.b16 %v928
      %v971 = vunpack.c.l.b16 %v929
      %v972 = vunpack.c.l.b16 %v930
      %v973 = vunpack.c.l.b16 %v931
      %v974 = vunpack.c.l.b16 %v932
      %v975 = vunpack.c.l.b16 %v933
      %v976 = vunpack.c.l.b16 %v934
      %v977 = vpack.c.b16 %v962, %v961
      %v978 = vpack.c.b16 %v964, %v963
      %v979 = vpack.c.b16 %v966, %v965
      %v980 = vpack.c.b16 %v968, %v967
      %v981 = vpack.c.b16 %v970, %v969
      %v982 = vpack.c.b16 %v972, %v971
      %v983 = vpack.c.b16 %v974, %v973
      %v984 = vpack.c.b16 %v976, %v975
      %993 = vmatprep.subr.bf16.mxu0 0
      %994 = vmatpush1.bf16.msra.mxu0 %v977
      %995 = vmatprep.subr.bf16.mxu0 0
      %996 = vmatpush1.bf16.msra.mxu0 %v978
      %997 = vmatprep.subr.bf16.mxu0 0
      %998 = vmatpush1.bf16.msra.mxu0 %v979
      %999 = vmatprep.subr.bf16.mxu0 0
      %1000 = vmatpush1.bf16.msra.mxu0 %v980
      %1001 = vmatprep.subr.bf16.mxu0 0
      %1002 = vmatpush1.bf16.msra.mxu0 %v981
      %1003 = vmatprep.subr.bf16.mxu0 0
      %1004 = vmatpush1.bf16.msra.mxu0 %v982
      %1005 = vmatprep.subr.bf16.mxu0 0
      %1006 = vmatpush1.bf16.msra.mxu0 %v983
      %1007 = vmatprep.subr.bf16.mxu0 0
      %1008 = vmatpush1.bf16.msra.mxu0 %v984
      %1009 = vmatprep.subr.bf16.mxu0 0
      %1010 = vmatpush1.bf16.msra.mxu0 0
      %1011 = vmatprep.subr.bf16.mxu0 0
      %1012 = vmatpush1.bf16.msra.mxu0 0
      %1013 = vmatprep.subr.bf16.mxu0 0
      %1014 = vmatpush1.bf16.msra.mxu0 0
      %1015 = vmatprep.subr.bf16.mxu0 0
      %1016 = vmatpush1.bf16.msra.mxu0 0
      %1017 = vmatprep.subr.bf16.mxu0 0
      %1018 = vmatpush1.bf16.msra.mxu0 0
      %1019 = vmatprep.subr.bf16.mxu0 0
      %1020 = vmatpush1.bf16.msra.mxu0 0
      %1021 = vmatprep.subr.bf16.mxu0 0
      %1022 = vmatpush1.bf16.msra.mxu0 0
      %1023 = vmatprep.subr.bf16.mxu0 0
      %1024 = vmatpush1.bf16.msra.mxu0 0
      %1025 = vmatprep.mubr.bf16.mxu0 0
      %1026 = vmatmul.mubr.bf16.gmra.mrb[0].mxu0 %v937
      %v1027 = vpop.f32.mrb[0].mxu0
      %v1028 = vadd.f32 0.0, %v1027
      %v1029 = vpop.f32.mrb[0].mxu0
      %v1030 = vpop.f32.mrb[0].mxu0
      %v1031 = vadd.f32 0.0, %v1030
      %v1032 = vpop.f32.mrb[0].mxu0
      %1033 = vmatprep.mubr.bf16.mxu0 0
      %1034 = vmatmul.mubr.bf16.gmra.mrb[0].mxu0 %v938
      %v1035 = vpop.f32.mrb[0].mxu0
      %v1036 = vadd.f32 0.0, %v1035
      %v1037 = vpop.f32.mrb[0].mxu0
      %v1038 = vpop.f32.mrb[0].mxu0
      %v1039 = vadd.f32 0.0, %v1038
      %v1040 = vpop.f32.mrb[0].mxu0
      %1041 = vmatprep.mubr.bf16.mxu0 0
      %1042 = vmatmul.mubr.bf16.gmra.mrb[0].mxu0 %v939
      %v1043 = vpop.f32.mrb[0].mxu0
      %v1044 = vadd.f32 0.0, %v1043
      %v1045 = vpop.f32.mrb[0].mxu0
      %v1046 = vpop.f32.mrb[0].mxu0
      %v1047 = vadd.f32 0.0, %v1046
      %v1048 = vpop.f32.mrb[0].mxu0
      %1049 = vmatprep.mubr.bf16.mxu0 0
      %1050 = vmatmul.mubr.bf16.gmra.mrb[0].mxu0 %v940
      %v1051 = vpop.f32.mrb[0].mxu0
      %v1052 = vadd.f32 0.0, %v1051
      %v1053 = vpop.f32.mrb[0].mxu0
      %v1054 = vpop.f32.mrb[0].mxu0
      %v1055 = vadd.f32 0.0, %v1054
      %v1056 = vpop.f32.mrb[0].mxu0
      %1057 = vdwg.mxu0
      %v1058 = vadd.f32 %v908, %v1028
      %v1059 = vadd.f32 %v909, %v1031
      %v1060 = vadd.f32 %v910, %v1036
      %v1061 = vadd.f32 %v911, %v1039
      %v1062 = vadd.f32 %v912, %v1044
      %v1063 = vadd.f32 %v913, %v1047
      %v1064 = vadd.f32 %v914, %v1052
      %v1065 = vadd.f32 %v915, %v1055
      %v1067 = vshrl.u32 %v294, 16
      %v1069 = vrot.slane %v1067, 4
      %v1070 = vshll.u32 %v294, 16
      %v1072 = vrot.slane %v1070, 5
      %v1073 = vor.u32 %v1069, %v1072
      %v1074 = vrot.slane %v1073, 4
      %v1076 = vshll.u32 %v295, 16
      %v1078 = vrot.slane %v1076, 5
      %v1079 = vsel %vm319, %v1074, %v1078
      %s1080 = sadd.s32 64, %s298
      %s1081 = smul.addr %s1080, 4
      %s1082 = scalar_lea.vmem %s1, %s1081
      %v1083 = vld [vmem:[%s1082] sm:$0xf]
      %v1084 = vld [vmem:[%s1082 + $0x4] sm:$0xf]
      %v1085 = vld [vmem:[%s1082 + $0x8] sm:$0xf]
      %v1086 = vld [vmem:[%s1082 + $0xc] sm:$0xf]
      %v1087 = vld [vmem:[%s1082 + $0x10] sm:$0xf]
      %v1088 = vld [vmem:[%s1082 + $0x14] sm:$0xf]
      %v1089 = vld [vmem:[%s1082 + $0x18] sm:$0xf]
      %v1090 = vld [vmem:[%s1082 + $0x1c] sm:$0xf]
      %v1091 = vld [vmem:[%s1082 + $0x20] sm:$0xf]
      %v1092 = vld [vmem:[%s1082 + $0x24] sm:$0xf]
      %v1093 = vld [vmem:[%s1082 + $0x28] sm:$0xf]
      %v1094 = vld [vmem:[%s1082 + $0x2c] sm:$0xf]
      %v1095 = vld [vmem:[%s1082 + $0x30] sm:$0xf]
      %v1096 = vld [vmem:[%s1082 + $0x34] sm:$0xf]
      %v1097 = vld [vmem:[%s1082 + $0x38] sm:$0xf]
      %v1098 = vld [vmem:[%s1082 + $0x3c] sm:$0xf]
      %v1099 = vunpack.c.l.b16 %v1079
      %v1100 = vpack.c.b16 %v453, %v452
      %v1101 = vpack.c.b16 %v455, %v454
      %v1102 = vpack.c.b16 %v457, %v456
      %v1103 = vpack.c.b16 %v1099, %v458
      %v1124 = vunpack.c.l.b16 %v1083
      %v1125 = vunpack.c.l.b16 %v1084
      %v1126 = vunpack.c.l.b16 %v1085
      %v1127 = vunpack.c.l.b16 %v1086
      %v1128 = vunpack.c.l.b16 %v1087
      %v1129 = vunpack.c.l.b16 %v1088
      %v1130 = vunpack.c.l.b16 %v1089
      %v1131 = vunpack.c.l.b16 %v1090
      %v1132 = vunpack.c.l.b16 %v1091
      %v1133 = vunpack.c.l.b16 %v1092
      %v1134 = vunpack.c.l.b16 %v1093
      %v1135 = vunpack.c.l.b16 %v1094
      %v1136 = vunpack.c.l.b16 %v1095
      %v1137 = vunpack.c.l.b16 %v1096
      %v1138 = vunpack.c.l.b16 %v1097
      %v1139 = vunpack.c.l.b16 %v1098
      %v1140 = vpack.c.b16 %v1125, %v1124
      %v1141 = vpack.c.b16 %v1127, %v1126
      %v1142 = vpack.c.b16 %v1129, %v1128
      %v1143 = vpack.c.b16 %v1131, %v1130
      %v1144 = vpack.c.b16 %v1133, %v1132
      %v1145 = vpack.c.b16 %v1135, %v1134
      %v1146 = vpack.c.b16 %v1137, %v1136
      %v1147 = vpack.c.b16 %v1139, %v1138
      %1156 = vmatprep.subr.bf16.mxu0 0
      %1157 = vmatpush1.bf16.msra.mxu0 %v1140
      %1158 = vmatprep.subr.bf16.mxu0 0
      %1159 = vmatpush1.bf16.msra.mxu0 %v1141
      %1160 = vmatprep.subr.bf16.mxu0 0
      %1161 = vmatpush1.bf16.msra.mxu0 %v1142
      %1162 = vmatprep.subr.bf16.mxu0 0
      %1163 = vmatpush1.bf16.msra.mxu0 %v1143
      %1164 = vmatprep.subr.bf16.mxu0 0
      %1165 = vmatpush1.bf16.msra.mxu0 %v1144
      %1166 = vmatprep.subr.bf16.mxu0 0
      %1167 = vmatpush1.bf16.msra.mxu0 %v1145
      %1168 = vmatprep.subr.bf16.mxu0 0
      %1169 = vmatpush1.bf16.msra.mxu0 %v1146
      %1170 = vmatprep.subr.bf16.mxu0 0
      %1171 = vmatpush1.bf16.msra.mxu0 %v1147
      %1172 = vmatprep.subr.bf16.mxu0 0
      %1173 = vmatpush1.bf16.msra.mxu0 0
      %1174 = vmatprep.subr.bf16.mxu0 0
      %1175 = vmatpush1.bf16.msra.mxu0 0
      %1176 = vmatprep.subr.bf16.mxu0 0
      %1177 = vmatpush1.bf16.msra.mxu0 0
      %1178 = vmatprep.subr.bf16.mxu0 0
      %1179 = vmatpush1.bf16.msra.mxu0 0
      %1180 = vmatprep.subr.bf16.mxu0 0
      %1181 = vmatpush1.bf16.msra.mxu0 0
      %1182 = vmatprep.subr.bf16.mxu0 0
      %1183 = vmatpush1.bf16.msra.mxu0 0
      %1184 = vmatprep.subr.bf16.mxu0 0
      %1185 = vmatpush1.bf16.msra.mxu0 0
      %1186 = vmatprep.subr.bf16.mxu0 0
      %1187 = vmatpush1.bf16.msra.mxu0 0
      %1188 = vmatprep.mubr.bf16.mxu0 0
      %1189 = vmatmul.mubr.bf16.gmra.mrb[0].mxu0 %v1100
      %v1190 = vpop.f32.mrb[0].mxu0
      %v1191 = vadd.f32 0.0, %v1190
      %v1192 = vpop.f32.mrb[0].mxu0
      %v1193 = vpop.f32.mrb[0].mxu0
      %v1194 = vadd.f32 0.0, %v1193
      %v1195 = vpop.f32.mrb[0].mxu0
      %1196 = vmatprep.mubr.bf16.mxu0 0
      %1197 = vmatmul.mubr.bf16.gmra.mrb[0].mxu0 %v1101
      %v1198 = vpop.f32.mrb[0].mxu0
      %v1199 = vadd.f32 0.0, %v1198
      %v1200 = vpop.f32.mrb[0].mxu0
      %v1201 = vpop.f32.mrb[0].mxu0
      %v1202 = vadd.f32 0.0, %v1201
      %v1203 = vpop.f32.mrb[0].mxu0
      %1204 = vmatprep.mubr.bf16.mxu0 0
      %1205 = vmatmul.mubr.bf16.gmra.mrb[0].mxu0 %v1102
      %v1206 = vpop.f32.mrb[0].mxu0
      %v1207 = vadd.f32 0.0, %v1206
      %v1208 = vpop.f32.mrb[0].mxu0
      %v1209 = vpop.f32.mrb[0].mxu0
      %v1210 = vadd.f32 0.0, %v1209
      %v1211 = vpop.f32.mrb[0].mxu0
      %1212 = vmatprep.mubr.bf16.mxu0 0
      %1213 = vmatmul.mubr.bf16.gmra.mrb[0].mxu0 %v1103
      %v1214 = vpop.f32.mrb[0].mxu0
      %v1215 = vadd.f32 0.0, %v1214
      %v1216 = vpop.f32.mrb[0].mxu0
      %v1217 = vpop.f32.mrb[0].mxu0
      %v1218 = vadd.f32 0.0, %v1217
      %v1219 = vpop.f32.mrb[0].mxu0
      %1220 = vdwg.mxu0
      %v1221 = vadd.f32 %v1058, %v1191
      %v1222 = vadd.f32 %v1059, %v1194
      %v1223 = vadd.f32 %v1060, %v1199
      %v1224 = vadd.f32 %v1061, %v1202
      %v1225 = vadd.f32 %v1062, %v1207
      %v1226 = vadd.f32 %v1063, %v1210
      %v1227 = vadd.f32 %v1064, %v1215
      %v1228 = vadd.f32 %v1065, %v1218
      %v1230 = vrot.slane %v294, 5
      %v1231 = vrot.slane %v1230, 4
      %v1232 = vrot.slane %v295, 5
      %v1233 = vsel %vm727, %v1231, %v1232
      %s1234 = sadd.s32 80, %s298
      %s1235 = smul.addr %s1234, 4
      %s1236 = scalar_lea.vmem %s1, %s1235
      %v1237 = vld [vmem:[%s1236] sm:$0xf]
      %v1238 = vld [vmem:[%s1236 + $0x4] sm:$0xf]
      %v1239 = vld [vmem:[%s1236 + $0x8] sm:$0xf]
      %v1240 = vld [vmem:[%s1236 + $0xc] sm:$0xf]
      %v1241 = vld [vmem:[%s1236 + $0x10] sm:$0xf]
      %v1242 = vld [vmem:[%s1236 + $0x14] sm:$0xf]
      %v1243 = vld [vmem:[%s1236 + $0x18] sm:$0xf]
      %v1244 = vld [vmem:[%s1236 + $0x1c] sm:$0xf]
      %v1245 = vld [vmem:[%s1236 + $0x20] sm:$0xf]
      %v1246 = vld [vmem:[%s1236 + $0x24] sm:$0xf]
      %v1247 = vld [vmem:[%s1236 + $0x28] sm:$0xf]
      %v1248 = vld [vmem:[%s1236 + $0x2c] sm:$0xf]
      %v1249 = vld [vmem:[%s1236 + $0x30] sm:$0xf]
      %v1250 = vld [vmem:[%s1236 + $0x34] sm:$0xf]
      %v1251 = vld [vmem:[%s1236 + $0x38] sm:$0xf]
      %v1252 = vld [vmem:[%s1236 + $0x3c] sm:$0xf]
      %v1253 = vunpack.c.l.b16 %v1233
      %v1254 = vpack.c.b16 %v781, %v780
      %v1255 = vpack.c.b16 %v783, %v782
      %v1256 = vpack.c.b16 %v785, %v784
      %v1257 = vpack.c.b16 %v1253, %v786
      %v1278 = vunpack.c.l.b16 %v1237
      %v1279 = vunpack.c.l.b16 %v1238
      %v1280 = vunpack.c.l.b16 %v1239
      %v1281 = vunpack.c.l.b16 %v1240
      %v1282 = vunpack.c.l.b16 %v1241
      %v1283 = vunpack.c.l.b16 %v1242
      %v1284 = vunpack.c.l.b16 %v1243
      %v1285 = vunpack.c.l.b16 %v1244
      %v1286 = vunpack.c.l.b16 %v1245
      %v1287 = vunpack.c.l.b16 %v1246
      %v1288 = vunpack.c.l.b16 %v1247
      %v1289 = vunpack.c.l.b16 %v1248
      %v1290 = vunpack.c.l.b16 %v1249
      %v1291 = vunpack.c.l.b16 %v1250
      %v1292 = vunpack.c.l.b16 %v1251
      %v1293 = vunpack.c.l.b16 %v1252
      %v1294 = vpack.c.b16 %v1279, %v1278
      %v1295 = vpack.c.b16 %v1281, %v1280
      %v1296 = vpack.c.b16 %v1283, %v1282
      %v1297 = vpack.c.b16 %v1285, %v1284
      %v1298 = vpack.c.b16 %v1287, %v1286
      %v1299 = vpack.c.b16 %v1289, %v1288
      %v1300 = vpack.c.b16 %v1291, %v1290
      %v1301 = vpack.c.b16 %v1293, %v1292
      %1310 = vmatprep.subr.bf16.mxu0 0
      %1311 = vmatpush1.bf16.msra.mxu0 %v1294
      %1312 = vmatprep.subr.bf16.mxu0 0
      %1313 = vmatpush1.bf16.msra.mxu0 %v1295
      %1314 = vmatprep.subr.bf16.mxu0 0
      %1315 = vmatpush1.bf16.msra.mxu0 %v1296
      %1316 = vmatprep.subr.bf16.mxu0 0
      %1317 = vmatpush1.bf16.msra.mxu0 %v1297
      %1318 = vmatprep.subr.bf16.mxu0 0
      %1319 = vmatpush1.bf16.msra.mxu0 %v1298
      %1320 = vmatprep.subr.bf16.mxu0 0
      %1321 = vmatpush1.bf16.msra.mxu0 %v1299
      %1322 = vmatprep.subr.bf16.mxu0 0
      %1323 = vmatpush1.bf16.msra.mxu0 %v1300
      %1324 = vmatprep.subr.bf16.mxu0 0
      %1325 = vmatpush1.bf16.msra.mxu0 %v1301
      %1326 = vmatprep.subr.bf16.mxu0 0
      %1327 = vmatpush1.bf16.msra.mxu0 0
      %1328 = vmatprep.subr.bf16.mxu0 0
      %1329 = vmatpush1.bf16.msra.mxu0 0
      %1330 = vmatprep.subr.bf16.mxu0 0
      %1331 = vmatpush1.bf16.msra.mxu0 0
      %1332 = vmatprep.subr.bf16.mxu0 0
      %1333 = vmatpush1.bf16.msra.mxu0 0
      %1334 = vmatprep.subr.bf16.mxu0 0
      %1335 = vmatpush1.bf16.msra.mxu0 0
      %1336 = vmatprep.subr.bf16.mxu0 0
      %1337 = vmatpush1.bf16.msra.mxu0 0
      %1338 = vmatprep.subr.bf16.mxu0 0
      %1339 = vmatpush1.bf16.msra.mxu0 0
      %1340 = vmatprep.subr.bf16.mxu0 0
      %1341 = vmatpush1.bf16.msra.mxu0 0
      %1342 = vmatprep.mubr.bf16.mxu0 0
      %1343 = vmatmul.mubr.bf16.gmra.mrb[0].mxu0 %v1254
      %v1344 = vpop.f32.mrb[0].mxu0
      %v1345 = vadd.f32 0.0, %v1344
      %v1346 = vpop.f32.mrb[0].mxu0
      %v1347 = vpop.f32.mrb[0].mxu0
      %v1348 = vadd.f32 0.0, %v1347
      %v1349 = vpop.f32.mrb[0].mxu0
      %1350 = vmatprep.mubr.bf16.mxu0 0
      %1351 = vmatmul.mubr.bf16.gmra.mrb[0].mxu0 %v1255
      %v1352 = vpop.f32.mrb[0].mxu0
      %v1353 = vadd.f32 0.0, %v1352
      %v1354 = vpop.f32.mrb[0].mxu0
      %v1355 = vpop.f32.mrb[0].mxu0
      %v1356 = vadd.f32 0.0, %v1355
      %v1357 = vpop.f32.mrb[0].mxu0
      %1358 = vmatprep.mubr.bf16.mxu0 0
      %1359 = vmatmul.mubr.bf16.gmra.mrb[0].mxu0 %v1256
      %v1360 = vpop.f32.mrb[0].mxu0
      %v1361 = vadd.f32 0.0, %v1360
      %v1362 = vpop.f32.mrb[0].mxu0
      %v1363 = vpop.f32.mrb[0].mxu0
      %v1364 = vadd.f32 0.0, %v1363
      %v1365 = vpop.f32.mrb[0].mxu0
      %1366 = vmatprep.mubr.bf16.mxu0 0
      %1367 = vmatmul.mubr.bf16.gmra.mrb[0].mxu0 %v1257
      %v1368 = vpop.f32.mrb[0].mxu0
      %v1369 = vadd.f32 0.0, %v1368
      %v1370 = vpop.f32.mrb[0].mxu0
      %v1371 = vpop.f32.mrb[0].mxu0
      %v1372 = vadd.f32 0.0, %v1371
      %v1373 = vpop.f32.mrb[0].mxu0
      %1374 = vdwg.mxu0
      %v1375 = vadd.f32 %v1221, %v1345
      %v1376 = vadd.f32 %v1222, %v1348
      %v1377 = vadd.f32 %v1223, %v1353
      %v1378 = vadd.f32 %v1224, %v1356
      %v1379 = vadd.f32 %v1225, %v1361
      %v1380 = vadd.f32 %v1226, %v1364
      %v1381 = vadd.f32 %v1227, %v1369
      %v1382 = vadd.f32 %v1228, %v1372
      %s1383 = sadd.s32 96, %s298
      %s1384 = smul.addr %s1383, 4
      %s1385 = scalar_lea.vmem %s1, %s1384
      %v1386 = vld [vmem:[%s1385] sm:$0xf]
      %v1387 = vld [vmem:[%s1385 + $0x4] sm:$0xf]
      %v1388 = vld [vmem:[%s1385 + $0x8] sm:$0xf]
      %v1389 = vld [vmem:[%s1385 + $0xc] sm:$0xf]
      %v1390 = vld [vmem:[%s1385 + $0x10] sm:$0xf]
      %v1391 = vld [vmem:[%s1385 + $0x14] sm:$0xf]
      %v1392 = vld [vmem:[%s1385 + $0x18] sm:$0xf]
      %v1393 = vld [vmem:[%s1385 + $0x1c] sm:$0xf]
      %v1394 = vld [vmem:[%s1385 + $0x20] sm:$0xf]
      %v1395 = vld [vmem:[%s1385 + $0x24] sm:$0xf]
      %v1396 = vld [vmem:[%s1385 + $0x28] sm:$0xf]
      %v1397 = vld [vmem:[%s1385 + $0x2c] sm:$0xf]
      %v1398 = vld [vmem:[%s1385 + $0x30] sm:$0xf]
      %v1399 = vld [vmem:[%s1385 + $0x34] sm:$0xf]
      %v1400 = vld [vmem:[%s1385 + $0x38] sm:$0xf]
      %v1401 = vld [vmem:[%s1385 + $0x3c] sm:$0xf]
      %v1403 = vunpack.c.l.b16 %v296
      %v1404 = vpack.c.b16 %v1403, %v936
      %v1422 = vunpack.c.l.b16 %v1386
      %v1423 = vunpack.c.l.b16 %v1387
      %v1424 = vunpack.c.l.b16 %v1388
      %v1425 = vunpack.c.l.b16 %v1389
      %v1426 = vunpack.c.l.b16 %v1390
      %v1427 = vunpack.c.l.b16 %v1391
      %v1428 = vunpack.c.l.b16 %v1392
      %v1429 = vunpack.c.l.b16 %v1393
      %v1430 = vunpack.c.l.b16 %v1394
      %v1431 = vunpack.c.l.b16 %v1395
      %v1432 = vunpack.c.l.b16 %v1396
      %v1433 = vunpack.c.l.b16 %v1397
      %v1434 = vunpack.c.l.b16 %v1398
      %v1435 = vunpack.c.l.b16 %v1399
      %v1436 = vunpack.c.l.b16 %v1400
      %v1437 = vunpack.c.l.b16 %v1401
      %v1438 = vpack.c.b16 %v1423, %v1422
      %v1439 = vpack.c.b16 %v1425, %v1424
      %v1440 = vpack.c.b16 %v1427, %v1426
      %v1441 = vpack.c.b16 %v1429, %v1428
      %v1442 = vpack.c.b16 %v1431, %v1430
      %v1443 = vpack.c.b16 %v1433, %v1432
      %v1444 = vpack.c.b16 %v1435, %v1434
      %v1445 = vpack.c.b16 %v1437, %v1436
      %1454 = vmatprep.subr.bf16.mxu0 0
      %1455 = vmatpush1.bf16.msra.mxu0 %v1438
      %1456 = vmatprep.subr.bf16.mxu0 0
      %1457 = vmatpush1.bf16.msra.mxu0 %v1439
      %1458 = vmatprep.subr.bf16.mxu0 0
      %1459 = vmatpush1.bf16.msra.mxu0 %v1440
      %1460 = vmatprep.subr.bf16.mxu0 0
      %1461 = vmatpush1.bf16.msra.mxu0 %v1441
      %1462 = vmatprep.subr.bf16.mxu0 0
      %1463 = vmatpush1.bf16.msra.mxu0 %v1442
      %1464 = vmatprep.subr.bf16.mxu0 0
      %1465 = vmatpush1.bf16.msra.mxu0 %v1443
      %1466 = vmatprep.subr.bf16.mxu0 0
      %1467 = vmatpush1.bf16.msra.mxu0 %v1444
      %1468 = vmatprep.subr.bf16.mxu0 0
      %1469 = vmatpush1.bf16.msra.mxu0 %v1445
      %1470 = vmatprep.subr.bf16.mxu0 0
      %1471 = vmatpush1.bf16.msra.mxu0 0
      %1472 = vmatprep.subr.bf16.mxu0 0
      %1473 = vmatpush1.bf16.msra.mxu0 0
      %1474 = vmatprep.subr.bf16.mxu0 0
      %1475 = vmatpush1.bf16.msra.mxu0 0
      %1476 = vmatprep.subr.bf16.mxu0 0
      %1477 = vmatpush1.bf16.msra.mxu0 0
      %1478 = vmatprep.subr.bf16.mxu0 0
      %1479 = vmatpush1.bf16.msra.mxu0 0
      %1480 = vmatprep.subr.bf16.mxu0 0
      %1481 = vmatpush1.bf16.msra.mxu0 0
      %1482 = vmatprep.subr.bf16.mxu0 0
      %1483 = vmatpush1.bf16.msra.mxu0 0
      %1484 = vmatprep.subr.bf16.mxu0 0
      %1485 = vmatpush1.bf16.msra.mxu0 0
      %1486 = vmatprep.mubr.bf16.mxu0 0
      %1487 = vmatmul.mubr.bf16.gmra.mrb[0].mxu0 %v597
      %v1488 = vpop.f32.mrb[0].mxu0
      %v1489 = vadd.f32 0.0, %v1488
      %v1490 = vpop.f32.mrb[0].mxu0
      %v1491 = vpop.f32.mrb[0].mxu0
      %v1492 = vadd.f32 0.0, %v1491
      %v1493 = vpop.f32.mrb[0].mxu0
      %1494 = vmatprep.mubr.bf16.mxu0 0
      %1495 = vmatmul.mubr.bf16.gmra.mrb[0].mxu0 %v598
      %v1496 = vpop.f32.mrb[0].mxu0
      %v1497 = vadd.f32 0.0, %v1496
      %v1498 = vpop.f32.mrb[0].mxu0
      %v1499 = vpop.f32.mrb[0].mxu0
      %v1500 = vadd.f32 0.0, %v1499
      %v1501 = vpop.f32.mrb[0].mxu0
      %1502 = vmatprep.mubr.bf16.mxu0 0
      %1503 = vmatmul.mubr.bf16.gmra.mrb[0].mxu0 %v599
      %v1504 = vpop.f32.mrb[0].mxu0
      %v1505 = vadd.f32 0.0, %v1504
      %v1506 = vpop.f32.mrb[0].mxu0
      %v1507 = vpop.f32.mrb[0].mxu0
      %v1508 = vadd.f32 0.0, %v1507
      %v1509 = vpop.f32.mrb[0].mxu0
      %1510 = vmatprep.mubr.bf16.mxu0 0
      %1511 = vmatmul.mubr.bf16.gmra.mrb[0].mxu0 %v1404
      %v1512 = vpop.f32.mrb[0].mxu0
      %v1513 = vadd.f32 0.0, %v1512
      %v1514 = vpop.f32.mrb[0].mxu0
      %v1515 = vpop.f32.mrb[0].mxu0
      %v1516 = vadd.f32 0.0, %v1515
      %v1517 = vpop.f32.mrb[0].mxu0
      %1518 = vdwg.mxu0
      %v1519 = vadd.f32 %v1375, %v1489
      %v1520 = vadd.f32 %v1376, %v1492
      %v1521 = vadd.f32 %v1377, %v1497
      %v1522 = vadd.f32 %v1378, %v1500
      %v1523 = vadd.f32 %v1379, %v1505
      %v1524 = vadd.f32 %v1380, %v1508
      %v1525 = vadd.f32 %v1381, %v1513
      %v1526 = vadd.f32 %v1382, %v1516
      %v1528 = vshrl.u32 %v296, 16
      %v1530 = vrot.slane %v1528, 4
      %v1531 = vshll.u32 %v296, 16
      %v1533 = vrot.slane %v1531, 5
      %v1534 = vor.u32 %v1530, %v1533
      %v1535 = vrot.slane %v1534, 4
      %v1537 = vshll.u32 %v297, 16
      %v1539 = vrot.slane %v1537, 5
      %v1540 = vsel %vm319, %v1535, %v1539
      %s1541 = sadd.s32 112, %s298
      %s1542 = smul.addr %s1541, 4
      %s1543 = scalar_lea.vmem %s1, %s1542
      %v1544 = vld [vmem:[%s1543] sm:$0xf]
      %v1545 = vld [vmem:[%s1543 + $0x4] sm:$0xf]
      %v1546 = vld [vmem:[%s1543 + $0x8] sm:$0xf]
      %v1547 = vld [vmem:[%s1543 + $0xc] sm:$0xf]
      %v1548 = vld [vmem:[%s1543 + $0x10] sm:$0xf]
      %v1549 = vld [vmem:[%s1543 + $0x14] sm:$0xf]
      %v1550 = vld [vmem:[%s1543 + $0x18] sm:$0xf]
      %v1551 = vld [vmem:[%s1543 + $0x1c] sm:$0xf]
      %v1552 = vld [vmem:[%s1543 + $0x20] sm:$0xf]
      %v1553 = vld [vmem:[%s1543 + $0x24] sm:$0xf]
      %v1554 = vld [vmem:[%s1543 + $0x28] sm:$0xf]
      %v1555 = vld [vmem:[%s1543 + $0x2c] sm:$0xf]
      %v1556 = vld [vmem:[%s1543 + $0x30] sm:$0xf]
      %v1557 = vld [vmem:[%s1543 + $0x34] sm:$0xf]
      %v1558 = vld [vmem:[%s1543 + $0x38] sm:$0xf]
      %v1559 = vld [vmem:[%s1543 + $0x3c] sm:$0xf]
      %v1560 = vunpack.c.l.b16 %v1540
      %v1561 = vpack.c.b16 %v1560, %v1099
      %v1579 = vunpack.c.l.b16 %v1544
      %v1580 = vunpack.c.l.b16 %v1545
      %v1581 = vunpack.c.l.b16 %v1546
      %v1582 = vunpack.c.l.b16 %v1547
      %v1583 = vunpack.c.l.b16 %v1548
      %v1584 = vunpack.c.l.b16 %v1549
      %v1585 = vunpack.c.l.b16 %v1550
      %v1586 = vunpack.c.l.b16 %v1551
      %v1587 = vunpack.c.l.b16 %v1552
      %v1588 = vunpack.c.l.b16 %v1553
      %v1589 = vunpack.c.l.b16 %v1554
      %v1590 = vunpack.c.l.b16 %v1555
      %v1591 = vunpack.c.l.b16 %v1556
      %v1592 = vunpack.c.l.b16 %v1557
      %v1593 = vunpack.c.l.b16 %v1558
      %v1594 = vunpack.c.l.b16 %v1559
      %v1595 = vpack.c.b16 %v1580, %v1579
      %v1596 = vpack.c.b16 %v1582, %v1581
      %v1597 = vpack.c.b16 %v1584, %v1583
      %v1598 = vpack.c.b16 %v1586, %v1585
      %v1599 = vpack.c.b16 %v1588, %v1587
      %v1600 = vpack.c.b16 %v1590, %v1589
      %v1601 = vpack.c.b16 %v1592, %v1591
      %v1602 = vpack.c.b16 %v1594, %v1593
      %1611 = vmatprep.subr.bf16.mxu0 0
      %1612 = vmatpush1.bf16.msra.mxu0 %v1595
      %1613 = vmatprep.subr.bf16.mxu0 0
      %1614 = vmatpush1.bf16.msra.mxu0 %v1596
      %1615 = vmatprep.subr.bf16.mxu0 0
      %1616 = vmatpush1.bf16.msra.mxu0 %v1597
      %1617 = vmatprep.subr.bf16.mxu0 0
      %1618 = vmatpush1.bf16.msra.mxu0 %v1598
      %1619 = vmatprep.subr.bf16.mxu0 0
      %1620 = vmatpush1.bf16.msra.mxu0 %v1599
      %1621 = vmatprep.subr.bf16.mxu0 0
      %1622 = vmatpush1.bf16.msra.mxu0 %v1600
      %1623 = vmatprep.subr.bf16.mxu0 0
      %1624 = vmatpush1.bf16.msra.mxu0 %v1601
      %1625 = vmatprep.subr.bf16.mxu0 0
      %1626 = vmatpush1.bf16.msra.mxu0 %v1602
      %1627 = vmatprep.subr.bf16.mxu0 0
      %1628 = vmatpush1.bf16.msra.mxu0 0
      %1629 = vmatprep.subr.bf16.mxu0 0
      %1630 = vmatpush1.bf16.msra.mxu0 0
      %1631 = vmatprep.subr.bf16.mxu0 0
      %1632 = vmatpush1.bf16.msra.mxu0 0
      %1633 = vmatprep.subr.bf16.mxu0 0
      %1634 = vmatpush1.bf16.msra.mxu0 0
      %1635 = vmatprep.subr.bf16.mxu0 0
      %1636 = vmatpush1.bf16.msra.mxu0 0
      %1637 = vmatprep.subr.bf16.mxu0 0
      %1638 = vmatpush1.bf16.msra.mxu0 0
      %1639 = vmatprep.subr.bf16.mxu0 0
      %1640 = vmatpush1.bf16.msra.mxu0 0
      %1641 = vmatprep.subr.bf16.mxu0 0
      %1642 = vmatpush1.bf16.msra.mxu0 0
      %1643 = vmatprep.mubr.bf16.mxu0 0
      %1644 = vmatmul.mubr.bf16.gmra.mrb[0].mxu0 %v460
      %v1645 = vpop.f32.mrb[0].mxu0
      %v1646 = vadd.f32 0.0, %v1645
      %v1647 = vpop.f32.mrb[0].mxu0
      %v1648 = vpop.f32.mrb[0].mxu0
      %v1649 = vadd.f32 0.0, %v1648
      %v1650 = vpop.f32.mrb[0].mxu0
      %1651 = vmatprep.mubr.bf16.mxu0 0
      %1652 = vmatmul.mubr.bf16.gmra.mrb[0].mxu0 %v461
      %v1653 = vpop.f32.mrb[0].mxu0
      %v1654 = vadd.f32 0.0, %v1653
      %v1655 = vpop.f32.mrb[0].mxu0
      %v1656 = vpop.f32.mrb[0].mxu0
      %v1657 = vadd.f32 0.0, %v1656
      %v1658 = vpop.f32.mrb[0].mxu0
      %1659 = vmatprep.mubr.bf16.mxu0 0
      %1660 = vmatmul.mubr.bf16.gmra.mrb[0].mxu0 %v462
      %v1661 = vpop.f32.mrb[0].mxu0
      %v1662 = vadd.f32 0.0, %v1661
      %v1663 = vpop.f32.mrb[0].mxu0
      %v1664 = vpop.f32.mrb[0].mxu0
      %v1665 = vadd.f32 0.0, %v1664
      %v1666 = vpop.f32.mrb[0].mxu0
      %1667 = vmatprep.mubr.bf16.mxu0 0
      %1668 = vmatmul.mubr.bf16.gmra.mrb[0].mxu0 %v1561
      %v1669 = vpop.f32.mrb[0].mxu0
      %v1670 = vadd.f32 0.0, %v1669
      %v1671 = vpop.f32.mrb[0].mxu0
      %v1672 = vpop.f32.mrb[0].mxu0
      %v1673 = vadd.f32 0.0, %v1672
      %v1674 = vpop.f32.mrb[0].mxu0
      %1675 = vdwg.mxu0
      %v1676 = vadd.f32 %v1519, %v1646
      %v1677 = vadd.f32 %v1520, %v1649
      %v1678 = vadd.f32 %v1521, %v1654
      %v1679 = vadd.f32 %v1522, %v1657
      %v1680 = vadd.f32 %v1523, %v1662
      %v1681 = vadd.f32 %v1524, %v1665
      %v1682 = vadd.f32 %v1525, %v1670
      %v1683 = vadd.f32 %v1526, %v1673
      %v1685 = vrot.slane %v296, 5
      %v1686 = vrot.slane %v1685, 4
      %v1687 = vrot.slane %v297, 5
      %v1688 = vsel %vm727, %v1686, %v1687
      %s1689 = sadd.s32 128, %s298
      %s1690 = smul.addr %s1689, 4
      %s1691 = scalar_lea.vmem %s1, %s1690
      %v1692 = vld [vmem:[%s1691] sm:$0xf]
      %v1693 = vld [vmem:[%s1691 + $0x4] sm:$0xf]
      %v1694 = vld [vmem:[%s1691 + $0x8] sm:$0xf]
      %v1695 = vld [vmem:[%s1691 + $0xc] sm:$0xf]
      %v1696 = vld [vmem:[%s1691 + $0x10] sm:$0xf]
      %v1697 = vld [vmem:[%s1691 + $0x14] sm:$0xf]
      %v1698 = vld [vmem:[%s1691 + $0x18] sm:$0xf]
      %v1699 = vld [vmem:[%s1691 + $0x1c] sm:$0xf]
      %v1700 = vld [vmem:[%s1691 + $0x20] sm:$0xf]
      %v1701 = vld [vmem:[%s1691 + $0x24] sm:$0xf]
      %v1702 = vld [vmem:[%s1691 + $0x28] sm:$0xf]
      %v1703 = vld [vmem:[%s1691 + $0x2c] sm:$0xf]
      %v1704 = vld [vmem:[%s1691 + $0x30] sm:$0xf]
      %v1705 = vld [vmem:[%s1691 + $0x34] sm:$0xf]
      %v1706 = vld [vmem:[%s1691 + $0x38] sm:$0xf]
      %v1707 = vld [vmem:[%s1691 + $0x3c] sm:$0xf]
      %v1708 = vunpack.c.l.b16 %v1688
      %v1709 = vpack.c.b16 %v1708, %v1253
      %v1727 = vunpack.c.l.b16 %v1692
      %v1728 = vunpack.c.l.b16 %v1693
      %v1729 = vunpack.c.l.b16 %v1694
      %v1730 = vunpack.c.l.b16 %v1695
      %v1731 = vunpack.c.l.b16 %v1696
      %v1732 = vunpack.c.l.b16 %v1697
      %v1733 = vunpack.c.l.b16 %v1698
      %v1734 = vunpack.c.l.b16 %v1699
      %v1735 = vunpack.c.l.b16 %v1700
      %v1736 = vunpack.c.l.b16 %v1701
      %v1737 = vunpack.c.l.b16 %v1702
      %v1738 = vunpack.c.l.b16 %v1703
      %v1739 = vunpack.c.l.b16 %v1704
      %v1740 = vunpack.c.l.b16 %v1705
      %v1741 = vunpack.c.l.b16 %v1706
      %v1742 = vunpack.c.l.b16 %v1707
      %v1743 = vpack.c.b16 %v1728, %v1727
      %v1744 = vpack.c.b16 %v1730, %v1729
      %v1745 = vpack.c.b16 %v1732, %v1731
      %v1746 = vpack.c.b16 %v1734, %v1733
      %v1747 = vpack.c.b16 %v1736, %v1735
      %v1748 = vpack.c.b16 %v1738, %v1737
      %v1749 = vpack.c.b16 %v1740, %v1739
      %v1750 = vpack.c.b16 %v1742, %v1741
      %1759 = vmatprep.subr.bf16.mxu0 0
      %1760 = vmatpush1.bf16.msra.mxu0 %v1743
      %1761 = vmatprep.subr.bf16.mxu0 0
      %1762 = vmatpush1.bf16.msra.mxu0 %v1744
      %1763 = vmatprep.subr.bf16.mxu0 0
      %1764 = vmatpush1.bf16.msra.mxu0 %v1745
      %1765 = vmatprep.subr.bf16.mxu0 0
      %1766 = vmatpush1.bf16.msra.mxu0 %v1746
      %1767 = vmatprep.subr.bf16.mxu0 0
      %1768 = vmatpush1.bf16.msra.mxu0 %v1747
      %1769 = vmatprep.subr.bf16.mxu0 0
      %1770 = vmatpush1.bf16.msra.mxu0 %v1748
      %1771 = vmatprep.subr.bf16.mxu0 0
      %1772 = vmatpush1.bf16.msra.mxu0 %v1749
      %1773 = vmatprep.subr.bf16.mxu0 0
      %1774 = vmatpush1.bf16.msra.mxu0 %v1750
      %1775 = vmatprep.subr.bf16.mxu0 0
      %1776 = vmatpush1.bf16.msra.mxu0 0
      %1777 = vmatprep.subr.bf16.mxu0 0
      %1778 = vmatpush1.bf16.msra.mxu0 0
      %1779 = vmatprep.subr.bf16.mxu0 0
      %1780 = vmatpush1.bf16.msra.mxu0 0
      %1781 = vmatprep.subr.bf16.mxu0 0
      %1782 = vmatpush1.bf16.msra.mxu0 0
      %1783 = vmatprep.subr.bf16.mxu0 0
      %1784 = vmatpush1.bf16.msra.mxu0 0
      %1785 = vmatprep.subr.bf16.mxu0 0
      %1786 = vmatpush1.bf16.msra.mxu0 0
      %1787 = vmatprep.subr.bf16.mxu0 0
      %1788 = vmatpush1.bf16.msra.mxu0 0
      %1789 = vmatprep.subr.bf16.mxu0 0
      %1790 = vmatpush1.bf16.msra.mxu0 0
      %1791 = vmatprep.mubr.bf16.mxu0 0
      %1792 = vmatmul.mubr.bf16.gmra.mrb[0].mxu0 %v788
      %v1793 = vpop.f32.mrb[0].mxu0
      %v1794 = vadd.f32 0.0, %v1793
      %v1795 = vpop.f32.mrb[0].mxu0
      %v1796 = vpop.f32.mrb[0].mxu0
      %v1797 = vadd.f32 0.0, %v1796
      %v1798 = vpop.f32.mrb[0].mxu0
      %1799 = vmatprep.mubr.bf16.mxu0 0
      %1800 = vmatmul.mubr.bf16.gmra.mrb[0].mxu0 %v789
      %v1801 = vpop.f32.mrb[0].mxu0
      %v1802 = vadd.f32 0.0, %v1801
      %v1803 = vpop.f32.mrb[0].mxu0
      %v1804 = vpop.f32.mrb[0].mxu0
      %v1805 = vadd.f32 0.0, %v1804
      %v1806 = vpop.f32.mrb[0].mxu0
      %1807 = vmatprep.mubr.bf16.mxu0 0
      %1808 = vmatmul.mubr.bf16.gmra.mrb[0].mxu0 %v790
      %v1809 = vpop.f32.mrb[0].mxu0
      %v1810 = vadd.f32 0.0, %v1809
      %v1811 = vpop.f32.mrb[0].mxu0
      %v1812 = vpop.f32.mrb[0].mxu0
      %v1813 = vadd.f32 0.0, %v1812
      %v1814 = vpop.f32.mrb[0].mxu0
      %1815 = vmatprep.mubr.bf16.mxu0 0
      %1816 = vmatmul.mubr.bf16.gmra.mrb[0].mxu0 %v1709
      %v1817 = vpop.f32.mrb[0].mxu0
      %v1818 = vadd.f32 0.0, %v1817
      %v1819 = vpop.f32.mrb[0].mxu0
      %v1820 = vpop.f32.mrb[0].mxu0
      %v1821 = vadd.f32 0.0, %v1820
      %v1822 = vpop.f32.mrb[0].mxu0
      %1823 = vdwg.mxu0
      %v1824 = vadd.f32 %v1676, %v1794
      %v1825 = vadd.f32 %v1677, %v1797
      %v1826 = vadd.f32 %v1678, %v1802
      %v1827 = vadd.f32 %v1679, %v1805
      %v1828 = vadd.f32 %v1680, %v1810
      %v1829 = vadd.f32 %v1681, %v1813
      %v1830 = vadd.f32 %v1682, %v1818
      %v1831 = vadd.f32 %v1683, %v1821
      %v1832 = vld [vmem:[#allocation2] sm:$0xff]
      %v1833 = vld [vmem:[#allocation2 + $0x8] sm:$0xff]
      %v1834 = vld [vmem:[#allocation2 + $0x10] sm:$0xff]
      %v1835 = vld [vmem:[#allocation2 + $0x18] sm:$0xff]
      %v1836 = vld [vmem:[#allocation2 + $0x20] sm:$0xff]
      %v1837 = vld [vmem:[#allocation2 + $0x28] sm:$0xff]
      %v1838 = vld [vmem:[#allocation2 + $0x30] sm:$0xff]
      %v1839 = vld [vmem:[#allocation2 + $0x38] sm:$0xff]
      %v1840 = vadd.f32 %v1832, %v1824
      %v1841 = vadd.f32 %v1833, %v1825
      %v1842 = vadd.f32 %v1834, %v1826
      %v1843 = vadd.f32 %v1835, %v1827
      %v1844 = vadd.f32 %v1836, %v1828
      %v1845 = vadd.f32 %v1837, %v1829
      %v1846 = vadd.f32 %v1838, %v1830
      %v1847 = vadd.f32 %v1839, %v1831
      %1848 = vst [vmem:[#allocation2] sm:$0xff] %v1840
      %1849 = vst [vmem:[#allocation2 + $0x8] sm:$0xff] %v1841
      %1850 = vst [vmem:[#allocation2 + $0x10] sm:$0xff] %v1842
      %1851 = vst [vmem:[#allocation2 + $0x18] sm:$0xff] %v1843
      %1852 = vst [vmem:[#allocation2 + $0x20] sm:$0xff] %v1844
      %1853 = vst [vmem:[#allocation2 + $0x28] sm:$0xff] %v1845
      %1854 = vst [vmem:[#allocation2 + $0x30] sm:$0xff] %v1846
      %1855 = vst [vmem:[#allocation2 + $0x38] sm:$0xff] %v1847
      %p1856 = scmp.eq.s32.totalorder %s23, 2
      // Predicated region
      $region41: #{encoder3d_forward.8} parent=31 // pred_check
        %p1857 = pneg %p1856
      $region42: #{encoder3d_forward.8} parent=31 // pred_check_branch
        %1859 = sbr.rel (%p1857) target = $region44
      $region43: #{encoder3d_forward.8} parent=31 // pred_region
        %v1860 = vld [vmem:[#allocation2] sm:$0xff]
        %v1861 = vld [vmem:[#allocation2 + $0x8] sm:$0xff]
        %v1862 = vld [vmem:[#allocation2 + $0x10] sm:$0xff]
        %v1863 = vld [vmem:[#allocation2 + $0x18] sm:$0xff]
        %v1864 = vld [vmem:[#allocation2 + $0x20] sm:$0xff]
        %v1865 = vld [vmem:[#allocation2 + $0x28] sm:$0xff]
        %v1866 = vld [vmem:[#allocation2 + $0x30] sm:$0xff]
        %v1867 = vld [vmem:[#allocation2 + $0x38] sm:$0xff]
        %v1868 = vld [vmem:[%s2] sm:$0x1]
        %v1870 = vlaneseq
        %v1871 = vshrl.u32 %v1870, 7
        %v1872 = vsub.s32 0, %v1871
        %v1873 = vrot.slane %v1868, %v1872
        %v1875 = vadd.f32 %v1860, %v1873
        %v1876 = vadd.f32 %v1861, %v1873
        %v1877 = vadd.f32 %v1862, %v1873
        %v1878 = vadd.f32 %v1863, %v1873
        %v1879 = vadd.f32 %v1864, %v1873
        %v1880 = vadd.f32 %v1865, %v1873
        %v1881 = vadd.f32 %v1866, %v1873
        %v1882 = vadd.f32 %v1867, %v1873
        %1883 = vst [vmem:[%s254] sm:$0xff] %v1875
        %1884 = vst [vmem:[%s254 + $0x8] sm:$0xff] %v1876
        %1885 = vst [vmem:[%s254 + $0x10] sm:$0xff] %v1877
        %1886 = vst [vmem:[%s254 + $0x18] sm:$0xff] %v1878
        %1887 = vst [vmem:[%s254 + $0x20] sm:$0xff] %v1879
        %1888 = vst [vmem:[%s254 + $0x28] sm:$0xff] %v1880
        %1889 = vst [vmem:[%s254 + $0x30] sm:$0xff] %v1881
        %1890 = vst [vmem:[%s254 + $0x38] sm:$0xff] %v1882
        %v1891 = vadd.f32 %v1875, %v1876
        %v1892 = vadd.f32 %v1891, %v1877
        %v1893 = vadd.f32 %v1892, %v1878
        %v1894 = vadd.f32 %v1893, %v1879
        %v1895 = vadd.f32 %v1894, %v1880
        %v1896 = vadd.f32 %v1895, %v1881
        %v1897 = vadd.f32 %v1896, %v1882
        %v1898 = vrot.slane %v1897, 4
        %v1899 = vadd.f32 %v1897, %v1898
        %v1900 = vrot.slane %v1899, 2
        %v1901 = vadd.f32 %v1899, %v1900
        %v1902 = vrot.slane %v1901, 1
        %v1903 = vadd.f32 %v1901, %v1902
        %v1904 = vmul.f32 %v1875, %v1875
        %v1905 = vmul.f32 %v1876, %v1876
        %v1906 = vmul.f32 %v1877, %v1877
        %v1907 = vmul.f32 %v1878, %v1878
        %v1908 = vmul.f32 %v1879, %v1879
        %v1909 = vmul.f32 %v1880, %v1880
        %v1910 = vmul.f32 %v1881, %v1881
        %v1911 = vmul.f32 %v1882, %v1882
        %v1912 = vadd.f32 %v1904, %v1905
        %v1913 = vadd.f32 %v1912, %v1906
        %v1914 = vadd.f32 %v1913, %v1907
        %v1915 = vadd.f32 %v1914, %v1908
        %v1916 = vadd.f32 %v1915, %v1909
        %v1917 = vadd.f32 %v1916, %v1910
        %v1918 = vadd.f32 %v1917, %v1911
        %v1919 = vrot.slane %v1918, 4
        %v1920 = vadd.f32 %v1918, %v1919
        %v1921 = vrot.slane %v1920, 2
        %v1922 = vadd.f32 %v1920, %v1921
        %v1923 = vrot.slane %v1922, 1
        %v1924 = vadd.f32 %v1922, %v1923
        %v1925 = vld [vmem:[%s258] sm:$0xff]
        %vm1926 = vcmask 1040384
        %v1927 = vsel %vm1926, %v1903, %v1924
        %vm1928 = vcmask 1041408
        %v1929 = vsel %vm1928, %v1927, 0.0
        %v1930 = vadd.f32 %v1925, %v1929
        %1931 = vst [vmem:[%s258] sm:$0xff] %v1930
      $region44: #{encoder3d_forward.8} parent=31 // pred_fallthru
        _
      %p1932 = scmp.lt.s32.totalorder %s21, 1
      %s1933 = scalar_select %p1932, %s21, 1
      %p1934 = scmp.lt.s32.totalorder %s22, 7
      %s1935 = scalar_select %p1934, %s22, 7
      %s1936 = smul.addr %s1935, 8
      %s1937 = smul.addr %s1933, 64
      %s1938 = sadd.s32 %s1936, %s1937
      %s1939 = smul.addr %s1938, 8
      %s1940 = scalar_lea.vmem %s3, %s1939
      %p1941 = scmp.lt.s32.totalorder %s21, 1
      %s1942 = scalar_select %p1941, %s21, 1
      %s1943 = smul.addr %s1942, 8
      %s1944 = scalar_lea.vmem %s4, %s1943
      // Predicated region
      $region45: #{encoder3d_forward.8} parent=31 // pred_check
        %p1945 = pneg %p127
      $region46: #{encoder3d_forward.8} parent=31 // pred_check_branch
        %1947 = sbr.rel (%p1945) target = $region48
      $region47: #{encoder3d_forward.8} parent=31 // pred_region
        _
      $region48: #{encoder3d_forward.8} parent=31 // pred_fallthru
        _
      // Predicated region
      $region49: #{encoder3d_forward.8} parent=31 // pred_check
        %p1948 = pneg %p153
      $region50: #{encoder3d_forward.8} parent=31 // pred_check_branch
        %1950 = sbr.rel (%p1948) target = $region52
      $region51: #{encoder3d_forward.8} parent=31 // pred_region
        _
      $region52: #{encoder3d_forward.8} parent=31 // pred_fallthru
        _
    $region32: #{encoder3d_forward.8} parent=5 // pred_fallthru
      _
    %p1951 = scmp.le.s32.totalorder 2, %s11
    // Predicated region
    $region53: #{encoder3d_forward.8} parent=5 // pred_check
      %p1952 = pneg %p1951
    $region54: #{encoder3d_forward.8} parent=5 // pred_check_branch
      %1954 = sbr.rel (%p1952) target = $region56
    $region55: #{encoder3d_forward.8} parent=5 // pred_region
      %s1955 = ssub.s32 %s11, 2
      // Predicated region
      $region57: #{encoder3d_forward.8} parent=55 // pred_check
        %p1956 = pneg %p133
      $region58: #{encoder3d_forward.8} parent=55 // pred_check_branch
        %1958 = sbr.rel (%p1956) target = $region60
      $region59: #{encoder3d_forward.8} parent=55 // pred_region
        %p1959 = scmp.lt.s32.totalorder %s24, 1
        %s1960 = scalar_select %p1959, %s24, 1
        %p1961 = scmp.lt.s32.totalorder %s25, 7
        %s1962 = scalar_select %p1961, %s25, 7
        %s1963 = smul.addr %s1962, 8
        %s1964 = smul.addr %s1960, 64
        %s1965 = sadd.s32 %s1963, %s1964
        %s1966 = smul.addr %s1965, 8
        %s1967 = scalar_lea.vmem %s3, %s1966
      $region60: #{encoder3d_forward.8} parent=55 // pred_fallthru
        _
      // Predicated region
      $region61: #{encoder3d_forward.8} parent=55 // pred_check
        %p1968 = pneg %p159
      $region62: #{encoder3d_forward.8} parent=55 // pred_check_branch
        %1970 = sbr.rel (%p1968) target = $region64
      $region63: #{encoder3d_forward.8} parent=55 // pred_region
        %p1971 = scmp.lt.s32.totalorder %s24, 1
        %s1972 = scalar_select %p1971, %s24, 1
        %s1973 = smul.addr %s1972, 8
        %s1974 = scalar_lea.vmem %s4, %s1973
      $region64: #{encoder3d_forward.8} parent=55 // pred_fallthru
        _
    $region56: #{encoder3d_forward.8} parent=5 // pred_fallthru
      _
  $region6: #{encoder3d_forward.8} parent=0 // loop_footer
    %s15 = sadd.s32 1, %s11
  $region7: #{encoder3d_forward.8} parent=0 // loop_footer_branch
    %10 = sbr.rel target = $region3
  $region8: #{encoder3d_forward.8} parent=0 // loop_exit
    _

</llo_original>
